<compile_context>
chip_gen: v6e
topology: v6e:2x2x1
jax: 0.10.0
libtpu: 0.0.40
codegen_flags: <defaults>
</compile_context>

<pallas_src>
import functools

import jax
import jax.numpy as jnp
from jax.experimental import pallas as pl
from jax.experimental.pallas import tpu as pltpu

LANES = 128


def _round_up(x, m):
    return (x + m - 1) // m * m


def _vmem_budget_bytes():
    """~75% of the physical per-core VMEM (64 MiB v7x, 128 MiB v5e/v6e)."""
    try:
        cap = int(pltpu.get_tpu_info().vmem_capacity_bytes)
    except Exception:
        cap = 64 * 1024 * 1024          # conservative default: v7x
    return cap * 3 // 4


def _conv_fused_kernel(*refs, n_ki, row_stride, win_w, w_out, inv_count,
                       do_norm, do_act, add_bias):
    """One (sample, C_out-block) grid step.

    refs = (x_ref, w_ref, [b_ref], o_ref, acc_ref)
      x_ref   : (p_in, K)        tap-packed activations (K = packed taps * Cz)
      w_ref   : (n_ki, K, Cblk)  per-row-tap weight matrices
      b_ref   : (1, Cblk)        f32 bias                (only if add_bias)
      o_ref   : (p_wide, Cblk)   wide output (invalid cols cropped outside)
      acc_ref : (p_wide, Cblk)   f32 VMEM accumulator scratch
    """
    refs = list(refs)
    x_ref = refs.pop(0)
    w_ref = refs.pop(0)
    b_ref = refs.pop(0) if add_bias else None
    o_ref = refs.pop(0)
    acc_ref = refs.pop(0)

    p_wide, _ = o_ref.shape

    # Conv = n_ki sublane-aligned shifted matmuls, f32 accumulation on the MXU.
    acc_ref[...] = jnp.dot(x_ref[0:p_wide, :], w_ref[0],
                           preferred_element_type=jnp.float32)
    for ki in range(1, n_ki):
        start = ki * row_stride              # row_stride % 8 == 0 -> aligned
        acc_ref[...] += jnp.dot(x_ref[start:start + p_wide, :], w_ref[ki],
                                preferred_element_type=jnp.float32)

    acc = acc_ref[...]
    if add_bias:
        acc = acc + b_ref[...]

    if do_norm:
        # InstanceNorm2d(affine=False, eps=1e-5, biased var) over the valid
        # spatial positions only; column mask is a cheap in-kernel iota.
        col = jax.lax.broadcasted_iota(jnp.int32, (p_wide, 1), 0) % win_w
        mask = (col < w_out).astype(jnp.float32)
        acc = acc * mask                     # zero the garbage columns once
        mean = jnp.sum(acc, axis=0, keepdims=True) * inv_count
        ex2 = jnp.sum(acc * acc, axis=0, keepdims=True) * inv_count
        var = jnp.maximum(ex2 - mean * mean, 0.0)
        acc = (acc - mean) * jax.lax.rsqrt(var + 1e-5)

    if do_act:
        acc = jnp.where(acc >= 0.0, acc, 0.2 * acc)        # LeakyReLU(0.2)

    o_ref[...] = acc.astype(o_ref.dtype)


def conv_layer_pallas(x, weight, bias, *, stride, do_norm, do_act,
                      compute_dtype=jnp.bfloat16, out_dtype=None):
    """Fused Conv2d(k=4, pad=1, stride in {1,2}) [+InstanceNorm] [+LeakyReLU].

    x      : [N, H, W, Cx] channels-last, Cx >= weight C_in (extras are zero)
    weight : [C_out, C_in, 4, 4] (PyTorch OIHW), bias: [C_out]
    Returns [N, H_out, W_out, C_out_pad], C_out_pad = round_up(C_out, 128);
    channels >= C_out are exactly zero.
    """
    n, h, w, cx = x.shape
    c_out, c_in, kh, kw = weight.shape
    assert (kh, kw) == (4, 4) and stride in (1, 2)
    assert cx >= c_in
    if out_dtype is None:
        out_dtype = compute_dtype
    c_out_pad = _round_up(c_out, LANES)

    # OIHW -> [kh, kw, Cx, C_out_pad], zero-padded on both channel axes.
    w_t = jnp.transpose(weight, (2, 3, 1, 0))
    w_t = jnp.pad(w_t, ((0, 0), (0, 0), (0, cx - c_in), (0, c_out_pad - c_out)))

    xp = jnp.pad(x, ((0, 0), (1, 1), (1, 1), (0, 0)))       # spatial pad = 1

    if stride == 2:
        # space-to-depth(2): 4x4/s2 conv over x == 2x2/s1 conv over z (4*Cx ch)
        assert h % 2 == 0 and w % 2 == 0, "stride-2 layers need even H, W"
        hz, wz = (h + 2) // 2, (w + 2) // 2
        z = xp.reshape(n, hz, 2, wz, 2, cx)
        z = jnp.transpose(z, (0, 1, 3, 2, 4, 5)).reshape(n, hz, wz, 4 * cx)
        w_e = w_t.reshape(2, 2, 2, 2, cx, c_out_pad)        # [qi,di,qj,dj,ci,co]
        w_e = jnp.transpose(w_e, (0, 2, 1, 3, 4, 5))        # [qi,qj,di,dj,ci,co]
        w_e = w_e.reshape(2, 2, 4 * cx, c_out_pad)          # [ki,kj,Cz,co]
        x_e, ekh, ekw = z, 2, 2
        h_out, w_out = h // 2, w // 2
    else:
        x_e, ekh, ekw = xp, 4, 4
        w_e = w_t                                           # [ki,kj,Cz,co]
        hz, wz = h + 2, w + 2
        h_out, w_out = h - 1, w - 1

    cz = x_e.shape[-1]
    # Sublane-align the flattened row pitch: pad the width to a multiple of 8.
    wz_pad = _round_up(wz, 8)
    x_e = jnp.pad(x_e, ((0, 0), (0, 0), (0, wz_pad - wz), (0, 0)))
    p_wide = h_out * wz_pad            # wide rows; cols >= w_out are garbage
    rows_full = hz * wz_pad
    x_flat = x_e.reshape(n, rows_full, cz)
    # ekw-1 trailing zero rows so every kj-shifted slice stays in bounds.
    x_flat = jnp.pad(x_flat, ((0, 0), (0, ekw - 1), (0, 0)))

    # Pack the kw (and, for tiny K, also the kh) taps into the K axis so the
    # kernel only issues sublane-aligned slices and large-K MXU matmuls.
    full_pack = (ekw * cz) < 128
    if full_pack:
        taps = [x_flat[:, ki * wz_pad + kj: ki * wz_pad + kj + p_wide, :]
                for ki in range(ekh) for kj in range(ekw)]
        x_pack = jnp.concatenate(taps, axis=-1)             # (n, p_wide, K)
        w_pack = w_e.reshape(1, ekh * ekw * cz, c_out_pad)
        n_ki, p_in = 1, p_wide
    else:
        taps = [x_flat[:, kj: kj + rows_full, :] for kj in range(ekw)]
        x_pack = jnp.concatenate(taps, axis=-1)             # (n, rows_full, K)
        w_pack = w_e.reshape(ekh, ekw * cz, c_out_pad)
        n_ki, p_in = ekh, rows_full
    k_dim = x_pack.shape[-1]

    x_pack = x_pack.astype(compute_dtype)
    w_pack = w_pack.astype(compute_dtype)

    csize = jnp.dtype(compute_dtype).itemsize
    osize = jnp.dtype(out_dtype).itemsize
    add_bias = not do_norm             # InstanceNorm cancels a per-channel bias

    def vmem_need(c_blk):
        return int(2 * p_in * k_dim * csize              # x (double-buffered)
                   + 2 * n_ki * k_dim * c_blk * csize    # weights
                   + 2 * p_wide * c_blk * osize          # output
                   + 4 * p_wide * c_blk * 4              # f32 acc + epilogue tmp
                   + 2 * c_blk * 4)                      # bias

    budget = _vmem_budget_bytes()
    # Prefer wide (lane-dense) output blocks, but keep >= 2 parallel grid
    # steps so both v7x TensorCores get work on small batches.
    c_blk = 128
    for cand in (256, 512):
        if (c_out_pad % cand == 0 and n * (c_out_pad // cand) >= 2
                and vmem_need(cand) <= budget):
            c_blk = cand
    need = vmem_need(c_blk)
    # TODO(synk): P-tiled grid + two-pass InstanceNorm fallback instead of
    # asserting when a full-spatial per-sample block no longer fits.
    assert need <= budget, (
        f"conv block needs ~{need / 2**20:.1f} MiB VMEM > budget "
        f"{budget / 2**20:.1f} MiB; P-tiled fallback not implemented")
    vmem_limit = int(min(max(need + 8 * 1024 * 1024, 16 * 1024 * 1024), budget))
    n_cblk = c_out_pad // c_blk

    inputs = [x_pack, w_pack]
    in_specs = [
        pl.BlockSpec((None, p_in, k_dim), lambda ni, ci: (ni, 0, 0)),
        pl.BlockSpec((n_ki, k_dim, c_blk), lambda ni, ci: (0, 0, ci)),
    ]
    if add_bias:
        b_p = jnp.pad(bias, (0, c_out_pad - c_out)).astype(jnp.float32)
        inputs.append(b_p.reshape(1, c_out_pad))
        in_specs.append(pl.BlockSpec((1, c_blk), lambda ni, ci: (0, ci)))

    kernel = functools.partial(
        _conv_fused_kernel, n_ki=n_ki, row_stride=wz_pad, win_w=wz_pad,
        w_out=w_out, inv_count=1.0 / float(h_out * w_out),
        do_norm=do_norm, do_act=do_act, add_bias=add_bias)

    cost = pl.CostEstimate(
        flops=2 * n * p_wide * (n_ki * k_dim) * c_out_pad,
        transcendentals=(n * c_out_pad) if do_norm else 0,
        bytes_accessed=int(n * p_in * k_dim * csize
                           + n_ki * k_dim * c_out_pad * csize
                           + n * p_wide * c_out_pad * osize))

    out = pl.pallas_call(
        kernel,
        out_shape=jax.ShapeDtypeStruct((n, p_wide, c_out_pad), out_dtype),
        grid_spec=pltpu.PrefetchScalarGridSpec(
            num_scalar_prefetch=0,
            grid=(n, n_cblk),
            in_specs=in_specs,
            out_specs=pl.BlockSpec((None, p_wide, c_blk),
                                   lambda ni, ci: (ni, 0, ci)),
            scratch_shapes=[pltpu.VMEM((p_wide, c_blk), jnp.float32)],
        ),
        compiler_params=pltpu.CompilerParams(
            dimension_semantics=("parallel", "parallel"),
            vmem_limit_bytes=vmem_limit),
        cost_estimate=cost,
    )(*inputs)

    # TODO(synk): emit the next layer's packed layout directly from the kernel
    # stores to remove this crop + the next layer's pad/s2d/pack HBM pass.
    return out.reshape(n, h_out, wz_pad, c_out_pad)[:, :, :w_out, :]


def init_discriminator_params(key, in_ch, ndf=64, n_layers=3):
    """Deterministic synthetic parameters matching the PyTorch layer shapes."""
    def conv_params(k, c_in, c_out):
        k1, k2 = jax.random.split(k)
        w = jax.random.normal(k1, (c_out, c_in, 4, 4), jnp.float32) * 0.05
        b = jax.random.normal(k2, (c_out,), jnp.float32) * 0.05
        return w, b

    keys = jax.random.split(key, n_layers + 2)
    layers = []
    # Conv(in_ch, ndf, 4, 2, 1) + LeakyReLU(0.2)
    layers.append(dict(w_b=conv_params(keys[0], in_ch, ndf),
                       stride=2, norm=False, act=True))
    # Conv(ndf*2^(i-1), ndf*2^i, 4, 2, 1) + InstanceNorm + LeakyReLU(0.2)
    for i in range(1, n_layers + 1):
        layers.append(dict(w_b=conv_params(keys[i], ndf * 2 ** (i - 1), ndf * 2 ** i),
                           stride=2, norm=True, act=True))
    # Conv(ndf*2^n_layers, 1, 4, 1, 1)
    layers.append(dict(w_b=conv_params(keys[-1], ndf * 2 ** n_layers, 1),
                       stride=1, norm=False, act=False))
    return layers


def discriminator_forward(params, x_nchw, compute_dtype=jnp.bfloat16):
    """Discriminator forward. x_nchw: [N, C, H, W] f32 -> [N, 1, H', W'] f32."""
    x = jnp.transpose(x_nchw, (0, 2, 3, 1))          # NCHW -> NHWC once
    last = len(params) - 1
    for li, layer in enumerate(params):
        wgt, b = layer["w_b"]
        x = conv_layer_pallas(
            x, wgt, b, stride=layer["stride"], do_norm=layer["norm"],
            do_act=layer["act"], compute_dtype=compute_dtype,
            out_dtype=jnp.float32 if li == last else compute_dtype)
    c_final = params[-1]["w_b"][0].shape[0]
    x = x[..., :c_final]                             # drop channel padding
    return jnp.transpose(x, (0, 3, 1, 2))            # back to NCHW


def _ref_forward(params, x):
    """Pure-JAX f32 reference (XLA conv) for correctness checking."""
    for layer in params:
        w, b = layer["w_b"]
        s = layer["stride"]
        y = jax.lax.conv_general_dilated(
            x, w, (s, s), [(1, 1), (1, 1)],
            dimension_numbers=("NCHW", "OIHW", "NCHW"))
        y = y + b.reshape(1, -1, 1, 1)
        if layer["norm"]:
            mean = jnp.mean(y, axis=(2, 3), keepdims=True)
            var = jnp.mean((y - mean) ** 2, axis=(2, 3), keepdims=True)
            y = (y - mean) * jax.lax.rsqrt(var + 1e-5)
        if layer["act"]:
            y = jnp.where(y >= 0, y, 0.2 * y)
        x = y
    return x


if __name__ == "__main__":
    # Small config consistent with the module: Discriminator(in_ch=4, ndf=8, n_layers=2)
    N, IN_CH, H, W = 2, 4, 16, 16
    NDF, N_LAYERS = 8, 2

    key = jax.random.PRNGKey(0)
    kx, kp = jax.random.split(key)
    x = jax.random.normal(kx, (N, IN_CH, H, W), jnp.float32)
    params = init_discriminator_params(kp, IN_CH, ndf=NDF, n_layers=N_LAYERS)

    ref = jax.block_until_ready(_ref_forward(params, x))

    # f32 kernel path: strict correctness check against the XLA reference.
    fwd_f32 = jax.jit(
        lambda xx: discriminator_forward(params, xx, compute_dtype=jnp.float32))
    out_f32 = jax.block_until_ready(fwd_f32(x))
    assert out_f32.shape == ref.shape, (out_f32.shape, ref.shape)
    assert jnp.allclose(out_f32, ref, atol=1e-3, rtol=1e-3), \
        float(jnp.max(jnp.abs(out_f32 - ref)))

    # bf16 fast path (default): sanity check with relaxed tolerance
    # (matmul inputs and norm statistics come from bf16-quantized activations).
    fwd_bf16 = jax.jit(
        lambda xx: discriminator_forward(params, xx, compute_dtype=jnp.bfloat16))
    out_bf16 = jax.block_until_ready(fwd_bf16(x))
    assert out_bf16.shape == ref.shape, (out_bf16.shape, ref.shape)
    assert jnp.allclose(out_bf16.astype(jnp.float32), ref, atol=0.15, rtol=0.15), \
        float(jnp.max(jnp.abs(out_bf16.astype(jnp.float32) - ref)))

    print("KERNEL_OK")
</pallas_src>

<mosaic_0001>
module attributes {stable_mosaic.version = 11 : i64} {
  func.func @_conv_fused_kernel(%arg0: i32, %arg1: i32, %arg2: memref<1x128x64xf32, #tpu.memory_space<vmem>>, %arg3: memref<1x64x128xf32, #tpu.memory_space<vmem>>, %arg4: memref<1x128xf32, #tpu.memory_space<vmem>>, %arg5: memref<1x128x128xf32, #tpu.memory_space<vmem>>, %arg6: memref<128x128xf32, #tpu.memory_space<vmem>>) attributes {dimension_semantics = [#tpu.dimension_semantics<parallel>, #tpu.dimension_semantics<parallel>], iteration_bounds = array<i64: 2, 1>, scalar_prefetch = 0 : i64, scratch_operands = 1 : i64, tpu.core_type = #tpu.core_type<tc>, window_params = [{transform_indices = @transform_0, window_bounds = array<i64: 1, 128, 64>}, {transform_indices = @transform_1, window_bounds = array<i64: 1, 64, 128>}, {transform_indices = @transform_2, window_bounds = array<i64: 1, 128>}, {transform_indices = @transform_3, window_bounds = array<i64: 1, 128, 128>}]} {
    %c0 = arith.constant 0 : index
    %c0_0 = arith.constant 0 : index
    %c0_1 = arith.constant 0 : index
    %0 = vector.load %arg2[%c0, %c0_0, %c0_1] : memref<1x128x64xf32, #tpu.memory_space<vmem>>, vector<1x128x64xf32>
    %1 = vector.shape_cast %0 : vector<1x128x64xf32> to vector<128x64xf32>
    %c0_2 = arith.constant 0 : index
    %c0_3 = arith.constant 0 : index
    %c0_4 = arith.constant 0 : index
    %2 = vector.load %arg3[%c0_2, %c0_3, %c0_4] : memref<1x64x128xf32, #tpu.memory_space<vmem>>, vector<1x64x128xf32>
    %3 = vector.shape_cast %2 : vector<1x64x128xf32> to vector<64x128xf32>
    %cst = arith.constant dense<0.000000e+00> : vector<128x128xf32>
    %4 = tpu.matmul %1, %3, %cst {dimension_numbers = #tpu.dot_dimension_numbers<[1], [0], [0], [1], [0, 0, 1, 1], [], []>} : vector<128x64xf32>, vector<64x128xf32>, vector<128x128xf32> -> vector<128x128xf32>
    %c0_5 = arith.constant 0 : index
    %c0_6 = arith.constant 0 : index
    %5 = vector.load %arg6[%c0_5, %c0_6] : memref<128x128xf32, #tpu.memory_space<vmem>>, vector<128x128xf32>
    tpu.vector_store %arg6[%c0_5, %c0_6], %4 {strides = array<i32>} : memref<128x128xf32, #tpu.memory_space<vmem>>, vector<128x128xf32>,
    %c0_7 = arith.constant 0 : index
    %c0_8 = arith.constant 0 : index
    %6 = vector.load %arg6[%c0_7, %c0_8] : memref<128x128xf32, #tpu.memory_space<vmem>>, vector<128x128xf32>
    %c0_9 = arith.constant 0 : index
    %c0_10 = arith.constant 0 : index
    %7 = vector.load %arg4[%c0_9, %c0_10] : memref<1x128xf32, #tpu.memory_space<vmem>>, vector<1x128xf32>
    %8 = vector.broadcast %7 : vector<1x128xf32> to vector<128x128xf32>
    %9 = arith.addf %6, %8 : vector<128x128xf32>
    %cst_11 = arith.constant 0.000000e+00 : f32
    %10 = vector.broadcast %cst_11 : f32 to vector<128x128xf32>
    %11 = arith.cmpf oge, %9, %10 : vector<128x128xf32>
    %cst_12 = arith.constant 2.000000e-01 : f32
    %12 = vector.broadcast %cst_12 : f32 to vector<128x128xf32>
    %13 = arith.mulf %12, %9 : vector<128x128xf32>
    %14 = arith.select %11, %9, %13 : vector<128x128xi1>, vector<128x128xf32>
    %c0_13 = arith.constant 0 : index
    %c0_14 = arith.constant 0 : index
    %c0_15 = arith.constant 0 : index
    %15 = vector.load %arg5[%c0_13, %c0_14, %c0_15] : memref<1x128x128xf32, #tpu.memory_space<vmem>>, vector<1x128x128xf32>
    %16 = vector.shape_cast %15 : vector<1x128x128xf32> to vector<128x128xf32>
    %17 = vector.shape_cast %14 : vector<128x128xf32> to vector<1x128x128xf32>
    tpu.vector_store %arg5[%c0_13, %c0_14, %c0_15], %17 {strides = array<i32>} : memref<1x128x128xf32, #tpu.memory_space<vmem>>, vector<1x128x128xf32>,
    return
  }
  func.func @transform_0(%arg0: i32, %arg1: i32) -> (i32, i32, i32) {
    %c0_i32 = arith.constant 0 : i32
    %c0_i32_0 = arith.constant 0 : i32
    %c0_i32_1 = arith.constant 0 : i32
    return %arg0, %c0_i32, %c0_i32_0 : i32, i32, i32
  }
  func.func @transform_1(%arg0: i32, %arg1: i32) -> (i32, i32, i32) {
    %c0_i32 = arith.constant 0 : i32
    %c0_i32_0 = arith.constant 0 : i32
    %c0_i32_1 = arith.constant 0 : i32
    return %c0_i32, %c0_i32_0, %arg1 : i32, i32, i32
  }
  func.func @transform_2(%arg0: i32, %arg1: i32) -> (i32, i32) {
    %c0_i32 = arith.constant 0 : i32
    %c0_i32_0 = arith.constant 0 : i32
    return %c0_i32, %arg1 : i32, i32
  }
  func.func @transform_3(%arg0: i32, %arg1: i32) -> (i32, i32, i32) {
    %c0_i32 = arith.constant 0 : i32
    %c0_i32_0 = arith.constant 0 : i32
    return %arg0, %c0_i32, %arg1 : i32, i32, i32
  }
}

module attributes {stable_mosaic.version = 11 : i64} {
  func.func @_conv_fused_kernel(%arg0: i32, %arg1: i32, %arg2: memref<1x40x1024xf32, #tpu.memory_space<vmem>>, %arg3: memref<2x1024x128xf32, #tpu.memory_space<vmem>>, %arg4: memref<1x32x128xf32, #tpu.memory_space<vmem>>, %arg5: memref<32x128xf32, #tpu.memory_space<vmem>>) attributes {dimension_semantics = [#tpu.dimension_semantics<parallel>, #tpu.dimension_semantics<parallel>], iteration_bounds = array<i64: 2, 1>, scalar_prefetch = 0 : i64, scratch_operands = 1 : i64, tpu.core_type = #tpu.core_type<tc>, window_params = [{transform_indices = @transform_0, window_bounds = array<i64: 1, 40, 1024>}, {transform_indices = @transform_1, window_bounds = array<i64: 2, 1024, 128>}, {transform_indices = @transform_2, window_bounds = array<i64: 1, 32, 128>}]} {
    %c0 = arith.constant 0 : index
    %c0_0 = arith.constant 0 : index
    %c0_1 = arith.constant 0 : index
    %0 = vector.load %arg2[%c0, %c0_0, %c0_1] : memref<1x40x1024xf32, #tpu.memory_space<vmem>>, vector<1x32x1024xf32>
    %1 = vector.shape_cast %0 : vector<1x32x1024xf32> to vector<32x1024xf32>
    %c0_2 = arith.constant 0 : index
    %c0_3 = arith.constant 0 : index
    %c0_4 = arith.constant 0 : index
    %2 = vector.load %arg3[%c0_2, %c0_3, %c0_4] : memref<2x1024x128xf32, #tpu.memory_space<vmem>>, vector<1x1024x128xf32>
    %3 = vector.shape_cast %2 : vector<1x1024x128xf32> to vector<1024x128xf32>
    %cst = arith.constant dense<0.000000e+00> : vector<32x128xf32>
    %4 = tpu.matmul %1, %3, %cst {dimension_numbers = #tpu.dot_dimension_numbers<[1], [0], [0], [1], [0, 0, 1, 1], [], []>} : vector<32x1024xf32>, vector<1024x128xf32>, vector<32x128xf32> -> vector<32x128xf32>
    %c0_5 = arith.constant 0 : index
    %c0_6 = arith.constant 0 : index
    %5 = vector.load %arg5[%c0_5, %c0_6] : memref<32x128xf32, #tpu.memory_space<vmem>>, vector<32x128xf32>
    tpu.vector_store %arg5[%c0_5, %c0_6], %4 {strides = array<i32>} : memref<32x128xf32, #tpu.memory_space<vmem>>, vector<32x128xf32>,
    %c0_7 = arith.constant 0 : index
    %c0_8 = arith.constant 0 : index
    %6 = vector.load %arg5[%c0_7, %c0_8] : memref<32x128xf32, #tpu.memory_space<vmem>>, vector<32x128xf32>
    %c0_9 = arith.constant 0 : index
    %c8 = arith.constant 8 : index
    %c0_10 = arith.constant 0 : index
    %7 = vector.load %arg2[%c0_9, %c8, %c0_10] : memref<1x40x1024xf32, #tpu.memory_space<vmem>>, vector<1x32x1024xf32>
    %8 = vector.shape_cast %7 : vector<1x32x1024xf32> to vector<32x1024xf32>
    %c1 = arith.constant 1 : index
    %c0_11 = arith.constant 0 : index
    %c0_12 = arith.constant 0 : index
    %9 = vector.load %arg3[%c1, %c0_11, %c0_12] : memref<2x1024x128xf32, #tpu.memory_space<vmem>>, vector<1x1024x128xf32>
    %10 = vector.shape_cast %9 : vector<1x1024x128xf32> to vector<1024x128xf32>
    %cst_13 = arith.constant dense<0.000000e+00> : vector<32x128xf32>
    %11 = tpu.matmul %8, %10, %cst_13 {dimension_numbers = #tpu.dot_dimension_numbers<[1], [0], [0], [1], [0, 0, 1, 1], [], []>} : vector<32x1024xf32>, vector<1024x128xf32>, vector<32x128xf32> -> vector<32x128xf32>
    %12 = arith.addf %6, %11 : vector<32x128xf32>
    %c0_14 = arith.constant 0 : index
    %c0_15 = arith.constant 0 : index
    %13 = vector.load %arg5[%c0_14, %c0_15] : memref<32x128xf32, #tpu.memory_space<vmem>>, vector<32x128xf32>
    tpu.vector_store %arg5[%c0_14, %c0_15], %12 {strides = array<i32>} : memref<32x128xf32, #tpu.memory_space<vmem>>, vector<32x128xf32>,
    %c0_16 = arith.constant 0 : index
    %c0_17 = arith.constant 0 : index
    %14 = vector.load %arg5[%c0_16, %c0_17] : memref<32x128xf32, #tpu.memory_space<vmem>>, vector<32x128xf32>
    %15 = tpu.iota {dimensions = array<i32: 0>} : vector<32x1xi32>
    %c8_i32 = arith.constant 8 : i32
    %c0_i32 = arith.constant 0 : i32
    %16 = arith.cmpi eq, %c8_i32, %c0_i32 : i32
    %c1_i32 = arith.constant 1 : i32
    %17 = arith.select %16, %c1_i32, %c8_i32 : i32
    %18 = vector.broadcast %17 : i32 to vector<32x1xi32>
    %19 = arith.remsi %15, %18 : vector<32x1xi32>
    %c0_i32_18 = arith.constant 0 : i32
    %20 = vector.broadcast %c0_i32_18 : i32 to vector<32x1xi32>
    %21 = arith.cmpi ne, %19, %20 : vector<32x1xi32>
    %c0_i32_19 = arith.constant 0 : i32
    %22 = vector.broadcast %c0_i32_19 : i32 to vector<32x1xi32>
    %23 = arith.cmpi slt, %19, %22 : vector<32x1xi32>
    %c0_i32_20 = arith.constant 0 : i32
    %24 = arith.cmpi slt, %17, %c0_i32_20 : i32
    %25 = vector.broadcast %24 : i1 to vector<32x1xi1>
    %26 = vector.broadcast %25 : vector<32x1xi1> to vector<32x1xi1>
    %27 = arith.xori %23, %26 : vector<32x1xi1>
    %28 = arith.andi %27, %21 : vector<32x1xi1>
    %29 = vector.broadcast %17 : i32 to vector<32x1xi32>
    %30 = arith.addi %19, %29 : vector<32x1xi32>
    %31 = arith.select %28, %30, %19 : vector<32x1xi1>, vector<32x1xi32>
    %c4_i32 = arith.constant 4 : i32
    %32 = vector.broadcast %c4_i32 : i32 to vector<32x1xi32>
    %33 = arith.cmpi slt, %31, %32 : vector<32x1xi32>
    %34 = arith.extui %33 : vector<32x1xi1> to vector<32x1xi32>
    %35 = arith.sitofp %34 : vector<32x1xi32> to vector<32x1xf32>
    %36 = vector.broadcast %35 : vector<32x1xf32> to vector<32x128xf32>
    %37 = arith.mulf %14, %36 : vector<32x128xf32>
    %cst_21 = arith.constant dense<0.000000e+00> : vector<128xf32>
    %38 = vector.multi_reduction <add>, %37, %cst_21 [0] : vector<32x128xf32> to vector<128xf32>
    %39 = vector.shape_cast %38 : vector<128xf32> to vector<1x128xf32>
    %cst_22 = arith.constant 6.250000e-02 : f32
    %40 = vector.broadcast %cst_22 : f32 to vector<1x128xf32>
    %41 = arith.mulf %39, %40 : vector<1x128xf32>
    %42 = arith.mulf %37, %37 : vector<32x128xf32>
    %cst_23 = arith.constant dense<0.000000e+00> : vector<128xf32>
    %43 = vector.multi_reduction <add>, %42, %cst_23 [0] : vector<32x128xf32> to vector<128xf32>
    %44 = vector.shape_cast %43 : vector<128xf32> to vector<1x128xf32>
    %cst_24 = arith.constant 6.250000e-02 : f32
    %45 = vector.broadcast %cst_24 : f32 to vector<1x128xf32>
    %46 = arith.mulf %44, %45 : vector<1x128xf32>
    %47 = arith.mulf %41, %41 : vector<1x128xf32>
    %48 = arith.subf %46, %47 : vector<1x128xf32>
    %cst_25 = arith.constant 0.000000e+00 : f32
    %49 = vector.broadcast %cst_25 : f32 to vector<1x128xf32>
    %50 = arith.maximumf %48, %49 : vector<1x128xf32>
    %51 = vector.broadcast %41 : vector<1x128xf32> to vector<32x128xf32>
    %52 = arith.subf %37, %51 : vector<32x128xf32>
    %cst_26 = arith.constant 9.99999974E-6 : f32
    %53 = vector.broadcast %cst_26 : f32 to vector<1x128xf32>
    %54 = arith.addf %50, %53 : vector<1x128xf32>
    %55 = math.rsqrt %54 : vector<1x128xf32>
    %56 = vector.broadcast %55 : vector<1x128xf32> to vector<32x128xf32>
    %57 = arith.mulf %52, %56 : vector<32x128xf32>
    %cst_27 = arith.constant 0.000000e+00 : f32
    %58 = vector.broadcast %cst_27 : f32 to vector<32x128xf32>
    %59 = arith.cmpf oge, %57, %58 : vector<32x128xf32>
    %cst_28 = arith.constant 2.000000e-01 : f32
    %60 = vector.broadcast %cst_28 : f32 to vector<32x128xf32>
    %61 = arith.mulf %60, %57 : vector<32x128xf32>
    %62 = arith.select %59, %57, %61 : vector<32x128xi1>, vector<32x128xf32>
    %c0_29 = arith.constant 0 : index
    %c0_30 = arith.constant 0 : index
    %c0_31 = arith.constant 0 : index
    %63 = vector.load %arg4[%c0_29, %c0_30, %c0_31] : memref<1x32x128xf32, #tpu.memory_space<vmem>>, vector<1x32x128xf32>
    %64 = vector.shape_cast %63 : vector<1x32x128xf32> to vector<32x128xf32>
    %65 = vector.shape_cast %62 : vector<32x128xf32> to vector<1x32x128xf32>
    tpu.vector_store %arg4[%c0_29, %c0_30, %c0_31], %65 {strides = array<i32>} : memref<1x32x128xf32, #tpu.memory_space<vmem>>, vector<1x32x128xf32>,
    return
  }
  func.func @transform_0(%arg0: i32, %arg1: i32) -> (i32, i32, i32) {
    %c0_i32 = arith.constant 0 : i32
    %c0_i32_0 = arith.constant 0 : i32
    %c0_i32_1 = arith.constant 0 : i32
    return %arg0, %c0_i32, %c0_i32_0 : i32, i32, i32
  }
  func.func @transform_1(%arg0: i32, %arg1: i32) -> (i32, i32, i32) {
    %c0_i32 = arith.constant 0 : i32
    %c0_i32_0 = arith.constant 0 : i32
    %c0_i32_1 = arith.constant 0 : i32
    return %c0_i32, %c0_i32_0, %arg1 : i32, i32, i32
  }
  func.func @transform_2(%arg0: i32, %arg1: i32) -> (i32, i32, i32) {
    %c0_i32 = arith.constant 0 : i32
    %c0_i32_0 = arith.constant 0 : i32
    return %arg0, %c0_i32, %arg1 : i32, i32, i32
  }
}

module attributes {stable_mosaic.version = 11 : i64} {
  func.func @_conv_fused_kernel(%arg0: i32, %arg1: i32, %arg2: memref<1x24x1024xf32, #tpu.memory_space<vmem>>, %arg3: memref<2x1024x128xf32, #tpu.memory_space<vmem>>, %arg4: memref<1x16x128xf32, #tpu.memory_space<vmem>>, %arg5: memref<16x128xf32, #tpu.memory_space<vmem>>) attributes {dimension_semantics = [#tpu.dimension_semantics<parallel>, #tpu.dimension_semantics<parallel>], iteration_bounds = array<i64: 2, 1>, scalar_prefetch = 0 : i64, scratch_operands = 1 : i64, tpu.core_type = #tpu.core_type<tc>, window_params = [{transform_indices = @transform_0, window_bounds = array<i64: 1, 24, 1024>}, {transform_indices = @transform_1, window_bounds = array<i64: 2, 1024, 128>}, {transform_indices = @transform_2, window_bounds = array<i64: 1, 16, 128>}]} {
    %c0 = arith.constant 0 : index
    %c0_0 = arith.constant 0 : index
    %c0_1 = arith.constant 0 : index
    %0 = vector.load %arg2[%c0, %c0_0, %c0_1] : memref<1x24x1024xf32, #tpu.memory_space<vmem>>, vector<1x16x1024xf32>
    %1 = vector.shape_cast %0 : vector<1x16x1024xf32> to vector<16x1024xf32>
    %c0_2 = arith.constant 0 : index
    %c0_3 = arith.constant 0 : index
    %c0_4 = arith.constant 0 : index
    %2 = vector.load %arg3[%c0_2, %c0_3, %c0_4] : memref<2x1024x128xf32, #tpu.memory_space<vmem>>, vector<1x1024x128xf32>
    %3 = vector.shape_cast %2 : vector<1x1024x128xf32> to vector<1024x128xf32>
    %cst = arith.constant dense<0.000000e+00> : vector<16x128xf32>
    %4 = tpu.matmul %1, %3, %cst {dimension_numbers = #tpu.dot_dimension_numbers<[1], [0], [0], [1], [0, 0, 1, 1], [], []>} : vector<16x1024xf32>, vector<1024x128xf32>, vector<16x128xf32> -> vector<16x128xf32>
    %c0_5 = arith.constant 0 : index
    %c0_6 = arith.constant 0 : index
    %5 = vector.load %arg5[%c0_5, %c0_6] : memref<16x128xf32, #tpu.memory_space<vmem>>, vector<16x128xf32>
    tpu.vector_store %arg5[%c0_5, %c0_6], %4 {strides = array<i32>} : memref<16x128xf32, #tpu.memory_space<vmem>>, vector<16x128xf32>,
    %c0_7 = arith.constant 0 : index
    %c0_8 = arith.constant 0 : index
    %6 = vector.load %arg5[%c0_7, %c0_8] : memref<16x128xf32, #tpu.memory_space<vmem>>, vector<16x128xf32>
    %c0_9 = arith.constant 0 : index
    %c8 = arith.constant 8 : index
    %c0_10 = arith.constant 0 : index
    %7 = vector.load %arg2[%c0_9, %c8, %c0_10] : memref<1x24x1024xf32, #tpu.memory_space<vmem>>, vector<1x16x1024xf32>
    %8 = vector.shape_cast %7 : vector<1x16x1024xf32> to vector<16x1024xf32>
    %c1 = arith.constant 1 : index
    %c0_11 = arith.constant 0 : index
    %c0_12 = arith.constant 0 : index
    %9 = vector.load %arg3[%c1, %c0_11, %c0_12] : memref<2x1024x128xf32, #tpu.memory_space<vmem>>, vector<1x1024x128xf32>
    %10 = vector.shape_cast %9 : vector<1x1024x128xf32> to vector<1024x128xf32>
    %cst_13 = arith.constant dense<0.000000e+00> : vector<16x128xf32>
    %11 = tpu.matmul %8, %10, %cst_13 {dimension_numbers = #tpu.dot_dimension_numbers<[1], [0], [0], [1], [0, 0, 1, 1], [], []>} : vector<16x1024xf32>, vector<1024x128xf32>, vector<16x128xf32> -> vector<16x128xf32>
    %12 = arith.addf %6, %11 : vector<16x128xf32>
    %c0_14 = arith.constant 0 : index
    %c0_15 = arith.constant 0 : index
    %13 = vector.load %arg5[%c0_14, %c0_15] : memref<16x128xf32, #tpu.memory_space<vmem>>, vector<16x128xf32>
    tpu.vector_store %arg5[%c0_14, %c0_15], %12 {strides = array<i32>} : memref<16x128xf32, #tpu.memory_space<vmem>>, vector<16x128xf32>,
    %c0_16 = arith.constant 0 : index
    %c0_17 = arith.constant 0 : index
    %14 = vector.load %arg5[%c0_16, %c0_17] : memref<16x128xf32, #tpu.memory_space<vmem>>, vector<16x128xf32>
    %15 = tpu.iota {dimensions = array<i32: 0>} : vector<16x1xi32>
    %c8_i32 = arith.constant 8 : i32
    %c0_i32 = arith.constant 0 : i32
    %16 = arith.cmpi eq, %c8_i32, %c0_i32 : i32
    %c1_i32 = arith.constant 1 : i32
    %17 = arith.select %16, %c1_i32, %c8_i32 : i32
    %18 = vector.broadcast %17 : i32 to vector<16x1xi32>
    %19 = arith.remsi %15, %18 : vector<16x1xi32>
    %c0_i32_18 = arith.constant 0 : i32
    %20 = vector.broadcast %c0_i32_18 : i32 to vector<16x1xi32>
    %21 = arith.cmpi ne, %19, %20 : vector<16x1xi32>
    %c0_i32_19 = arith.constant 0 : i32
    %22 = vector.broadcast %c0_i32_19 : i32 to vector<16x1xi32>
    %23 = arith.cmpi slt, %19, %22 : vector<16x1xi32>
    %c0_i32_20 = arith.constant 0 : i32
    %24 = arith.cmpi slt, %17, %c0_i32_20 : i32
    %25 = vector.broadcast %24 : i1 to vector<16x1xi1>
    %26 = vector.broadcast %25 : vector<16x1xi1> to vector<16x1xi1>
    %27 = arith.xori %23, %26 : vector<16x1xi1>
    %28 = arith.andi %27, %21 : vector<16x1xi1>
    %29 = vector.broadcast %17 : i32 to vector<16x1xi32>
    %30 = arith.addi %19, %29 : vector<16x1xi32>
    %31 = arith.select %28, %30, %19 : vector<16x1xi1>, vector<16x1xi32>
    %c2_i32 = arith.constant 2 : i32
    %32 = vector.broadcast %c2_i32 : i32 to vector<16x1xi32>
    %33 = arith.cmpi slt, %31, %32 : vector<16x1xi32>
    %34 = arith.extui %33 : vector<16x1xi1> to vector<16x1xi32>
    %35 = arith.sitofp %34 : vector<16x1xi32> to vector<16x1xf32>
    %36 = vector.broadcast %35 : vector<16x1xf32> to vector<16x128xf32>
    %37 = arith.mulf %14, %36 : vector<16x128xf32>
    %cst_21 = arith.constant dense<0.000000e+00> : vector<128xf32>
    %38 = vector.multi_reduction <add>, %37, %cst_21 [0] : vector<16x128xf32> to vector<128xf32>
    %39 = vector.shape_cast %38 : vector<128xf32> to vector<1x128xf32>
    %cst_22 = arith.constant 2.500000e-01 : f32
    %40 = vector.broadcast %cst_22 : f32 to vector<1x128xf32>
    %41 = arith.mulf %39, %40 : vector<1x128xf32>
    %42 = arith.mulf %37, %37 : vector<16x128xf32>
    %cst_23 = arith.constant dense<0.000000e+00> : vector<128xf32>
    %43 = vector.multi_reduction <add>, %42, %cst_23 [0] : vector<16x128xf32> to vector<128xf32>
    %44 = vector.shape_cast %43 : vector<128xf32> to vector<1x128xf32>
    %cst_24 = arith.constant 2.500000e-01 : f32
    %45 = vector.broadcast %cst_24 : f32 to vector<1x128xf32>
    %46 = arith.mulf %44, %45 : vector<1x128xf32>
    %47 = arith.mulf %41, %41 : vector<1x128xf32>
    %48 = arith.subf %46, %47 : vector<1x128xf32>
    %cst_25 = arith.constant 0.000000e+00 : f32
    %49 = vector.broadcast %cst_25 : f32 to vector<1x128xf32>
    %50 = arith.maximumf %48, %49 : vector<1x128xf32>
    %51 = vector.broadcast %41 : vector<1x128xf32> to vector<16x128xf32>
    %52 = arith.subf %37, %51 : vector<16x128xf32>
    %cst_26 = arith.constant 9.99999974E-6 : f32
    %53 = vector.broadcast %cst_26 : f32 to vector<1x128xf32>
    %54 = arith.addf %50, %53 : vector<1x128xf32>
    %55 = math.rsqrt %54 : vector<1x128xf32>
    %56 = vector.broadcast %55 : vector<1x128xf32> to vector<16x128xf32>
    %57 = arith.mulf %52, %56 : vector<16x128xf32>
    %cst_27 = arith.constant 0.000000e+00 : f32
    %58 = vector.broadcast %cst_27 : f32 to vector<16x128xf32>
    %59 = arith.cmpf oge, %57, %58 : vector<16x128xf32>
    %cst_28 = arith.constant 2.000000e-01 : f32
    %60 = vector.broadcast %cst_28 : f32 to vector<16x128xf32>
    %61 = arith.mulf %60, %57 : vector<16x128xf32>
    %62 = arith.select %59, %57, %61 : vector<16x128xi1>, vector<16x128xf32>
    %c0_29 = arith.constant 0 : index
    %c0_30 = arith.constant 0 : index
    %c0_31 = arith.constant 0 : index
    %63 = vector.load %arg4[%c0_29, %c0_30, %c0_31] : memref<1x16x128xf32, #tpu.memory_space<vmem>>, vector<1x16x128xf32>
    %64 = vector.shape_cast %63 : vector<1x16x128xf32> to vector<16x128xf32>
    %65 = vector.shape_cast %62 : vector<16x128xf32> to vector<1x16x128xf32>
    tpu.vector_store %arg4[%c0_29, %c0_30, %c0_31], %65 {strides = array<i32>} : memref<1x16x128xf32, #tpu.memory_space<vmem>>, vector<1x16x128xf32>,
    return
  }
  func.func @transform_0(%arg0: i32, %arg1: i32) -> (i32, i32, i32) {
    %c0_i32 = arith.constant 0 : i32
    %c0_i32_0 = arith.constant 0 : i32
    %c0_i32_1 = arith.constant 0 : i32
    return %arg0, %c0_i32, %c0_i32_0 : i32, i32, i32
  }
  func.func @transform_1(%arg0: i32, %arg1: i32) -> (i32, i32, i32) {
    %c0_i32 = arith.constant 0 : i32
    %c0_i32_0 = arith.constant 0 : i32
    %c0_i32_1 = arith.constant 0 : i32
    return %c0_i32, %c0_i32_0, %arg1 : i32, i32, i32
  }
  func.func @transform_2(%arg0: i32, %arg1: i32) -> (i32, i32, i32) {
    %c0_i32 = arith.constant 0 : i32
    %c0_i32_0 = arith.constant 0 : i32
    return %arg0, %c0_i32, %arg1 : i32, i32, i32
  }
}

module attributes {stable_mosaic.version = 11 : i64} {
  func.func @_conv_fused_kernel(%arg0: i32, %arg1: i32, %arg2: memref<1x32x512xf32, #tpu.memory_space<vmem>>, %arg3: memref<4x512x128xf32, #tpu.memory_space<vmem>>, %arg4: memref<1x128xf32, #tpu.memory_space<vmem>>, %arg5: memref<1x8x128xf32, #tpu.memory_space<vmem>>, %arg6: memref<8x128xf32, #tpu.memory_space<vmem>>) attributes {dimension_semantics = [#tpu.dimension_semantics<parallel>, #tpu.dimension_semantics<parallel>], iteration_bounds = array<i64: 2, 1>, scalar_prefetch = 0 : i64, scratch_operands = 1 : i64, tpu.core_type = #tpu.core_type<tc>, window_params = [{transform_indices = @transform_0, window_bounds = array<i64: 1, 32, 512>}, {transform_indices = @transform_1, window_bounds = array<i64: 4, 512, 128>}, {transform_indices = @transform_2, window_bounds = array<i64: 1, 128>}, {transform_indices = @transform_3, window_bounds = array<i64: 1, 8, 128>}]} {
    %c0 = arith.constant 0 : index
    %c0_0 = arith.constant 0 : index
    %c0_1 = arith.constant 0 : index
    %0 = vector.load %arg2[%c0, %c0_0, %c0_1] : memref<1x32x512xf32, #tpu.memory_space<vmem>>, vector<1x8x512xf32>
    %1 = vector.shape_cast %0 : vector<1x8x512xf32> to vector<8x512xf32>
    %c0_2 = arith.constant 0 : index
    %c0_3 = arith.constant 0 : index
    %c0_4 = arith.constant 0 : index
    %2 = vector.load %arg3[%c0_2, %c0_3, %c0_4] : memref<4x512x128xf32, #tpu.memory_space<vmem>>, vector<1x512x128xf32>
    %3 = vector.shape_cast %2 : vector<1x512x128xf32> to vector<512x128xf32>
    %cst = arith.constant dense<0.000000e+00> : vector<8x128xf32>
    %4 = tpu.matmul %1, %3, %cst {dimension_numbers = #tpu.dot_dimension_numbers<[1], [0], [0], [1], [0, 0, 1, 1], [], []>} : vector<8x512xf32>, vector<512x128xf32>, vector<8x128xf32> -> vector<8x128xf32>
    %c0_5 = arith.constant 0 : index
    %c0_6 = arith.constant 0 : index
    %5 = vector.load %arg6[%c0_5, %c0_6] : memref<8x128xf32, #tpu.memory_space<vmem>>, vector<8x128xf32>
    tpu.vector_store %arg6[%c0_5, %c0_6], %4 {strides = array<i32>} : memref<8x128xf32, #tpu.memory_space<vmem>>, vector<8x128xf32>,
    %c0_7 = arith.constant 0 : index
    %c0_8 = arith.constant 0 : index
    %6 = vector.load %arg6[%c0_7, %c0_8] : memref<8x128xf32, #tpu.memory_space<vmem>>, vector<8x128xf32>
    %c0_9 = arith.constant 0 : index
    %c8 = arith.constant 8 : index
    %c0_10 = arith.constant 0 : index
    %7 = vector.load %arg2[%c0_9, %c8, %c0_10] : memref<1x32x512xf32, #tpu.memory_space<vmem>>, vector<1x8x512xf32>
    %8 = vector.shape_cast %7 : vector<1x8x512xf32> to vector<8x512xf32>
    %c1 = arith.constant 1 : index
    %c0_11 = arith.constant 0 : index
    %c0_12 = arith.constant 0 : index
    %9 = vector.load %arg3[%c1, %c0_11, %c0_12] : memref<4x512x128xf32, #tpu.memory_space<vmem>>, vector<1x512x128xf32>
    %10 = vector.shape_cast %9 : vector<1x512x128xf32> to vector<512x128xf32>
    %cst_13 = arith.constant dense<0.000000e+00> : vector<8x128xf32>
    %11 = tpu.matmul %8, %10, %cst_13 {dimension_numbers = #tpu.dot_dimension_numbers<[1], [0], [0], [1], [0, 0, 1, 1], [], []>} : vector<8x512xf32>, vector<512x128xf32>, vector<8x128xf32> -> vector<8x128xf32>
    %12 = arith.addf %6, %11 : vector<8x128xf32>
    %c0_14 = arith.constant 0 : index
    %c0_15 = arith.constant 0 : index
    %13 = vector.load %arg6[%c0_14, %c0_15] : memref<8x128xf32, #tpu.memory_space<vmem>>, vector<8x128xf32>
    tpu.vector_store %arg6[%c0_14, %c0_15], %12 {strides = array<i32>} : memref<8x128xf32, #tpu.memory_space<vmem>>, vector<8x128xf32>,
    %c0_16 = arith.constant 0 : index
    %c0_17 = arith.constant 0 : index
    %14 = vector.load %arg6[%c0_16, %c0_17] : memref<8x128xf32, #tpu.memory_space<vmem>>, vector<8x128xf32>
    %c0_18 = arith.constant 0 : index
    %c16 = arith.constant 16 : index
    %c0_19 = arith.constant 0 : index
    %15 = vector.load %arg2[%c0_18, %c16, %c0_19] : memref<1x32x512xf32, #tpu.memory_space<vmem>>, vector<1x8x512xf32>
    %16 = vector.shape_cast %15 : vector<1x8x512xf32> to vector<8x512xf32>
    %c2 = arith.constant 2 : index
    %c0_20 = arith.constant 0 : index
    %c0_21 = arith.constant 0 : index
    %17 = vector.load %arg3[%c2, %c0_20, %c0_21] : memref<4x512x128xf32, #tpu.memory_space<vmem>>, vector<1x512x128xf32>
    %18 = vector.shape_cast %17 : vector<1x512x128xf32> to vector<512x128xf32>
    %cst_22 = arith.constant dense<0.000000e+00> : vector<8x128xf32>
    %19 = tpu.matmul %16, %18, %cst_22 {dimension_numbers = #tpu.dot_dimension_numbers<[1], [0], [0], [1], [0, 0, 1, 1], [], []>} : vector<8x512xf32>, vector<512x128xf32>, vector<8x128xf32> -> vector<8x128xf32>
    %20 = arith.addf %14, %19 : vector<8x128xf32>
    %c0_23 = arith.constant 0 : index
    %c0_24 = arith.constant 0 : index
    %21 = vector.load %arg6[%c0_23, %c0_24] : memref<8x128xf32, #tpu.memory_space<vmem>>, vector<8x128xf32>
    tpu.vector_store %arg6[%c0_23, %c0_24], %20 {strides = array<i32>} : memref<8x128xf32, #tpu.memory_space<vmem>>, vector<8x128xf32>,
    %c0_25 = arith.constant 0 : index
    %c0_26 = arith.constant 0 : index
    %22 = vector.load %arg6[%c0_25, %c0_26] : memref<8x128xf32, #tpu.memory_space<vmem>>, vector<8x128xf32>
    %c0_27 = arith.constant 0 : index
    %c24 = arith.constant 24 : index
    %c0_28 = arith.constant 0 : index
    %23 = vector.load %arg2[%c0_27, %c24, %c0_28] : memref<1x32x512xf32, #tpu.memory_space<vmem>>, vector<1x8x512xf32>
    %24 = vector.shape_cast %23 : vector<1x8x512xf32> to vector<8x512xf32>
    %c3 = arith.constant 3 : index
    %c0_29 = arith.constant 0 : index
    %c0_30 = arith.constant 0 : index
    %25 = vector.load %arg3[%c3, %c0_29, %c0_30] : memref<4x512x128xf32, #tpu.memory_space<vmem>>, vector<1x512x128xf32>
    %26 = vector.shape_cast %25 : vector<1x512x128xf32> to vector<512x128xf32>
    %cst_31 = arith.constant dense<0.000000e+00> : vector<8x128xf32>
    %27 = tpu.matmul %24, %26, %cst_31 {dimension_numbers = #tpu.dot_dimension_numbers<[1], [0], [0], [1], [0, 0, 1, 1], [], []>} : vector<8x512xf32>, vector<512x128xf32>, vector<8x128xf32> -> vector<8x128xf32>
    %28 = arith.addf %22, %27 : vector<8x128xf32>
    %c0_32 = arith.constant 0 : index
    %c0_33 = arith.constant 0 : index
    %29 = vector.load %arg6[%c0_32, %c0_33] : memref<8x128xf32, #tpu.memory_space<vmem>>, vector<8x128xf32>
    tpu.vector_store %arg6[%c0_32, %c0_33], %28 {strides = array<i32>} : memref<8x128xf32, #tpu.memory_space<vmem>>, vector<8x128xf32>,
    %c0_34 = arith.constant 0 : index
    %c0_35 = arith.constant 0 : index
    %30 = vector.load %arg6[%c0_34, %c0_35] : memref<8x128xf32, #tpu.memory_space<vmem>>, vector<8x128xf32>
    %c0_36 = arith.constant 0 : index
    %c0_37 = arith.constant 0 : index
    %31 = vector.load %arg4[%c0_36, %c0_37] : memref<1x128xf32, #tpu.memory_space<vmem>>, vector<1x128xf32>
    %32 = vector.broadcast %31 : vector<1x128xf32> to vector<8x128xf32>
    %33 = arith.addf %30, %32 : vector<8x128xf32>
    %c0_38 = arith.constant 0 : index
    %c0_39 = arith.constant 0 : index
    %c0_40 = arith.constant 0 : index
    %34 = vector.load %arg5[%c0_38, %c0_39, %c0_40] : memref<1x8x128xf32, #tpu.memory_space<vmem>>, vector<1x8x128xf32>
    %35 = vector.shape_cast %34 : vector<1x8x128xf32> to vector<8x128xf32>
    %36 = vector.shape_cast %33 : vector<8x128xf32> to vector<1x8x128xf32>
    tpu.vector_store %arg5[%c0_38, %c0_39, %c0_40], %36 {strides = array<i32>} : memref<1x8x128xf32, #tpu.memory_space<vmem>>, vector<1x8x128xf32>,
    return
  }
  func.func @transform_0(%arg0: i32, %arg1: i32) -> (i32, i32, i32) {
    %c0_i32 = arith.constant 0 : i32
    %c0_i32_0 = arith.constant 0 : i32
    %c0_i32_1 = arith.constant 0 : i32
    return %arg0, %c0_i32, %c0_i32_0 : i32, i32, i32
  }
  func.func @transform_1(%arg0: i32, %arg1: i32) -> (i32, i32, i32) {
    %c0_i32 = arith.constant 0 : i32
    %c0_i32_0 = arith.constant 0 : i32
    %c0_i32_1 = arith.constant 0 : i32
    return %c0_i32, %c0_i32_0, %arg1 : i32, i32, i32
  }
  func.func @transform_2(%arg0: i32, %arg1: i32) -> (i32, i32) {
    %c0_i32 = arith.constant 0 : i32
    %c0_i32_0 = arith.constant 0 : i32
    return %c0_i32, %arg1 : i32, i32
  }
  func.func @transform_3(%arg0: i32, %arg1: i32) -> (i32, i32, i32) {
    %c0_i32 = arith.constant 0 : i32
    %c0_i32_0 = arith.constant 0 : i32
    return %arg0, %c0_i32, %arg1 : i32, i32, i32
  }
}

</mosaic_0001>

<llo_original>
// kernel: _lambda_.4
$region0: #{_lambda_.4}
  #allocation0 [shape = 'u32[]', space=smem, size = 0x4, offset = 0x4, fixed_abs, tag = 'smem constant byte address 0x4 - core index']
  #allocation1 [shape = 'u32[144,128]{1,0:T(1,128)}', space=vmem, size = 0x12000, scoped, tag = 'internal scratch']
  #allocation2 [shape = 'f32[128,128]{1,0:T(8,128)}', space=vmem, size = 0x10000, scoped, tag = 'scratch operand']
  %s0 = inlined_call_operand.vmem [shape: f32[2,128,64], index: 0, kind: input, shape index: {}]
  %s1 = inlined_call_operand.vmem [shape: f32[1,64,128], index: 1, kind: input, shape index: {}]
  %s2 = inlined_call_operand.vmem [shape: f32[1,128], index: 2, kind: input, shape index: {}]
  %s3 = inlined_call_operand.vmem [shape: f32[2,128,128], index: 3, kind: output, shape index: {}]
  %s4 = sld [smem:[#allocation0]]
  $region45: #{_lambda_.4} parent=0
    _
  %s6 = ssub.s32 1, %s4
  %s7 = scalar_select 0, %s6, %s4
  loop: start=0, step=1, limit=4
  $region2: #{_lambda_.4} parent=0 // loop_pre_header
    _
  $region3: #{_lambda_.4} parent=0 // loop_header
    %s9 = sphi 0, %s13
    %p10 = scmp.ge.s32.totalorder %s9, 4
    %s16 = sphi 0, %s28
    %s17 = sphi 0, %s24
    %s18 = sphi 0, %s16
    %s19 = sphi 0, %s17
    %s20 = sphi 0, %s18
    %s21 = sphi 0, %s19
    %s31 = sphi 0, %s33
    %s34 = sphi 0, %s31
    %s35 = sphi 0, %s34
    %s51 = sphi 0, %s35
    %s57 = sphi 0, %s59
    %s60 = sphi 0, %s57
    %s61 = sphi 0, %s60
    %s77 = sphi 0, %s61
    %s83 = sphi 0, %s85
    %s86 = sphi 0, %s83
    %s87 = sphi 0, %s86
    %s103 = sphi 0, %s87
    %s111 = sphi 0, %s113
    %s114 = sphi 0, %s111
    %s115 = sphi 0, %s114
    %s131 = sphi 0, %s115
  $region4: #{_lambda_.4} parent=0 // loop_header_branch
    %12 = sbr.rel (%p10) target = $region8
  $region5: #{_lambda_.4} parent=0 // loop_body
    %s14 = ssub.s32 %s9, 1
    %s15 = ssub.s32 %s9, 2
    %s22 = sadd.s32 1, %s17
    %p23 = scmp.ge.s32.totalorder %s22, 1
    %s24 = scalar_select %p23, 0, %s22
    %s25 = sadd.s32 1, %s16
    %s26 = scalar_select %p23, %s25, %s16
    %p27 = scmp.ge.s32.totalorder %s26, 2
    %s28 = scalar_select %p27, 0, %s26
    %s29 = ssub.s32 %s16, %s28
    %p30 = scmp.eq.s32.totalorder %s29, 0
    %s32 = sadd.s32 %s31, 1
    %s33 = scalar_select %p30, %s31, %s32
    %p36 = pneg %p30
    %p37 = scmp.eq.s32.totalorder %s9, 1
    %p38 = por %p36, %p37
    %p39 = scmp.ne.s32.totalorder %s31, %s34
    %p40 = scmp.eq.s32.totalorder %s9, 0
    %p41 = por %p39, %p40
    %p42 = scmp.ne.s32.totalorder %s31, %s34
    %p43 = scmp.eq.s32.totalorder %s14, 1
    %p44 = por %p42, %p43
    %p45 = scmp.ne.s32.totalorder %s34, %s35
    %p46 = scmp.eq.s32.totalorder %s14, 0
    %p47 = por %p45, %p46
    %p48 = scmp.ne.s32.totalorder %s34, %s35
    %p49 = scmp.eq.s32.totalorder %s15, 1
    %p50 = por %p48, %p49
    %p52 = scmp.ne.s32.totalorder %s35, %s51
    %p53 = scmp.eq.s32.totalorder %s15, 0
    %p54 = por %p52, %p53
    %s55 = ssub.s32 %s17, %s24
    %p56 = scmp.eq.s32.totalorder %s55, 0
    %s58 = sadd.s32 %s57, 1
    %s59 = scalar_select %p56, %s57, %s58
    %p62 = pneg %p56
    %p63 = scmp.eq.s32.totalorder %s9, 1
    %p64 = por %p62, %p63
    %p65 = scmp.ne.s32.totalorder %s57, %s60
    %p66 = scmp.eq.s32.totalorder %s9, 0
    %p67 = por %p65, %p66
    %p68 = scmp.ne.s32.totalorder %s57, %s60
    %p69 = scmp.eq.s32.totalorder %s14, 1
    %p70 = por %p68, %p69
    %p71 = scmp.ne.s32.totalorder %s60, %s61
    %p72 = scmp.eq.s32.totalorder %s14, 0
    %p73 = por %p71, %p72
    %p74 = scmp.ne.s32.totalorder %s60, %s61
    %p75 = scmp.eq.s32.totalorder %s15, 1
    %p76 = por %p74, %p75
    %p78 = scmp.ne.s32.totalorder %s61, %s77
    %p79 = scmp.eq.s32.totalorder %s15, 0
    %p80 = por %p78, %p79
    %s81 = ssub.s32 %s17, %s24
    %p82 = scmp.eq.s32.totalorder %s81, 0
    %s84 = sadd.s32 %s83, 1
    %s85 = scalar_select %p82, %s83, %s84
    %p88 = pneg %p82
    %p89 = scmp.eq.s32.totalorder %s9, 1
    %p90 = por %p88, %p89
    %p91 = scmp.ne.s32.totalorder %s83, %s86
    %p92 = scmp.eq.s32.totalorder %s9, 0
    %p93 = por %p91, %p92
    %p94 = scmp.ne.s32.totalorder %s83, %s86
    %p95 = scmp.eq.s32.totalorder %s14, 1
    %p96 = por %p94, %p95
    %p97 = scmp.ne.s32.totalorder %s86, %s87
    %p98 = scmp.eq.s32.totalorder %s14, 0
    %p99 = por %p97, %p98
    %p100 = scmp.ne.s32.totalorder %s86, %s87
    %p101 = scmp.eq.s32.totalorder %s15, 1
    %p102 = por %p100, %p101
    %p104 = scmp.ne.s32.totalorder %s87, %s103
    %p105 = scmp.eq.s32.totalorder %s15, 0
    %p106 = por %p104, %p105
    %s107 = ssub.s32 %s16, %s28
    %s108 = ssub.s32 %s17, %s24
    %s109 = sor.u32 %s107, %s108
    %p110 = scmp.eq.s32.totalorder %s109, 0
    %s112 = sadd.s32 %s111, 1
    %s113 = scalar_select %p110, %s111, %s112
    %p116 = pneg %p110
    %p117 = scmp.eq.s32.totalorder %s9, 1
    %p118 = por %p116, %p117
    %p119 = scmp.ne.s32.totalorder %s111, %s114
    %p120 = scmp.eq.s32.totalorder %s9, 0
    %p121 = por %p119, %p120
    %p122 = scmp.ne.s32.totalorder %s111, %s114
    %p123 = scmp.eq.s32.totalorder %s14, 1
    %p124 = por %p122, %p123
    %p125 = scmp.ne.s32.totalorder %s114, %s115
    %p126 = scmp.eq.s32.totalorder %s14, 0
    %p127 = por %p125, %p126
    %p128 = scmp.ne.s32.totalorder %s114, %s115
    %p129 = scmp.eq.s32.totalorder %s15, 1
    %p130 = por %p128, %p129
    %p132 = scmp.ne.s32.totalorder %s115, %s131
    %p133 = scmp.eq.s32.totalorder %s15, 0
    %p134 = por %p132, %p133
    %p135 = scmp.le.s32.totalorder 1, %s9
    %p136 = scmp.lt.s32.totalorder %s9, 3
    %p137 = pnand %p135, %p136
    %p138 = pneg %p137
    // Predicated region
    $region9: #{_lambda_.4} parent=5 // pred_check
      _
    $region10: #{_lambda_.4} parent=5 // pred_check_branch
      %140 = sbr.rel (%p137) target = $region12
    $region11: #{_lambda_.4} parent=5 // pred_region
      %s141 = ssub.s32 %s9, 1
      // Predicated region
      $region13: #{_lambda_.4} parent=11 // pred_check
        %p142 = pneg %p73
      $region14: #{_lambda_.4} parent=11 // pred_check_branch
        %144 = sbr.rel (%p142) target = $region16
      $region15: #{_lambda_.4} parent=11 // pred_region
        %p145 = scmp.lt.s32.totalorder %s19, 0
        %s146 = scalar_select %p145, %s19, 0
        %s147 = smul.addr %s146, 8
        %s148 = scalar_lea.vmem %s1, %s147
      $region16: #{_lambda_.4} parent=11 // pred_fallthru
        _
      // Predicated region
      $region17: #{_lambda_.4} parent=11 // pred_check
        %p149 = pneg %p99
      $region18: #{_lambda_.4} parent=11 // pred_check_branch
        %151 = sbr.rel (%p149) target = $region20
      $region19: #{_lambda_.4} parent=11 // pred_region
        %p152 = scmp.lt.s32.totalorder %s19, 0
        %s153 = scalar_select %p152, %s19, 0
        %s154 = scalar_lea.vmem %s2, %s153
      $region20: #{_lambda_.4} parent=11 // pred_fallthru
        _
    $region12: #{_lambda_.4} parent=5 // pred_fallthru
      _
    %p155 = scmp.lt.s32.totalorder %s9, 2
    // Predicated region
    $region21: #{_lambda_.4} parent=5 // pred_check
      %p156 = pneg %p155
    $region22: #{_lambda_.4} parent=5 // pred_check_branch
      %158 = sbr.rel (%p156) target = $region24
    $region23: #{_lambda_.4} parent=5 // pred_region
      // Predicated region
      $region25: #{_lambda_.4} parent=23 // pred_check
        %p159 = pneg %p41
      $region26: #{_lambda_.4} parent=23 // pred_check_branch
        %161 = sbr.rel (%p159) target = $region28
      $region27: #{_lambda_.4} parent=23 // pred_region
        %p162 = scmp.lt.s32.totalorder %s16, 1
        %s163 = scalar_select %p162, %s16, 1
        %s164 = smul.addr %s163, 16
        %s165 = smul.addr %s164, 8
        %s166 = scalar_lea.vmem %s0, %s165
      $region28: #{_lambda_.4} parent=23 // pred_fallthru
        _
    $region24: #{_lambda_.4} parent=5 // pred_fallthru
      _
    %p167 = scmp.le.s32.totalorder 1, %s9
    %p168 = scmp.lt.s32.totalorder %s9, 3
    %p169 = pnand %p167, %p168
    %p170 = pneg %p169
    // Predicated region
    $region29: #{_lambda_.4} parent=5 // pred_check
      _
    $region30: #{_lambda_.4} parent=5 // pred_check_branch
      %172 = sbr.rel (%p169) target = $region32
    $region31: #{_lambda_.4} parent=5 // pred_region
      %s173 = ssub.s32 %s9, 1
      %p174 = scmp.lt.s32.totalorder %s18, 1
      %s175 = scalar_select %p174, %s18, 1
      %s176 = smul.addr %s175, 16
      %s177 = smul.addr %s176, 8
      %s178 = scalar_lea.vmem %s0, %s177
      %p179 = pneg %p47
      %p180 = pneg %p44
      %p181 = scmp.lt.s32.totalorder %s19, 0
      %s182 = scalar_select %p181, %s19, 0
      %s183 = smul.addr %s182, 8
      %s184 = scalar_lea.vmem %s1, %s183
      %p185 = pneg %p73
      %p186 = pneg %p70
      %p187 = scmp.lt.s32.totalorder %s19, 0
      %s188 = scalar_select %p187, %s19, 0
      %s189 = scalar_lea.vmem %s2, %s188
      %p190 = pneg %p99
      %p191 = pneg %p96
      %p192 = pneg %p127
      %p193 = pneg %p124
      %p194 = scmp.lt.s32.totalorder %s18, 1
      %s195 = scalar_select %p194, %s18, 1
      %p196 = scmp.lt.s32.totalorder %s19, 0
      %s197 = scalar_select %p196, %s19, 0
      %s198 = smul.addr %s195, 16
      %s199 = sadd.s32 %s197, %s198
      %s200 = smul.addr %s199, 8
      %s201 = scalar_lea.vmem %s3, %s200
      %p202 = scmp.lt.s32.totalorder %s18, 1
      %s203 = scalar_select %p202, %s18, 1
      %s204 = smul.addr %s203, 16
      %s205 = smul.addr %s204, 8
      %s206 = scalar_lea.vmem %s0, %s205
      %p207 = scmp.lt.s32.totalorder %s19, 0
      %s208 = scalar_select %p207, %s19, 0
      %s209 = smul.addr %s208, 8
      %s210 = scalar_lea.vmem %s1, %s209
      %p211 = scmp.lt.s32.totalorder %s19, 0
      %s212 = scalar_select %p211, %s19, 0
      %s213 = scalar_lea.vmem %s2, %s212
      %p214 = scmp.lt.s32.totalorder %s18, 1
      %s215 = scalar_select %p214, %s18, 1
      %p216 = scmp.lt.s32.totalorder %s19, 0
      %s217 = scalar_select %p216, %s19, 0
      %s218 = smul.addr %s215, 16
      %s219 = sadd.s32 %s217, %s218
      %s220 = smul.addr %s219, 8
      %s221 = scalar_lea.vmem %s3, %s220
      %v222 = vld [vmem:[%s206] sm:$0xff]
      %v223 = vld [vmem:[%s206 + $0x8] sm:$0xff]
      %v224 = vld [vmem:[%s206 + $0x10] sm:$0xff]
      %v225 = vld [vmem:[%s206 + $0x18] sm:$0xff]
      %v226 = vld [vmem:[%s206 + $0x20] sm:$0xff]
      %v227 = vld [vmem:[%s206 + $0x28] sm:$0xff]
      %v228 = vld [vmem:[%s206 + $0x30] sm:$0xff]
      %v229 = vld [vmem:[%s206 + $0x38] sm:$0xff]
      %v230 = vld [vmem:[%s206 + $0x40] sm:$0xff]
      %v231 = vld [vmem:[%s206 + $0x48] sm:$0xff]
      %v232 = vld [vmem:[%s206 + $0x50] sm:$0xff]
      %v233 = vld [vmem:[%s206 + $0x58] sm:$0xff]
      %v234 = vld [vmem:[%s206 + $0x60] sm:$0xff]
      %v235 = vld [vmem:[%s206 + $0x68] sm:$0xff]
      %v236 = vld [vmem:[%s206 + $0x70] sm:$0xff]
      %v237 = vld [vmem:[%s206 + $0x78] sm:$0xff]
      %v238 = vld [vmem:[%s210] sm:$0xff]
      %v239 = vld [vmem:[%s210 + $0x8] sm:$0xff]
      %v240 = vld [vmem:[%s210 + $0x10] sm:$0xff]
      %v241 = vld [vmem:[%s210 + $0x18] sm:$0xff]
      %v242 = vld [vmem:[%s210 + $0x20] sm:$0xff]
      %v243 = vld [vmem:[%s210 + $0x28] sm:$0xff]
      %v244 = vld [vmem:[%s210 + $0x30] sm:$0xff]
      %v245 = vld [vmem:[%s210 + $0x38] sm:$0xff]
      %vm246 = vcmask 523264
      %v248 = vsel %vm246, %v222, 0
      %v251 = vsel %vm246, %v223, 0
      %v254 = vsel %vm246, %v224, 0
      %v257 = vsel %vm246, %v225, 0
      %v260 = vsel %vm246, %v226, 0
      %v263 = vsel %vm246, %v227, 0
      %v266 = vsel %vm246, %v228, 0
      %v269 = vsel %vm246, %v229, 0
      %v272 = vsel %vm246, %v230, 0
      %v275 = vsel %vm246, %v231, 0
      %v278 = vsel %vm246, %v232, 0
      %v281 = vsel %vm246, %v233, 0
      %v284 = vsel %vm246, %v234, 0
      %v287 = vsel %vm246, %v235, 0
      %v290 = vsel %vm246, %v236, 0
      %v293 = vsel %vm246, %v237, 0
      %295 = vmatprep.subr.mxu0 0.0
      %296 = vmatpush1.msra.mxu0 0.0
      %297 = vmatprep.subr.mxu0 0.0
      %298 = vmatpush1.msra.mxu0 0.0
      %299 = vmatprep.subr.mxu0 0.0
      %300 = vmatpush1.msra.mxu0 0.0
      %301 = vmatprep.subr.mxu0 0.0
      %302 = vmatpush1.msra.mxu0 0.0
      %303 = vmatprep.subr.mxu0 0.0
      %304 = vmatpush1.msra.mxu0 0.0
      %305 = vmatprep.subr.mxu0 0.0
      %306 = vmatpush1.msra.mxu0 0.0
      %307 = vmatprep.subr.mxu0 0.0
      %308 = vmatpush1.msra.mxu0 0.0
      %309 = vmatprep.subr.mxu0 0.0
      %310 = vmatpush1.msra.mxu0 0.0
      %311 = vmatprep.subr.mxu0 0.0
      %312 = vmatpush1.msra.mxu0 %v245
      %313 = vmatprep.subr.mxu0 0.0
      %314 = vmatpush1.msra.mxu0 %v244
      %315 = vmatprep.subr.mxu0 0.0
      %316 = vmatpush1.msra.mxu0 %v243
      %317 = vmatprep.subr.mxu0 0.0
      %318 = vmatpush1.msra.mxu0 %v242
      %319 = vmatprep.subr.mxu0 0.0
      %320 = vmatpush1.msra.mxu0 %v241
      %321 = vmatprep.subr.mxu0 0.0
      %322 = vmatpush1.msra.mxu0 %v240
      %323 = vmatprep.subr.mxu0 0.0
      %324 = vmatpush1.msra.mxu0 %v239
      %325 = vmatprep.subr.mxu0 0.0
      %326 = vmatpush1.msra.mxu0 %v238
      %327 = vmatprep.subr.mxu0 0.0
      %328 = vmatpush2.msra.mxu0 0.0
      %329 = vmatprep.subr.mxu0 0.0
      %330 = vmatpush2.msra.mxu0 0.0
      %331 = vmatprep.subr.mxu0 0.0
      %332 = vmatpush2.msra.mxu0 0.0
      %333 = vmatprep.subr.mxu0 0.0
      %334 = vmatpush2.msra.mxu0 0.0
      %335 = vmatprep.subr.mxu0 0.0
      %336 = vmatpush2.msra.mxu0 0.0
      %337 = vmatprep.subr.mxu0 0.0
      %338 = vmatpush2.msra.mxu0 0.0
      %339 = vmatprep.subr.mxu0 0.0
      %340 = vmatpush2.msra.mxu0 0.0
      %341 = vmatprep.subr.mxu0 0.0
      %342 = vmatpush2.msra.mxu0 0.0
      %343 = vmatprep.subr.mxu0 0.0
      %344 = vmatpush2.msra.mxu0 0.0
      %345 = vmatprep.subr.mxu0 0.0
      %346 = vmatpush2.msra.mxu0 0.0
      %347 = vmatprep.subr.mxu0 0.0
      %348 = vmatpush2.msra.mxu0 0.0
      %349 = vmatprep.subr.mxu0 0.0
      %350 = vmatpush2.msra.mxu0 0.0
      %351 = vmatprep.subr.mxu0 0.0
      %352 = vmatpush2.msra.mxu0 0.0
      %353 = vmatprep.subr.mxu0 0.0
      %354 = vmatpush2.msra.mxu0 0.0
      %355 = vmatprep.subr.mxu0 0.0
      %356 = vmatpush2.msra.mxu0 0.0
      %357 = vmatprep.subr.mxu0 0.0
      %358 = vmatpush2.msra.mxu0 0.0
      %359 = vmatprep.mubr.f32.mxu0 0.0
      %360 = vmatmul.mubr.f32.gmra.mxu0 %v248
      %v361 = vpop.f32.mrf.mxu0
      %v362 = vadd.f32 0.0, %v361
      %v363 = vpop.f32.mrf.mxu0
      %364 = vmatprep.mubr.f32.mxu0 0.0
      %365 = vmatmul.mubr.f32.gmra.mxu0 %v251
      %v366 = vpop.f32.mrf.mxu0
      %v367 = vadd.f32 0.0, %v366
      %v368 = vpop.f32.mrf.mxu0
      %369 = vmatprep.mubr.f32.mxu0 0.0
      %370 = vmatmul.mubr.f32.gmra.mxu0 %v254
      %v371 = vpop.f32.mrf.mxu0
      %v372 = vadd.f32 0.0, %v371
      %v373 = vpop.f32.mrf.mxu0
      %374 = vmatprep.mubr.f32.mxu0 0.0
      %375 = vmatmul.mubr.f32.gmra.mxu0 %v257
      %v376 = vpop.f32.mrf.mxu0
      %v377 = vadd.f32 0.0, %v376
      %v378 = vpop.f32.mrf.mxu0
      %379 = vmatprep.mubr.f32.mxu0 0.0
      %380 = vmatmul.mubr.f32.gmra.mxu0 %v260
      %v381 = vpop.f32.mrf.mxu0
      %v382 = vadd.f32 0.0, %v381
      %v383 = vpop.f32.mrf.mxu0
      %384 = vmatprep.mubr.f32.mxu0 0.0
      %385 = vmatmul.mubr.f32.gmra.mxu0 %v263
      %v386 = vpop.f32.mrf.mxu0
      %v387 = vadd.f32 0.0, %v386
      %v388 = vpop.f32.mrf.mxu0
      %389 = vmatprep.mubr.f32.mxu0 0.0
      %390 = vmatmul.mubr.f32.gmra.mxu0 %v266
      %v391 = vpop.f32.mrf.mxu0
      %v392 = vadd.f32 0.0, %v391
      %v393 = vpop.f32.mrf.mxu0
      %394 = vmatprep.mubr.f32.mxu0 0.0
      %395 = vmatmul.mubr.f32.gmra.mxu0 %v269
      %v396 = vpop.f32.mrf.mxu0
      %v397 = vadd.f32 0.0, %v396
      %v398 = vpop.f32.mrf.mxu0
      %399 = vmatprep.mubr.f32.mxu0 0.0
      %400 = vmatmul.mubr.f32.gmra.mxu0 %v272
      %v401 = vpop.f32.mrf.mxu0
      %v402 = vadd.f32 0.0, %v401
      %v403 = vpop.f32.mrf.mxu0
      %404 = vmatprep.mubr.f32.mxu0 0.0
      %405 = vmatmul.mubr.f32.gmra.mxu0 %v275
      %v406 = vpop.f32.mrf.mxu0
      %v407 = vadd.f32 0.0, %v406
      %v408 = vpop.f32.mrf.mxu0
      %409 = vmatprep.mubr.f32.mxu0 0.0
      %410 = vmatmul.mubr.f32.gmra.mxu0 %v278
      %v411 = vpop.f32.mrf.mxu0
      %v412 = vadd.f32 0.0, %v411
      %v413 = vpop.f32.mrf.mxu0
      %414 = vmatprep.mubr.f32.mxu0 0.0
      %415 = vmatmul.mubr.f32.gmra.mxu0 %v281
      %v416 = vpop.f32.mrf.mxu0
      %v417 = vadd.f32 0.0, %v416
      %v418 = vpop.f32.mrf.mxu0
      %419 = vmatprep.mubr.f32.mxu0 0.0
      %420 = vmatmul.mubr.f32.gmra.mxu0 %v284
      %v421 = vpop.f32.mrf.mxu0
      %v422 = vadd.f32 0.0, %v421
      %v423 = vpop.f32.mrf.mxu0
      %424 = vmatprep.mubr.f32.mxu0 0.0
      %425 = vmatmul.mubr.f32.gmra.mxu0 %v287
      %v426 = vpop.f32.mrf.mxu0
      %v427 = vadd.f32 0.0, %v426
      %v428 = vpop.f32.mrf.mxu0
      %429 = vmatprep.mubr.f32.mxu0 0.0
      %430 = vmatmul.mubr.f32.gmra.mxu0 %v290
      %v431 = vpop.f32.mrf.mxu0
      %v432 = vadd.f32 0.0, %v431
      %v433 = vpop.f32.mrf.mxu0
      %434 = vmatprep.mubr.f32.mxu0 0.0
      %435 = vmatmul.mubr.f32.gmra.mxu0 %v293
      %v436 = vpop.f32.mrf.mxu0
      %v437 = vadd.f32 0.0, %v436
      %v438 = vpop.f32.mrf.mxu0
      %439 = vdwg.mxu0
      %440 = vst [vmem:[#allocation2] sm:$0xff] %v362
      %441 = vst [vmem:[#allocation2 + $0x8] sm:$0xff] %v367
      %442 = vst [vmem:[#allocation2 + $0x10] sm:$0xff] %v372
      %443 = vst [vmem:[#allocation2 + $0x18] sm:$0xff] %v377
      %444 = vst [vmem:[#allocation2 + $0x20] sm:$0xff] %v382
      %445 = vst [vmem:[#allocation2 + $0x28] sm:$0xff] %v387
      %446 = vst [vmem:[#allocation2 + $0x30] sm:$0xff] %v392
      %447 = vst [vmem:[#allocation2 + $0x38] sm:$0xff] %v397
      %448 = vst [vmem:[#allocation2 + $0x40] sm:$0xff] %v402
      %449 = vst [vmem:[#allocation2 + $0x48] sm:$0xff] %v407
      %450 = vst [vmem:[#allocation2 + $0x50] sm:$0xff] %v412
      %451 = vst [vmem:[#allocation2 + $0x58] sm:$0xff] %v417
      %452 = vst [vmem:[#allocation2 + $0x60] sm:$0xff] %v422
      %453 = vst [vmem:[#allocation2 + $0x68] sm:$0xff] %v427
      %454 = vst [vmem:[#allocation2 + $0x70] sm:$0xff] %v432
      %455 = vst [vmem:[#allocation2 + $0x78] sm:$0xff] %v437
      %v456 = vld [vmem:[#allocation2] sm:$0xff]
      %v457 = vld [vmem:[#allocation2 + $0x8] sm:$0xff]
      %v458 = vld [vmem:[#allocation2 + $0x10] sm:$0xff]
      %v459 = vld [vmem:[#allocation2 + $0x18] sm:$0xff]
      %v460 = vld [vmem:[#allocation2 + $0x20] sm:$0xff]
      %v461 = vld [vmem:[#allocation2 + $0x28] sm:$0xff]
      %v462 = vld [vmem:[#allocation2 + $0x30] sm:$0xff]
      %v463 = vld [vmem:[#allocation2 + $0x38] sm:$0xff]
      %v464 = vld [vmem:[#allocation2 + $0x40] sm:$0xff]
      %v465 = vld [vmem:[#allocation2 + $0x48] sm:$0xff]
      %v466 = vld [vmem:[#allocation2 + $0x50] sm:$0xff]
      %v467 = vld [vmem:[#allocation2 + $0x58] sm:$0xff]
      %v468 = vld [vmem:[#allocation2 + $0x60] sm:$0xff]
      %v469 = vld [vmem:[#allocation2 + $0x68] sm:$0xff]
      %v470 = vld [vmem:[#allocation2 + $0x70] sm:$0xff]
      %v471 = vld [vmem:[#allocation2 + $0x78] sm:$0xff]
      %v472 = vld [vmem:[%s213] sm:$0x1]
      %v474 = vlaneseq
      %v475 = vshrl.u32 %v474, 7
      %v476 = vsub.s32 0, %v475
      %v477 = vrot.slane %v472, %v476
      %v479 = vadd.f32 %v456, %v477
      %v480 = vadd.f32 %v457, %v477
      %v481 = vadd.f32 %v458, %v477
      %v482 = vadd.f32 %v459, %v477
      %v483 = vadd.f32 %v460, %v477
      %v484 = vadd.f32 %v461, %v477
      %v485 = vadd.f32 %v462, %v477
      %v486 = vadd.f32 %v463, %v477
      %v487 = vadd.f32 %v464, %v477
      %v488 = vadd.f32 %v465, %v477
      %v489 = vadd.f32 %v466, %v477
      %v490 = vadd.f32 %v467, %v477
      %v491 = vadd.f32 %v468, %v477
      %v492 = vadd.f32 %v469, %v477
      %v493 = vadd.f32 %v470, %v477
      %v494 = vadd.f32 %v471, %v477
      %vm495 = vcmp.ge.f32.partialorder %v479, 0.0
      %vm496 = vcmp.ge.f32.partialorder %v480, 0.0
      %vm497 = vcmp.ge.f32.partialorder %v481, 0.0
      %vm498 = vcmp.ge.f32.partialorder %v482, 0.0
      %vm499 = vcmp.ge.f32.partialorder %v483, 0.0
      %vm500 = vcmp.ge.f32.partialorder %v484, 0.0
      %vm501 = vcmp.ge.f32.partialorder %v485, 0.0
      %vm502 = vcmp.ge.f32.partialorder %v486, 0.0
      %vm503 = vcmp.ge.f32.partialorder %v487, 0.0
      %vm504 = vcmp.ge.f32.partialorder %v488, 0.0
      %vm505 = vcmp.ge.f32.partialorder %v489, 0.0
      %vm506 = vcmp.ge.f32.partialorder %v490, 0.0
      %vm507 = vcmp.ge.f32.partialorder %v491, 0.0
      %vm508 = vcmp.ge.f32.partialorder %v492, 0.0
      %vm509 = vcmp.ge.f32.partialorder %v493, 0.0
      %vm510 = vcmp.ge.f32.partialorder %v494, 0.0
      %v511 = vmul.f32 %v479, 0.2
      %v512 = vmul.f32 %v480, 0.2
      %v513 = vmul.f32 %v481, 0.2
      %v514 = vmul.f32 %v482, 0.2
      %v515 = vmul.f32 %v483, 0.2
      %v516 = vmul.f32 %v484, 0.2
      %v517 = vmul.f32 %v485, 0.2
      %v518 = vmul.f32 %v486, 0.2
      %v519 = vmul.f32 %v487, 0.2
      %v520 = vmul.f32 %v488, 0.2
      %v521 = vmul.f32 %v489, 0.2
      %v522 = vmul.f32 %v490, 0.2
      %v523 = vmul.f32 %v491, 0.2
      %v524 = vmul.f32 %v492, 0.2
      %v525 = vmul.f32 %v493, 0.2
      %v526 = vmul.f32 %v494, 0.2
      %v527 = vsel %vm495, %v479, %v511
      %v528 = vsel %vm496, %v480, %v512
      %v529 = vsel %vm497, %v481, %v513
      %v530 = vsel %vm498, %v482, %v514
      %v531 = vsel %vm499, %v483, %v515
      %v532 = vsel %vm500, %v484, %v516
      %v533 = vsel %vm501, %v485, %v517
      %v534 = vsel %vm502, %v486, %v518
      %v535 = vsel %vm503, %v487, %v519
      %v536 = vsel %vm504, %v488, %v520
      %v537 = vsel %vm505, %v489, %v521
      %v538 = vsel %vm506, %v490, %v522
      %v539 = vsel %vm507, %v491, %v523
      %v540 = vsel %vm508, %v492, %v524
      %v541 = vsel %vm509, %v493, %v525
      %v542 = vsel %vm510, %v494, %v526
      %543 = vst [vmem:[%s221] sm:$0xff] %v527
      %544 = vst [vmem:[%s221 + $0x8] sm:$0xff] %v528
      %545 = vst [vmem:[%s221 + $0x10] sm:$0xff] %v529
      %546 = vst [vmem:[%s221 + $0x18] sm:$0xff] %v530
      %547 = vst [vmem:[%s221 + $0x20] sm:$0xff] %v531
      %548 = vst [vmem:[%s221 + $0x28] sm:$0xff] %v532
      %549 = vst [vmem:[%s221 + $0x30] sm:$0xff] %v533
      %550 = vst [vmem:[%s221 + $0x38] sm:$0xff] %v534
      %551 = vst [vmem:[%s221 + $0x40] sm:$0xff] %v535
      %552 = vst [vmem:[%s221 + $0x48] sm:$0xff] %v536
      %553 = vst [vmem:[%s221 + $0x50] sm:$0xff] %v537
      %554 = vst [vmem:[%s221 + $0x58] sm:$0xff] %v538
      %555 = vst [vmem:[%s221 + $0x60] sm:$0xff] %v539
      %556 = vst [vmem:[%s221 + $0x68] sm:$0xff] %v540
      %557 = vst [vmem:[%s221 + $0x70] sm:$0xff] %v541
      %558 = vst [vmem:[%s221 + $0x78] sm:$0xff] %v542
      %p559 = scmp.lt.s32.totalorder %s18, 1
      %s560 = scalar_select %p559, %s18, 1
      %p561 = scmp.lt.s32.totalorder %s19, 0
      %s562 = scalar_select %p561, %s19, 0
      %s563 = smul.addr %s560, 16
      %s564 = sadd.s32 %s562, %s563
      %s565 = smul.addr %s564, 8
      %s566 = scalar_lea.vmem %s3, %s565
      // Predicated region
      $region33: #{_lambda_.4} parent=31 // pred_check
        %p567 = pneg %p124
      $region34: #{_lambda_.4} parent=31 // pred_check_branch
        %569 = sbr.rel (%p567) target = $region36
      $region35: #{_lambda_.4} parent=31 // pred_region
        _
      $region36: #{_lambda_.4} parent=31 // pred_fallthru
        _
    $region32: #{_lambda_.4} parent=5 // pred_fallthru
      _
    %p570 = scmp.le.s32.totalorder 2, %s9
    // Predicated region
    $region37: #{_lambda_.4} parent=5 // pred_check
      %p571 = pneg %p570
    $region38: #{_lambda_.4} parent=5 // pred_check_branch
      %573 = sbr.rel (%p571) target = $region40
    $region39: #{_lambda_.4} parent=5 // pred_region
      %s574 = ssub.s32 %s9, 2
      // Predicated region
      $region41: #{_lambda_.4} parent=39 // pred_check
        %p575 = pneg %p130
      $region42: #{_lambda_.4} parent=39 // pred_check_branch
        %577 = sbr.rel (%p575) target = $region44
      $region43: #{_lambda_.4} parent=39 // pred_region
        %p578 = scmp.lt.s32.totalorder %s20, 1
        %s579 = scalar_select %p578, %s20, 1
        %p580 = scmp.lt.s32.totalorder %s21, 0
        %s581 = scalar_select %p580, %s21, 0
        %s582 = smul.addr %s579, 16
        %s583 = sadd.s32 %s581, %s582
        %s584 = smul.addr %s583, 8
        %s585 = scalar_lea.vmem %s3, %s584
      $region44: #{_lambda_.4} parent=39 // pred_fallthru
        _
    $region40: #{_lambda_.4} parent=5 // pred_fallthru
      _
  $region6: #{_lambda_.4} parent=0 // loop_footer
    %s13 = sadd.s32 1, %s9
  $region7: #{_lambda_.4} parent=0 // loop_footer_branch
    %8 = sbr.rel target = $region3
  $region8: #{_lambda_.4} parent=0 // loop_exit
    _

// kernel: _lambda_.5
$region0: #{_lambda_.5}
  #allocation0 [shape = 'u32[]', space=smem, size = 0x4, offset = 0x4, fixed_abs, tag = 'smem constant byte address 0x4 - core index']
  #allocation1 [shape = 'u32[144,128]{1,0:T(1,128)}', space=vmem, size = 0x12000, scoped, tag = 'internal scratch']
  #allocation2 [shape = 'f32[32,128]{1,0:T(8,128)}', space=vmem, size = 0x4000, scoped, tag = 'scratch operand']
  %s0 = inlined_call_operand.vmem [shape: f32[2,40,1024], index: 0, kind: input, shape index: {}]
  %s1 = inlined_call_operand.vmem [shape: f32[2,1024,128], index: 1, kind: input, shape index: {}]
  %s2 = inlined_call_operand.vmem [shape: f32[2,32,128], index: 2, kind: output, shape index: {}]
  %s3 = sld [smem:[#allocation0]]
  $region41: #{_lambda_.5} parent=0
    _
  %s5 = ssub.s32 1, %s3
  %s6 = scalar_select 0, %s5, %s3
  loop: start=0, step=1, limit=4
  $region2: #{_lambda_.5} parent=0 // loop_pre_header
    _
  $region3: #{_lambda_.5} parent=0 // loop_header
    %s8 = sphi 0, %s12
    %p9 = scmp.ge.s32.totalorder %s8, 4
    %s15 = sphi 0, %s27
    %s16 = sphi 0, %s23
    %s17 = sphi 0, %s15
    %s18 = sphi 0, %s16
    %s19 = sphi 0, %s17
    %s20 = sphi 0, %s18
    %s30 = sphi 0, %s32
    %s33 = sphi 0, %s30
    %s34 = sphi 0, %s33
    %s50 = sphi 0, %s34
    %s56 = sphi 0, %s58
    %s59 = sphi 0, %s56
    %s60 = sphi 0, %s59
    %s76 = sphi 0, %s60
    %s84 = sphi 0, %s86
    %s87 = sphi 0, %s84
    %s88 = sphi 0, %s87
    %s104 = sphi 0, %s88
  $region4: #{_lambda_.5} parent=0 // loop_header_branch
    %11 = sbr.rel (%p9) target = $region8
  $region5: #{_lambda_.5} parent=0 // loop_body
    %s13 = ssub.s32 %s8, 1
    %s14 = ssub.s32 %s8, 2
    %s21 = sadd.s32 1, %s16
    %p22 = scmp.ge.s32.totalorder %s21, 1
    %s23 = scalar_select %p22, 0, %s21
    %s24 = sadd.s32 1, %s15
    %s25 = scalar_select %p22, %s24, %s15
    %p26 = scmp.ge.s32.totalorder %s25, 2
    %s27 = scalar_select %p26, 0, %s25
    %s28 = ssub.s32 %s15, %s27
    %p29 = scmp.eq.s32.totalorder %s28, 0
    %s31 = sadd.s32 %s30, 1
    %s32 = scalar_select %p29, %s30, %s31
    %p35 = pneg %p29
    %p36 = scmp.eq.s32.totalorder %s8, 1
    %p37 = por %p35, %p36
    %p38 = scmp.ne.s32.totalorder %s30, %s33
    %p39 = scmp.eq.s32.totalorder %s8, 0
    %p40 = por %p38, %p39
    %p41 = scmp.ne.s32.totalorder %s30, %s33
    %p42 = scmp.eq.s32.totalorder %s13, 1
    %p43 = por %p41, %p42
    %p44 = scmp.ne.s32.totalorder %s33, %s34
    %p45 = scmp.eq.s32.totalorder %s13, 0
    %p46 = por %p44, %p45
    %p47 = scmp.ne.s32.totalorder %s33, %s34
    %p48 = scmp.eq.s32.totalorder %s14, 1
    %p49 = por %p47, %p48
    %p51 = scmp.ne.s32.totalorder %s34, %s50
    %p52 = scmp.eq.s32.totalorder %s14, 0
    %p53 = por %p51, %p52
    %s54 = ssub.s32 %s16, %s23
    %p55 = scmp.eq.s32.totalorder %s54, 0
    %s57 = sadd.s32 %s56, 1
    %s58 = scalar_select %p55, %s56, %s57
    %p61 = pneg %p55
    %p62 = scmp.eq.s32.totalorder %s8, 1
    %p63 = por %p61, %p62
    %p64 = scmp.ne.s32.totalorder %s56, %s59
    %p65 = scmp.eq.s32.totalorder %s8, 0
    %p66 = por %p64, %p65
    %p67 = scmp.ne.s32.totalorder %s56, %s59
    %p68 = scmp.eq.s32.totalorder %s13, 1
    %p69 = por %p67, %p68
    %p70 = scmp.ne.s32.totalorder %s59, %s60
    %p71 = scmp.eq.s32.totalorder %s13, 0
    %p72 = por %p70, %p71
    %p73 = scmp.ne.s32.totalorder %s59, %s60
    %p74 = scmp.eq.s32.totalorder %s14, 1
    %p75 = por %p73, %p74
    %p77 = scmp.ne.s32.totalorder %s60, %s76
    %p78 = scmp.eq.s32.totalorder %s14, 0
    %p79 = por %p77, %p78
    %s80 = ssub.s32 %s15, %s27
    %s81 = ssub.s32 %s16, %s23
    %s82 = sor.u32 %s80, %s81
    %p83 = scmp.eq.s32.totalorder %s82, 0
    %s85 = sadd.s32 %s84, 1
    %s86 = scalar_select %p83, %s84, %s85
    %p89 = pneg %p83
    %p90 = scmp.eq.s32.totalorder %s8, 1
    %p91 = por %p89, %p90
    %p92 = scmp.ne.s32.totalorder %s84, %s87
    %p93 = scmp.eq.s32.totalorder %s8, 0
    %p94 = por %p92, %p93
    %p95 = scmp.ne.s32.totalorder %s84, %s87
    %p96 = scmp.eq.s32.totalorder %s13, 1
    %p97 = por %p95, %p96
    %p98 = scmp.ne.s32.totalorder %s87, %s88
    %p99 = scmp.eq.s32.totalorder %s13, 0
    %p100 = por %p98, %p99
    %p101 = scmp.ne.s32.totalorder %s87, %s88
    %p102 = scmp.eq.s32.totalorder %s14, 1
    %p103 = por %p101, %p102
    %p105 = scmp.ne.s32.totalorder %s88, %s104
    %p106 = scmp.eq.s32.totalorder %s14, 0
    %p107 = por %p105, %p106
    %p108 = scmp.le.s32.totalorder 1, %s8
    %p109 = scmp.lt.s32.totalorder %s8, 3
    %p110 = pnand %p108, %p109
    %p111 = pneg %p110
    // Predicated region
    $region9: #{_lambda_.5} parent=5 // pred_check
      _
    $region10: #{_lambda_.5} parent=5 // pred_check_branch
      %113 = sbr.rel (%p110) target = $region12
    $region11: #{_lambda_.5} parent=5 // pred_region
      %s114 = ssub.s32 %s8, 1
      // Predicated region
      $region13: #{_lambda_.5} parent=11 // pred_check
        %p115 = pneg %p72
      $region14: #{_lambda_.5} parent=11 // pred_check_branch
        %117 = sbr.rel (%p115) target = $region16
      $region15: #{_lambda_.5} parent=11 // pred_region
        %p118 = scmp.lt.s32.totalorder %s18, 0
        %s119 = scalar_select %p118, %s18, 0
        %s120 = smul.addr %s119, 8
        %s121 = scalar_lea.vmem %s1, %s120
      $region16: #{_lambda_.5} parent=11 // pred_fallthru
        _
    $region12: #{_lambda_.5} parent=5 // pred_fallthru
      _
    %p122 = scmp.lt.s32.totalorder %s8, 2
    // Predicated region
    $region17: #{_lambda_.5} parent=5 // pred_check
      %p123 = pneg %p122
    $region18: #{_lambda_.5} parent=5 // pred_check_branch
      %125 = sbr.rel (%p123) target = $region20
    $region19: #{_lambda_.5} parent=5 // pred_region
      // Predicated region
      $region21: #{_lambda_.5} parent=19 // pred_check
        %p126 = pneg %p40
      $region22: #{_lambda_.5} parent=19 // pred_check_branch
        %128 = sbr.rel (%p126) target = $region24
      $region23: #{_lambda_.5} parent=19 // pred_region
        %p129 = scmp.lt.s32.totalorder %s15, 1
        %s130 = scalar_select %p129, %s15, 1
        %s131 = smul.addr %s130, 40
        %s132 = smul.addr %s131, 8
        %s133 = scalar_lea.vmem %s0, %s132
      $region24: #{_lambda_.5} parent=19 // pred_fallthru
        _
    $region20: #{_lambda_.5} parent=5 // pred_fallthru
      _
    %p134 = scmp.le.s32.totalorder 1, %s8
    %p135 = scmp.lt.s32.totalorder %s8, 3
    %p136 = pnand %p134, %p135
    %p137 = pneg %p136
    // Predicated region
    $region25: #{_lambda_.5} parent=5 // pred_check
      _
    $region26: #{_lambda_.5} parent=5 // pred_check_branch
      %139 = sbr.rel (%p136) target = $region28
    $region27: #{_lambda_.5} parent=5 // pred_region
      %s140 = ssub.s32 %s8, 1
      %p141 = scmp.lt.s32.totalorder %s17, 1
      %s142 = scalar_select %p141, %s17, 1
      %s143 = smul.addr %s142, 40
      %s144 = smul.addr %s143, 8
      %s145 = scalar_lea.vmem %s0, %s144
      %p146 = pneg %p46
      %p147 = pneg %p43
      %p148 = scmp.lt.s32.totalorder %s18, 0
      %s149 = scalar_select %p148, %s18, 0
      %s150 = smul.addr %s149, 8
      %s151 = scalar_lea.vmem %s1, %s150
      %p152 = pneg %p72
      %p153 = pneg %p69
      %p154 = pneg %p100
      %p155 = pneg %p97
      %p156 = scmp.lt.s32.totalorder %s17, 1
      %s157 = scalar_select %p156, %s17, 1
      %p158 = scmp.lt.s32.totalorder %s18, 0
      %s159 = scalar_select %p158, %s18, 0
      %s160 = smul.addr %s157, 4
      %s161 = sadd.s32 %s159, %s160
      %s162 = smul.addr %s161, 8
      %s163 = scalar_lea.vmem %s2, %s162
      %p164 = scmp.lt.s32.totalorder %s17, 1
      %s165 = scalar_select %p164, %s17, 1
      %s166 = smul.addr %s165, 40
      %s167 = smul.addr %s166, 8
      %s168 = scalar_lea.vmem %s0, %s167
      %p169 = scmp.lt.s32.totalorder %s18, 0
      %s170 = scalar_select %p169, %s18, 0
      %s171 = smul.addr %s170, 8
      %s172 = scalar_lea.vmem %s1, %s171
      %p173 = scmp.lt.s32.totalorder %s17, 1
      %s174 = scalar_select %p173, %s17, 1
      %p175 = scmp.lt.s32.totalorder %s18, 0
      %s176 = scalar_select %p175, %s18, 0
      %s177 = smul.addr %s174, 4
      %s178 = sadd.s32 %s176, %s177
      %s179 = smul.addr %s178, 8
      %s180 = scalar_lea.vmem %s2, %s179
      %v181 = vld [vmem:[%s168] sm:$0xff]
      %v182 = vld [vmem:[%s168 + $0x8] sm:$0xff]
      %v183 = vld [vmem:[%s168 + $0x10] sm:$0xff]
      %v184 = vld [vmem:[%s168 + $0x18] sm:$0xff]
      %v185 = vld [vmem:[%s168 + $0x20] sm:$0xff]
      %v186 = vld [vmem:[%s168 + $0x28] sm:$0xff]
      %v187 = vld [vmem:[%s168 + $0x30] sm:$0xff]
      %v188 = vld [vmem:[%s168 + $0x38] sm:$0xff]
      %v189 = vld [vmem:[%s168 + $0x40] sm:$0xff]
      %v190 = vld [vmem:[%s168 + $0x48] sm:$0xff]
      %v191 = vld [vmem:[%s168 + $0x50] sm:$0xff]
      %v192 = vld [vmem:[%s168 + $0x58] sm:$0xff]
      %v193 = vld [vmem:[%s168 + $0x60] sm:$0xff]
      %v194 = vld [vmem:[%s168 + $0x68] sm:$0xff]
      %v195 = vld [vmem:[%s168 + $0x70] sm:$0xff]
      %v196 = vld [vmem:[%s168 + $0x78] sm:$0xff]
      %v197 = vld [vmem:[%s168 + $0x80] sm:$0xff]
      %v198 = vld [vmem:[%s168 + $0x88] sm:$0xff]
      %v199 = vld [vmem:[%s168 + $0x90] sm:$0xff]
      %v200 = vld [vmem:[%s168 + $0x98] sm:$0xff]
      %v201 = vld [vmem:[%s168 + $0xa0] sm:$0xff]
      %v202 = vld [vmem:[%s168 + $0xa8] sm:$0xff]
      %v203 = vld [vmem:[%s168 + $0xb0] sm:$0xff]
      %v204 = vld [vmem:[%s168 + $0xb8] sm:$0xff]
      %v205 = vld [vmem:[%s168 + $0xc0] sm:$0xff]
      %v206 = vld [vmem:[%s168 + $0xc8] sm:$0xff]
      %v207 = vld [vmem:[%s168 + $0xd0] sm:$0xff]
      %v208 = vld [vmem:[%s168 + $0xd8] sm:$0xff]
      %v209 = vld [vmem:[%s168 + $0xe0] sm:$0xff]
      %v210 = vld [vmem:[%s168 + $0xe8] sm:$0xff]
      %v211 = vld [vmem:[%s168 + $0xf0] sm:$0xff]
      %v212 = vld [vmem:[%s168 + $0xf8] sm:$0xff]
      %v213 = vld [vmem:[%s172] sm:$0xff]
      %v214 = vld [vmem:[%s172 + $0x8] sm:$0xff]
      %v215 = vld [vmem:[%s172 + $0x10] sm:$0xff]
      %v216 = vld [vmem:[%s172 + $0x18] sm:$0xff]
      %v217 = vld [vmem:[%s172 + $0x20] sm:$0xff]
      %v218 = vld [vmem:[%s172 + $0x28] sm:$0xff]
      %v219 = vld [vmem:[%s172 + $0x30] sm:$0xff]
      %v220 = vld [vmem:[%s172 + $0x38] sm:$0xff]
      %v221 = vld [vmem:[%s172 + $0x40] sm:$0xff]
      %v222 = vld [vmem:[%s172 + $0x48] sm:$0xff]
      %v223 = vld [vmem:[%s172 + $0x50] sm:$0xff]
      %v224 = vld [vmem:[%s172 + $0x58] sm:$0xff]
      %v225 = vld [vmem:[%s172 + $0x60] sm:$0xff]
      %v226 = vld [vmem:[%s172 + $0x68] sm:$0xff]
      %v227 = vld [vmem:[%s172 + $0x70] sm:$0xff]
      %v228 = vld [vmem:[%s172 + $0x78] sm:$0xff]
      %v229 = vld [vmem:[%s172 + $0x80] sm:$0xff]
      %v230 = vld [vmem:[%s172 + $0x88] sm:$0xff]
      %v231 = vld [vmem:[%s172 + $0x90] sm:$0xff]
      %v232 = vld [vmem:[%s172 + $0x98] sm:$0xff]
      %v233 = vld [vmem:[%s172 + $0xa0] sm:$0xff]
      %v234 = vld [vmem:[%s172 + $0xa8] sm:$0xff]
      %v235 = vld [vmem:[%s172 + $0xb0] sm:$0xff]
      %v236 = vld [vmem:[%s172 + $0xb8] sm:$0xff]
      %v237 = vld [vmem:[%s172 + $0xc0] sm:$0xff]
      %v238 = vld [vmem:[%s172 + $0xc8] sm:$0xff]
      %v239 = vld [vmem:[%s172 + $0xd0] sm:$0xff]
      %v240 = vld [vmem:[%s172 + $0xd8] sm:$0xff]
      %v241 = vld [vmem:[%s172 + $0xe0] sm:$0xff]
      %v242 = vld [vmem:[%s172 + $0xe8] sm:$0xff]
      %v243 = vld [vmem:[%s172 + $0xf0] sm:$0xff]
      %v244 = vld [vmem:[%s172 + $0xf8] sm:$0xff]
      %v245 = vld [vmem:[%s172 + $0x100] sm:$0xff]
      %v246 = vld [vmem:[%s172 + $0x108] sm:$0xff]
      %v247 = vld [vmem:[%s172 + $0x110] sm:$0xff]
      %v248 = vld [vmem:[%s172 + $0x118] sm:$0xff]
      %v249 = vld [vmem:[%s172 + $0x120] sm:$0xff]
      %v250 = vld [vmem:[%s172 + $0x128] sm:$0xff]
      %v251 = vld [vmem:[%s172 + $0x130] sm:$0xff]
      %v252 = vld [vmem:[%s172 + $0x138] sm:$0xff]
      %v253 = vld [vmem:[%s172 + $0x140] sm:$0xff]
      %v254 = vld [vmem:[%s172 + $0x148] sm:$0xff]
      %v255 = vld [vmem:[%s172 + $0x150] sm:$0xff]
      %v256 = vld [vmem:[%s172 + $0x158] sm:$0xff]
      %v257 = vld [vmem:[%s172 + $0x160] sm:$0xff]
      %v258 = vld [vmem:[%s172 + $0x168] sm:$0xff]
      %v259 = vld [vmem:[%s172 + $0x170] sm:$0xff]
      %v260 = vld [vmem:[%s172 + $0x178] sm:$0xff]
      %v261 = vld [vmem:[%s172 + $0x180] sm:$0xff]
      %v262 = vld [vmem:[%s172 + $0x188] sm:$0xff]
      %v263 = vld [vmem:[%s172 + $0x190] sm:$0xff]
      %v264 = vld [vmem:[%s172 + $0x198] sm:$0xff]
      %v265 = vld [vmem:[%s172 + $0x1a0] sm:$0xff]
      %v266 = vld [vmem:[%s172 + $0x1a8] sm:$0xff]
      %v267 = vld [vmem:[%s172 + $0x1b0] sm:$0xff]
      %v268 = vld [vmem:[%s172 + $0x1b8] sm:$0xff]
      %v269 = vld [vmem:[%s172 + $0x1c0] sm:$0xff]
      %v270 = vld [vmem:[%s172 + $0x1c8] sm:$0xff]
      %v271 = vld [vmem:[%s172 + $0x1d0] sm:$0xff]
      %v272 = vld [vmem:[%s172 + $0x1d8] sm:$0xff]
      %v273 = vld [vmem:[%s172 + $0x1e0] sm:$0xff]
      %v274 = vld [vmem:[%s172 + $0x1e8] sm:$0xff]
      %v275 = vld [vmem:[%s172 + $0x1f0] sm:$0xff]
      %v276 = vld [vmem:[%s172 + $0x1f8] sm:$0xff]
      %v277 = vld [vmem:[%s172 + $0x200] sm:$0xff]
      %v278 = vld [vmem:[%s172 + $0x208] sm:$0xff]
      %v279 = vld [vmem:[%s172 + $0x210] sm:$0xff]
      %v280 = vld [vmem:[%s172 + $0x218] sm:$0xff]
      %v281 = vld [vmem:[%s172 + $0x220] sm:$0xff]
      %v282 = vld [vmem:[%s172 + $0x228] sm:$0xff]
      %v283 = vld [vmem:[%s172 + $0x230] sm:$0xff]
      %v284 = vld [vmem:[%s172 + $0x238] sm:$0xff]
      %v285 = vld [vmem:[%s172 + $0x240] sm:$0xff]
      %v286 = vld [vmem:[%s172 + $0x248] sm:$0xff]
      %v287 = vld [vmem:[%s172 + $0x250] sm:$0xff]
      %v288 = vld [vmem:[%s172 + $0x258] sm:$0xff]
      %v289 = vld [vmem:[%s172 + $0x260] sm:$0xff]
      %v290 = vld [vmem:[%s172 + $0x268] sm:$0xff]
      %v291 = vld [vmem:[%s172 + $0x270] sm:$0xff]
      %v292 = vld [vmem:[%s172 + $0x278] sm:$0xff]
      %v293 = vld [vmem:[%s172 + $0x280] sm:$0xff]
      %v294 = vld [vmem:[%s172 + $0x288] sm:$0xff]
      %v295 = vld [vmem:[%s172 + $0x290] sm:$0xff]
      %v296 = vld [vmem:[%s172 + $0x298] sm:$0xff]
      %v297 = vld [vmem:[%s172 + $0x2a0] sm:$0xff]
      %v298 = vld [vmem:[%s172 + $0x2a8] sm:$0xff]
      %v299 = vld [vmem:[%s172 + $0x2b0] sm:$0xff]
      %v300 = vld [vmem:[%s172 + $0x2b8] sm:$0xff]
      %v301 = vld [vmem:[%s172 + $0x2c0] sm:$0xff]
      %v302 = vld [vmem:[%s172 + $0x2c8] sm:$0xff]
      %v303 = vld [vmem:[%s172 + $0x2d0] sm:$0xff]
      %v304 = vld [vmem:[%s172 + $0x2d8] sm:$0xff]
      %v305 = vld [vmem:[%s172 + $0x2e0] sm:$0xff]
      %v306 = vld [vmem:[%s172 + $0x2e8] sm:$0xff]
      %v307 = vld [vmem:[%s172 + $0x2f0] sm:$0xff]
      %v308 = vld [vmem:[%s172 + $0x2f8] sm:$0xff]
      %v309 = vld [vmem:[%s172 + $0x300] sm:$0xff]
      %v310 = vld [vmem:[%s172 + $0x308] sm:$0xff]
      %v311 = vld [vmem:[%s172 + $0x310] sm:$0xff]
      %v312 = vld [vmem:[%s172 + $0x318] sm:$0xff]
      %v313 = vld [vmem:[%s172 + $0x320] sm:$0xff]
      %v314 = vld [vmem:[%s172 + $0x328] sm:$0xff]
      %v315 = vld [vmem:[%s172 + $0x330] sm:$0xff]
      %v316 = vld [vmem:[%s172 + $0x338] sm:$0xff]
      %v317 = vld [vmem:[%s172 + $0x340] sm:$0xff]
      %v318 = vld [vmem:[%s172 + $0x348] sm:$0xff]
      %v319 = vld [vmem:[%s172 + $0x350] sm:$0xff]
      %v320 = vld [vmem:[%s172 + $0x358] sm:$0xff]
      %v321 = vld [vmem:[%s172 + $0x360] sm:$0xff]
      %v322 = vld [vmem:[%s172 + $0x368] sm:$0xff]
      %v323 = vld [vmem:[%s172 + $0x370] sm:$0xff]
      %v324 = vld [vmem:[%s172 + $0x378] sm:$0xff]
      %v325 = vld [vmem:[%s172 + $0x380] sm:$0xff]
      %v326 = vld [vmem:[%s172 + $0x388] sm:$0xff]
      %v327 = vld [vmem:[%s172 + $0x390] sm:$0xff]
      %v328 = vld [vmem:[%s172 + $0x398] sm:$0xff]
      %v329 = vld [vmem:[%s172 + $0x3a0] sm:$0xff]
      %v330 = vld [vmem:[%s172 + $0x3a8] sm:$0xff]
      %v331 = vld [vmem:[%s172 + $0x3b0] sm:$0xff]
      %v332 = vld [vmem:[%s172 + $0x3b8] sm:$0xff]
      %v333 = vld [vmem:[%s172 + $0x3c0] sm:$0xff]
      %v334 = vld [vmem:[%s172 + $0x3c8] sm:$0xff]
      %v335 = vld [vmem:[%s172 + $0x3d0] sm:$0xff]
      %v336 = vld [vmem:[%s172 + $0x3d8] sm:$0xff]
      %v337 = vld [vmem:[%s172 + $0x3e0] sm:$0xff]
      %v338 = vld [vmem:[%s172 + $0x3e8] sm:$0xff]
      %v339 = vld [vmem:[%s172 + $0x3f0] sm:$0xff]
      %v340 = vld [vmem:[%s172 + $0x3f8] sm:$0xff]
      %341 = vmatprep.subr.mxu0 0.0
      %342 = vmatpush1.msra.mxu0 %v228
      %343 = vmatprep.subr.mxu0 0.0
      %344 = vmatpush1.msra.mxu0 %v227
      %345 = vmatprep.subr.mxu0 0.0
      %346 = vmatpush1.msra.mxu0 %v226
      %347 = vmatprep.subr.mxu0 0.0
      %348 = vmatpush1.msra.mxu0 %v225
      %349 = vmatprep.subr.mxu0 0.0
      %350 = vmatpush1.msra.mxu0 %v224
      %351 = vmatprep.subr.mxu0 0.0
      %352 = vmatpush1.msra.mxu0 %v223
      %353 = vmatprep.subr.mxu0 0.0
      %354 = vmatpush1.msra.mxu0 %v222
      %355 = vmatprep.subr.mxu0 0.0
      %356 = vmatpush1.msra.mxu0 %v221
      %357 = vmatprep.subr.mxu0 0.0
      %358 = vmatpush1.msra.mxu0 %v220
      %359 = vmatprep.subr.mxu0 0.0
      %360 = vmatpush1.msra.mxu0 %v219
      %361 = vmatprep.subr.mxu0 0.0
      %362 = vmatpush1.msra.mxu0 %v218
      %363 = vmatprep.subr.mxu0 0.0
      %364 = vmatpush1.msra.mxu0 %v217
      %365 = vmatprep.subr.mxu0 0.0
      %366 = vmatpush1.msra.mxu0 %v216
      %367 = vmatprep.subr.mxu0 0.0
      %368 = vmatpush1.msra.mxu0 %v215
      %369 = vmatprep.subr.mxu0 0.0
      %370 = vmatpush1.msra.mxu0 %v214
      %371 = vmatprep.subr.mxu0 0.0
      %372 = vmatpush1.msra.mxu0 %v213
      %373 = vmatprep.subr.mxu0 0.0
      %374 = vmatpush2.msra.mxu0 %v244
      %375 = vmatprep.subr.mxu0 0.0
      %376 = vmatpush2.msra.mxu0 %v243
      %377 = vmatprep.subr.mxu0 0.0
      %378 = vmatpush2.msra.mxu0 %v242
      %379 = vmatprep.subr.mxu0 0.0
      %380 = vmatpush2.msra.mxu0 %v241
      %381 = vmatprep.subr.mxu0 0.0
      %382 = vmatpush2.msra.mxu0 %v240
      %383 = vmatprep.subr.mxu0 0.0
      %384 = vmatpush2.msra.mxu0 %v239
      %385 = vmatprep.subr.mxu0 0.0
      %386 = vmatpush2.msra.mxu0 %v238
      %387 = vmatprep.subr.mxu0 0.0
      %388 = vmatpush2.msra.mxu0 %v237
      %389 = vmatprep.subr.mxu0 0.0
      %390 = vmatpush2.msra.mxu0 %v236
      %391 = vmatprep.subr.mxu0 0.0
      %392 = vmatpush2.msra.mxu0 %v235
      %393 = vmatprep.subr.mxu0 0.0
      %394 = vmatpush2.msra.mxu0 %v234
      %395 = vmatprep.subr.mxu0 0.0
      %396 = vmatpush2.msra.mxu0 %v233
      %397 = vmatprep.subr.mxu0 0.0
      %398 = vmatpush2.msra.mxu0 %v232
      %399 = vmatprep.subr.mxu0 0.0
      %400 = vmatpush2.msra.mxu0 %v231
      %401 = vmatprep.subr.mxu0 0.0
      %402 = vmatpush2.msra.mxu0 %v230
      %403 = vmatprep.subr.mxu0 0.0
      %404 = vmatpush2.msra.mxu0 %v229
      %405 = vmatprep.mubr.f32.mxu0 %v182
      %406 = vmatmul.mubr.f32.gmra.mxu0 %v181
      %v407 = vpop.f32.mrf.mxu0
      %v408 = vadd.f32 0.0, %v407
      %v409 = vpop.f32.mrf.mxu0
      %410 = vmatprep.mubr.f32.mxu0 %v190
      %411 = vmatmul.mubr.f32.gmra.mxu0 %v189
      %v412 = vpop.f32.mrf.mxu0
      %v413 = vadd.f32 0.0, %v412
      %v414 = vpop.f32.mrf.mxu0
      %415 = vmatprep.mubr.f32.mxu0 %v198
      %416 = vmatmul.mubr.f32.gmra.mxu0 %v197
      %v417 = vpop.f32.mrf.mxu0
      %v418 = vadd.f32 0.0, %v417
      %v419 = vpop.f32.mrf.mxu0
      %420 = vmatprep.mubr.f32.mxu0 %v206
      %421 = vmatmul.mubr.f32.gmra.mxu0 %v205
      %v422 = vpop.f32.mrf.mxu0
      %v423 = vadd.f32 0.0, %v422
      %v424 = vpop.f32.mrf.mxu0
      %425 = vdwg.mxu0
      %426 = vmatprep.subr.mxu0 0.0
      %427 = vmatpush1.msra.mxu0 %v260
      %428 = vmatprep.subr.mxu0 0.0
      %429 = vmatpush1.msra.mxu0 %v259
      %430 = vmatprep.subr.mxu0 0.0
      %431 = vmatpush1.msra.mxu0 %v258
      %432 = vmatprep.subr.mxu0 0.0
      %433 = vmatpush1.msra.mxu0 %v257
      %434 = vmatprep.subr.mxu0 0.0
      %435 = vmatpush1.msra.mxu0 %v256
      %436 = vmatprep.subr.mxu0 0.0
      %437 = vmatpush1.msra.mxu0 %v255
      %438 = vmatprep.subr.mxu0 0.0
      %439 = vmatpush1.msra.mxu0 %v254
      %440 = vmatprep.subr.mxu0 0.0
      %441 = vmatpush1.msra.mxu0 %v253
      %442 = vmatprep.subr.mxu0 0.0
      %443 = vmatpush1.msra.mxu0 %v252
      %444 = vmatprep.subr.mxu0 0.0
      %445 = vmatpush1.msra.mxu0 %v251
      %446 = vmatprep.subr.mxu0 0.0
      %447 = vmatpush1.msra.mxu0 %v250
      %448 = vmatprep.subr.mxu0 0.0
      %449 = vmatpush1.msra.mxu0 %v249
      %450 = vmatprep.subr.mxu0 0.0
      %451 = vmatpush1.msra.mxu0 %v248
      %452 = vmatprep.subr.mxu0 0.0
      %453 = vmatpush1.msra.mxu0 %v247
      %454 = vmatprep.subr.mxu0 0.0
      %455 = vmatpush1.msra.mxu0 %v246
      %456 = vmatprep.subr.mxu0 0.0
      %457 = vmatpush1.msra.mxu0 %v245
      %458 = vmatprep.subr.mxu0 0.0
      %459 = vmatpush2.msra.mxu0 %v276
      %460 = vmatprep.subr.mxu0 0.0
      %461 = vmatpush2.msra.mxu0 %v275
      %462 = vmatprep.subr.mxu0 0.0
      %463 = vmatpush2.msra.mxu0 %v274
      %464 = vmatprep.subr.mxu0 0.0
      %465 = vmatpush2.msra.mxu0 %v273
      %466 = vmatprep.subr.mxu0 0.0
      %467 = vmatpush2.msra.mxu0 %v272
      %468 = vmatprep.subr.mxu0 0.0
      %469 = vmatpush2.msra.mxu0 %v271
      %470 = vmatprep.subr.mxu0 0.0
      %471 = vmatpush2.msra.mxu0 %v270
      %472 = vmatprep.subr.mxu0 0.0
      %473 = vmatpush2.msra.mxu0 %v269
      %474 = vmatprep.subr.mxu0 0.0
      %475 = vmatpush2.msra.mxu0 %v268
      %476 = vmatprep.subr.mxu0 0.0
      %477 = vmatpush2.msra.mxu0 %v267
      %478 = vmatprep.subr.mxu0 0.0
      %479 = vmatpush2.msra.mxu0 %v266
      %480 = vmatprep.subr.mxu0 0.0
      %481 = vmatpush2.msra.mxu0 %v265
      %482 = vmatprep.subr.mxu0 0.0
      %483 = vmatpush2.msra.mxu0 %v264
      %484 = vmatprep.subr.mxu0 0.0
      %485 = vmatpush2.msra.mxu0 %v263
      %486 = vmatprep.subr.mxu0 0.0
      %487 = vmatpush2.msra.mxu0 %v262
      %488 = vmatprep.subr.mxu0 0.0
      %489 = vmatpush2.msra.mxu0 %v261
      %490 = vmatprep.mubr.f32.mxu0 %v184
      %491 = vmatmul.mubr.f32.gmra.mxu0 %v183
      %v492 = vpop.f32.mrf.mxu0
      %v493 = vadd.f32 %v408, %v492
      %v494 = vpop.f32.mrf.mxu0
      %495 = vmatprep.mubr.f32.mxu0 %v192
      %496 = vmatmul.mubr.f32.gmra.mxu0 %v191
      %v497 = vpop.f32.mrf.mxu0
      %v498 = vadd.f32 %v413, %v497
      %v499 = vpop.f32.mrf.mxu0
      %500 = vmatprep.mubr.f32.mxu0 %v200
      %501 = vmatmul.mubr.f32.gmra.mxu0 %v199
      %v502 = vpop.f32.mrf.mxu0
      %v503 = vadd.f32 %v418, %v502
      %v504 = vpop.f32.mrf.mxu0
      %505 = vmatprep.mubr.f32.mxu0 %v208
      %506 = vmatmul.mubr.f32.gmra.mxu0 %v207
      %v507 = vpop.f32.mrf.mxu0
      %v508 = vadd.f32 %v423, %v507
      %v509 = vpop.f32.mrf.mxu0
      %510 = vdwg.mxu0
      %511 = vmatprep.subr.mxu0 0.0
      %512 = vmatpush1.msra.mxu0 %v292
      %513 = vmatprep.subr.mxu0 0.0
      %514 = vmatpush1.msra.mxu0 %v291
      %515 = vmatprep.subr.mxu0 0.0
      %516 = vmatpush1.msra.mxu0 %v290
      %517 = vmatprep.subr.mxu0 0.0
      %518 = vmatpush1.msra.mxu0 %v289
      %519 = vmatprep.subr.mxu0 0.0
      %520 = vmatpush1.msra.mxu0 %v288
      %521 = vmatprep.subr.mxu0 0.0
      %522 = vmatpush1.msra.mxu0 %v287
      %523 = vmatprep.subr.mxu0 0.0
      %524 = vmatpush1.msra.mxu0 %v286
      %525 = vmatprep.subr.mxu0 0.0
      %526 = vmatpush1.msra.mxu0 %v285
      %527 = vmatprep.subr.mxu0 0.0
      %528 = vmatpush1.msra.mxu0 %v284
      %529 = vmatprep.subr.mxu0 0.0
      %530 = vmatpush1.msra.mxu0 %v283
      %531 = vmatprep.subr.mxu0 0.0
      %532 = vmatpush1.msra.mxu0 %v282
      %533 = vmatprep.subr.mxu0 0.0
      %534 = vmatpush1.msra.mxu0 %v281
      %535 = vmatprep.subr.mxu0 0.0
      %536 = vmatpush1.msra.mxu0 %v280
      %537 = vmatprep.subr.mxu0 0.0
      %538 = vmatpush1.msra.mxu0 %v279
      %539 = vmatprep.subr.mxu0 0.0
      %540 = vmatpush1.msra.mxu0 %v278
      %541 = vmatprep.subr.mxu0 0.0
      %542 = vmatpush1.msra.mxu0 %v277
      %543 = vmatprep.subr.mxu0 0.0
      %544 = vmatpush2.msra.mxu0 %v308
      %545 = vmatprep.subr.mxu0 0.0
      %546 = vmatpush2.msra.mxu0 %v307
      %547 = vmatprep.subr.mxu0 0.0
      %548 = vmatpush2.msra.mxu0 %v306
      %549 = vmatprep.subr.mxu0 0.0
      %550 = vmatpush2.msra.mxu0 %v305
      %551 = vmatprep.subr.mxu0 0.0
      %552 = vmatpush2.msra.mxu0 %v304
      %553 = vmatprep.subr.mxu0 0.0
      %554 = vmatpush2.msra.mxu0 %v303
      %555 = vmatprep.subr.mxu0 0.0
      %556 = vmatpush2.msra.mxu0 %v302
      %557 = vmatprep.subr.mxu0 0.0
      %558 = vmatpush2.msra.mxu0 %v301
      %559 = vmatprep.subr.mxu0 0.0
      %560 = vmatpush2.msra.mxu0 %v300
      %561 = vmatprep.subr.mxu0 0.0
      %562 = vmatpush2.msra.mxu0 %v299
      %563 = vmatprep.subr.mxu0 0.0
      %564 = vmatpush2.msra.mxu0 %v298
      %565 = vmatprep.subr.mxu0 0.0
      %566 = vmatpush2.msra.mxu0 %v297
      %567 = vmatprep.subr.mxu0 0.0
      %568 = vmatpush2.msra.mxu0 %v296
      %569 = vmatprep.subr.mxu0 0.0
      %570 = vmatpush2.msra.mxu0 %v295
      %571 = vmatprep.subr.mxu0 0.0
      %572 = vmatpush2.msra.mxu0 %v294
      %573 = vmatprep.subr.mxu0 0.0
      %574 = vmatpush2.msra.mxu0 %v293
      %575 = vmatprep.mubr.f32.mxu0 %v186
      %576 = vmatmul.mubr.f32.gmra.mxu0 %v185
      %v577 = vpop.f32.mrf.mxu0
      %v578 = vadd.f32 %v493, %v577
      %v579 = vpop.f32.mrf.mxu0
      %580 = vmatprep.mubr.f32.mxu0 %v194
      %581 = vmatmul.mubr.f32.gmra.mxu0 %v193
      %v582 = vpop.f32.mrf.mxu0
      %v583 = vadd.f32 %v498, %v582
      %v584 = vpop.f32.mrf.mxu0
      %585 = vmatprep.mubr.f32.mxu0 %v202
      %586 = vmatmul.mubr.f32.gmra.mxu0 %v201
      %v587 = vpop.f32.mrf.mxu0
      %v588 = vadd.f32 %v503, %v587
      %v589 = vpop.f32.mrf.mxu0
      %590 = vmatprep.mubr.f32.mxu0 %v210
      %591 = vmatmul.mubr.f32.gmra.mxu0 %v209
      %v592 = vpop.f32.mrf.mxu0
      %v593 = vadd.f32 %v508, %v592
      %v594 = vpop.f32.mrf.mxu0
      %595 = vdwg.mxu0
      %596 = vmatprep.subr.mxu0 0.0
      %597 = vmatpush1.msra.mxu0 %v324
      %598 = vmatprep.subr.mxu0 0.0
      %599 = vmatpush1.msra.mxu0 %v323
      %600 = vmatprep.subr.mxu0 0.0
      %601 = vmatpush1.msra.mxu0 %v322
      %602 = vmatprep.subr.mxu0 0.0
      %603 = vmatpush1.msra.mxu0 %v321
      %604 = vmatprep.subr.mxu0 0.0
      %605 = vmatpush1.msra.mxu0 %v320
      %606 = vmatprep.subr.mxu0 0.0
      %607 = vmatpush1.msra.mxu0 %v319
      %608 = vmatprep.subr.mxu0 0.0
      %609 = vmatpush1.msra.mxu0 %v318
      %610 = vmatprep.subr.mxu0 0.0
      %611 = vmatpush1.msra.mxu0 %v317
      %612 = vmatprep.subr.mxu0 0.0
      %613 = vmatpush1.msra.mxu0 %v316
      %614 = vmatprep.subr.mxu0 0.0
      %615 = vmatpush1.msra.mxu0 %v315
      %616 = vmatprep.subr.mxu0 0.0
      %617 = vmatpush1.msra.mxu0 %v314
      %618 = vmatprep.subr.mxu0 0.0
      %619 = vmatpush1.msra.mxu0 %v313
      %620 = vmatprep.subr.mxu0 0.0
      %621 = vmatpush1.msra.mxu0 %v312
      %622 = vmatprep.subr.mxu0 0.0
      %623 = vmatpush1.msra.mxu0 %v311
      %624 = vmatprep.subr.mxu0 0.0
      %625 = vmatpush1.msra.mxu0 %v310
      %626 = vmatprep.subr.mxu0 0.0
      %627 = vmatpush1.msra.mxu0 %v309
      %628 = vmatprep.subr.mxu0 0.0
      %629 = vmatpush2.msra.mxu0 %v340
      %630 = vmatprep.subr.mxu0 0.0
      %631 = vmatpush2.msra.mxu0 %v339
      %632 = vmatprep.subr.mxu0 0.0
      %633 = vmatpush2.msra.mxu0 %v338
      %634 = vmatprep.subr.mxu0 0.0
      %635 = vmatpush2.msra.mxu0 %v337
      %636 = vmatprep.subr.mxu0 0.0
      %637 = vmatpush2.msra.mxu0 %v336
      %638 = vmatprep.subr.mxu0 0.0
      %639 = vmatpush2.msra.mxu0 %v335
      %640 = vmatprep.subr.mxu0 0.0
      %641 = vmatpush2.msra.mxu0 %v334
      %642 = vmatprep.subr.mxu0 0.0
      %643 = vmatpush2.msra.mxu0 %v333
      %644 = vmatprep.subr.mxu0 0.0
      %645 = vmatpush2.msra.mxu0 %v332
      %646 = vmatprep.subr.mxu0 0.0
      %647 = vmatpush2.msra.mxu0 %v331
      %648 = vmatprep.subr.mxu0 0.0
      %649 = vmatpush2.msra.mxu0 %v330
      %650 = vmatprep.subr.mxu0 0.0
      %651 = vmatpush2.msra.mxu0 %v329
      %652 = vmatprep.subr.mxu0 0.0
      %653 = vmatpush2.msra.mxu0 %v328
      %654 = vmatprep.subr.mxu0 0.0
      %655 = vmatpush2.msra.mxu0 %v327
      %656 = vmatprep.subr.mxu0 0.0
      %657 = vmatpush2.msra.mxu0 %v326
      %658 = vmatprep.subr.mxu0 0.0
      %659 = vmatpush2.msra.mxu0 %v325
      %660 = vmatprep.mubr.f32.mxu0 %v188
      %661 = vmatmul.mubr.f32.gmra.mxu0 %v187
      %v662 = vpop.f32.mrf.mxu0
      %v663 = vadd.f32 %v578, %v662
      %v664 = vpop.f32.mrf.mxu0
      %665 = vmatprep.mubr.f32.mxu0 %v196
      %666 = vmatmul.mubr.f32.gmra.mxu0 %v195
      %v667 = vpop.f32.mrf.mxu0
      %v668 = vadd.f32 %v583, %v667
      %v669 = vpop.f32.mrf.mxu0
      %670 = vmatprep.mubr.f32.mxu0 %v204
      %671 = vmatmul.mubr.f32.gmra.mxu0 %v203
      %v672 = vpop.f32.mrf.mxu0
      %v673 = vadd.f32 %v588, %v672
      %v674 = vpop.f32.mrf.mxu0
      %675 = vmatprep.mubr.f32.mxu0 %v212
      %676 = vmatmul.mubr.f32.gmra.mxu0 %v211
      %v677 = vpop.f32.mrf.mxu0
      %v678 = vadd.f32 %v593, %v677
      %v679 = vpop.f32.mrf.mxu0
      %680 = vdwg.mxu0
      %681 = vst [vmem:[#allocation2] sm:$0xff] %v663
      %682 = vst [vmem:[#allocation2 + $0x8] sm:$0xff] %v668
      %683 = vst [vmem:[#allocation2 + $0x10] sm:$0xff] %v673
      %684 = vst [vmem:[#allocation2 + $0x18] sm:$0xff] %v678
      %v685 = vld [vmem:[#allocation2] sm:$0xff]
      %v686 = vld [vmem:[#allocation2 + $0x8] sm:$0xff]
      %v687 = vld [vmem:[#allocation2 + $0x10] sm:$0xff]
      %v688 = vld [vmem:[#allocation2 + $0x18] sm:$0xff]
      %v689 = vld [vmem:[%s168 + $0x40] sm:$0xff]
      %v690 = vld [vmem:[%s168 + $0x48] sm:$0xff]
      %v691 = vld [vmem:[%s168 + $0x50] sm:$0xff]
      %v692 = vld [vmem:[%s168 + $0x58] sm:$0xff]
      %v693 = vld [vmem:[%s168 + $0x60] sm:$0xff]
      %v694 = vld [vmem:[%s168 + $0x68] sm:$0xff]
      %v695 = vld [vmem:[%s168 + $0x70] sm:$0xff]
      %v696 = vld [vmem:[%s168 + $0x78] sm:$0xff]
      %v697 = vld [vmem:[%s168 + $0x80] sm:$0xff]
      %v698 = vld [vmem:[%s168 + $0x88] sm:$0xff]
      %v699 = vld [vmem:[%s168 + $0x90] sm:$0xff]
      %v700 = vld [vmem:[%s168 + $0x98] sm:$0xff]
      %v701 = vld [vmem:[%s168 + $0xa0] sm:$0xff]
      %v702 = vld [vmem:[%s168 + $0xa8] sm:$0xff]
      %v703 = vld [vmem:[%s168 + $0xb0] sm:$0xff]
      %v704 = vld [vmem:[%s168 + $0xb8] sm:$0xff]
      %v705 = vld [vmem:[%s168 + $0xc0] sm:$0xff]
      %v706 = vld [vmem:[%s168 + $0xc8] sm:$0xff]
      %v707 = vld [vmem:[%s168 + $0xd0] sm:$0xff]
      %v708 = vld [vmem:[%s168 + $0xd8] sm:$0xff]
      %v709 = vld [vmem:[%s168 + $0xe0] sm:$0xff]
      %v710 = vld [vmem:[%s168 + $0xe8] sm:$0xff]
      %v711 = vld [vmem:[%s168 + $0xf0] sm:$0xff]
      %v712 = vld [vmem:[%s168 + $0xf8] sm:$0xff]
      %v713 = vld [vmem:[%s168 + $0x100] sm:$0xff]
      %v714 = vld [vmem:[%s168 + $0x108] sm:$0xff]
      %v715 = vld [vmem:[%s168 + $0x110] sm:$0xff]
      %v716 = vld [vmem:[%s168 + $0x118] sm:$0xff]
      %v717 = vld [vmem:[%s168 + $0x120] sm:$0xff]
      %v718 = vld [vmem:[%s168 + $0x128] sm:$0xff]
      %v719 = vld [vmem:[%s168 + $0x130] sm:$0xff]
      %v720 = vld [vmem:[%s168 + $0x138] sm:$0xff]
      %s721 = scalar_lea.vmem %s172, 1024
      %v722 = vld [vmem:[%s721] sm:$0xff]
      %v723 = vld [vmem:[%s721 + $0x8] sm:$0xff]
      %v724 = vld [vmem:[%s721 + $0x10] sm:$0xff]
      %v725 = vld [vmem:[%s721 + $0x18] sm:$0xff]
      %v726 = vld [vmem:[%s721 + $0x20] sm:$0xff]
      %v727 = vld [vmem:[%s721 + $0x28] sm:$0xff]
      %v728 = vld [vmem:[%s721 + $0x30] sm:$0xff]
      %v729 = vld [vmem:[%s721 + $0x38] sm:$0xff]
      %v730 = vld [vmem:[%s721 + $0x40] sm:$0xff]
      %v731 = vld [vmem:[%s721 + $0x48] sm:$0xff]
      %v732 = vld [vmem:[%s721 + $0x50] sm:$0xff]
      %v733 = vld [vmem:[%s721 + $0x58] sm:$0xff]
      %v734 = vld [vmem:[%s721 + $0x60] sm:$0xff]
      %v735 = vld [vmem:[%s721 + $0x68] sm:$0xff]
      %v736 = vld [vmem:[%s721 + $0x70] sm:$0xff]
      %v737 = vld [vmem:[%s721 + $0x78] sm:$0xff]
      %v738 = vld [vmem:[%s721 + $0x80] sm:$0xff]
      %v739 = vld [vmem:[%s721 + $0x88] sm:$0xff]
      %v740 = vld [vmem:[%s721 + $0x90] sm:$0xff]
      %v741 = vld [vmem:[%s721 + $0x98] sm:$0xff]
      %v742 = vld [vmem:[%s721 + $0xa0] sm:$0xff]
      %v743 = vld [vmem:[%s721 + $0xa8] sm:$0xff]
      %v744 = vld [vmem:[%s721 + $0xb0] sm:$0xff]
      %v745 = vld [vmem:[%s721 + $0xb8] sm:$0xff]
      %v746 = vld [vmem:[%s721 + $0xc0] sm:$0xff]
      %v747 = vld [vmem:[%s721 + $0xc8] sm:$0xff]
      %v748 = vld [vmem:[%s721 + $0xd0] sm:$0xff]
      %v749 = vld [vmem:[%s721 + $0xd8] sm:$0xff]
      %v750 = vld [vmem:[%s721 + $0xe0] sm:$0xff]
      %v751 = vld [vmem:[%s721 + $0xe8] sm:$0xff]
      %v752 = vld [vmem:[%s721 + $0xf0] sm:$0xff]
      %v753 = vld [vmem:[%s721 + $0xf8] sm:$0xff]
      %v754 = vld [vmem:[%s721 + $0x100] sm:$0xff]
      %v755 = vld [vmem:[%s721 + $0x108] sm:$0xff]
      %v756 = vld [vmem:[%s721 + $0x110] sm:$0xff]
      %v757 = vld [vmem:[%s721 + $0x118] sm:$0xff]
      %v758 = vld [vmem:[%s721 + $0x120] sm:$0xff]
      %v759 = vld [vmem:[%s721 + $0x128] sm:$0xff]
      %v760 = vld [vmem:[%s721 + $0x130] sm:$0xff]
      %v761 = vld [vmem:[%s721 + $0x138] sm:$0xff]
      %v762 = vld [vmem:[%s721 + $0x140] sm:$0xff]
      %v763 = vld [vmem:[%s721 + $0x148] sm:$0xff]
      %v764 = vld [vmem:[%s721 + $0x150] sm:$0xff]
      %v765 = vld [vmem:[%s721 + $0x158] sm:$0xff]
      %v766 = vld [vmem:[%s721 + $0x160] sm:$0xff]
      %v767 = vld [vmem:[%s721 + $0x168] sm:$0xff]
      %v768 = vld [vmem:[%s721 + $0x170] sm:$0xff]
      %v769 = vld [vmem:[%s721 + $0x178] sm:$0xff]
      %v770 = vld [vmem:[%s721 + $0x180] sm:$0xff]
      %v771 = vld [vmem:[%s721 + $0x188] sm:$0xff]
      %v772 = vld [vmem:[%s721 + $0x190] sm:$0xff]
      %v773 = vld [vmem:[%s721 + $0x198] sm:$0xff]
      %v774 = vld [vmem:[%s721 + $0x1a0] sm:$0xff]
      %v775 = vld [vmem:[%s721 + $0x1a8] sm:$0xff]
      %v776 = vld [vmem:[%s721 + $0x1b0] sm:$0xff]
      %v777 = vld [vmem:[%s721 + $0x1b8] sm:$0xff]
      %v778 = vld [vmem:[%s721 + $0x1c0] sm:$0xff]
      %v779 = vld [vmem:[%s721 + $0x1c8] sm:$0xff]
      %v780 = vld [vmem:[%s721 + $0x1d0] sm:$0xff]
      %v781 = vld [vmem:[%s721 + $0x1d8] sm:$0xff]
      %v782 = vld [vmem:[%s721 + $0x1e0] sm:$0xff]
      %v783 = vld [vmem:[%s721 + $0x1e8] sm:$0xff]
      %v784 = vld [vmem:[%s721 + $0x1f0] sm:$0xff]
      %v785 = vld [vmem:[%s721 + $0x1f8] sm:$0xff]
      %v786 = vld [vmem:[%s721 + $0x200] sm:$0xff]
      %v787 = vld [vmem:[%s721 + $0x208] sm:$0xff]
      %v788 = vld [vmem:[%s721 + $0x210] sm:$0xff]
      %v789 = vld [vmem:[%s721 + $0x218] sm:$0xff]
      %v790 = vld [vmem:[%s721 + $0x220] sm:$0xff]
      %v791 = vld [vmem:[%s721 + $0x228] sm:$0xff]
      %v792 = vld [vmem:[%s721 + $0x230] sm:$0xff]
      %v793 = vld [vmem:[%s721 + $0x238] sm:$0xff]
      %v794 = vld [vmem:[%s721 + $0x240] sm:$0xff]
      %v795 = vld [vmem:[%s721 + $0x248] sm:$0xff]
      %v796 = vld [vmem:[%s721 + $0x250] sm:$0xff]
      %v797 = vld [vmem:[%s721 + $0x258] sm:$0xff]
      %v798 = vld [vmem:[%s721 + $0x260] sm:$0xff]
      %v799 = vld [vmem:[%s721 + $0x268] sm:$0xff]
      %v800 = vld [vmem:[%s721 + $0x270] sm:$0xff]
      %v801 = vld [vmem:[%s721 + $0x278] sm:$0xff]
      %v802 = vld [vmem:[%s721 + $0x280] sm:$0xff]
      %v803 = vld [vmem:[%s721 + $0x288] sm:$0xff]
      %v804 = vld [vmem:[%s721 + $0x290] sm:$0xff]
      %v805 = vld [vmem:[%s721 + $0x298] sm:$0xff]
      %v806 = vld [vmem:[%s721 + $0x2a0] sm:$0xff]
      %v807 = vld [vmem:[%s721 + $0x2a8] sm:$0xff]
      %v808 = vld [vmem:[%s721 + $0x2b0] sm:$0xff]
      %v809 = vld [vmem:[%s721 + $0x2b8] sm:$0xff]
      %v810 = vld [vmem:[%s721 + $0x2c0] sm:$0xff]
      %v811 = vld [vmem:[%s721 + $0x2c8] sm:$0xff]
      %v812 = vld [vmem:[%s721 + $0x2d0] sm:$0xff]
      %v813 = vld [vmem:[%s721 + $0x2d8] sm:$0xff]
      %v814 = vld [vmem:[%s721 + $0x2e0] sm:$0xff]
      %v815 = vld [vmem:[%s721 + $0x2e8] sm:$0xff]
      %v816 = vld [vmem:[%s721 + $0x2f0] sm:$0xff]
      %v817 = vld [vmem:[%s721 + $0x2f8] sm:$0xff]
      %v818 = vld [vmem:[%s721 + $0x300] sm:$0xff]
      %v819 = vld [vmem:[%s721 + $0x308] sm:$0xff]
      %v820 = vld [vmem:[%s721 + $0x310] sm:$0xff]
      %v821 = vld [vmem:[%s721 + $0x318] sm:$0xff]
      %v822 = vld [vmem:[%s721 + $0x320] sm:$0xff]
      %v823 = vld [vmem:[%s721 + $0x328] sm:$0xff]
      %v824 = vld [vmem:[%s721 + $0x330] sm:$0xff]
      %v825 = vld [vmem:[%s721 + $0x338] sm:$0xff]
      %v826 = vld [vmem:[%s721 + $0x340] sm:$0xff]
      %v827 = vld [vmem:[%s721 + $0x348] sm:$0xff]
      %v828 = vld [vmem:[%s721 + $0x350] sm:$0xff]
      %v829 = vld [vmem:[%s721 + $0x358] sm:$0xff]
      %v830 = vld [vmem:[%s721 + $0x360] sm:$0xff]
      %v831 = vld [vmem:[%s721 + $0x368] sm:$0xff]
      %v832 = vld [vmem:[%s721 + $0x370] sm:$0xff]
      %v833 = vld [vmem:[%s721 + $0x378] sm:$0xff]
      %v834 = vld [vmem:[%s721 + $0x380] sm:$0xff]
      %v835 = vld [vmem:[%s721 + $0x388] sm:$0xff]
      %v836 = vld [vmem:[%s721 + $0x390] sm:$0xff]
      %v837 = vld [vmem:[%s721 + $0x398] sm:$0xff]
      %v838 = vld [vmem:[%s721 + $0x3a0] sm:$0xff]
      %v839 = vld [vmem:[%s721 + $0x3a8] sm:$0xff]
      %v840 = vld [vmem:[%s721 + $0x3b0] sm:$0xff]
      %v841 = vld [vmem:[%s721 + $0x3b8] sm:$0xff]
      %v842 = vld [vmem:[%s721 + $0x3c0] sm:$0xff]
      %v843 = vld [vmem:[%s721 + $0x3c8] sm:$0xff]
      %v844 = vld [vmem:[%s721 + $0x3d0] sm:$0xff]
      %v845 = vld [vmem:[%s721 + $0x3d8] sm:$0xff]
      %v846 = vld [vmem:[%s721 + $0x3e0] sm:$0xff]
      %v847 = vld [vmem:[%s721 + $0x3e8] sm:$0xff]
      %v848 = vld [vmem:[%s721 + $0x3f0] sm:$0xff]
      %v849 = vld [vmem:[%s721 + $0x3f8] sm:$0xff]
      %850 = vmatprep.subr.mxu0 0.0
      %851 = vmatpush1.msra.mxu0 %v737
      %852 = vmatprep.subr.mxu0 0.0
      %853 = vmatpush1.msra.mxu0 %v736
      %854 = vmatprep.subr.mxu0 0.0
      %855 = vmatpush1.msra.mxu0 %v735
      %856 = vmatprep.subr.mxu0 0.0
      %857 = vmatpush1.msra.mxu0 %v734
      %858 = vmatprep.subr.mxu0 0.0
      %859 = vmatpush1.msra.mxu0 %v733
      %860 = vmatprep.subr.mxu0 0.0
      %861 = vmatpush1.msra.mxu0 %v732
      %862 = vmatprep.subr.mxu0 0.0
      %863 = vmatpush1.msra.mxu0 %v731
      %864 = vmatprep.subr.mxu0 0.0
      %865 = vmatpush1.msra.mxu0 %v730
      %866 = vmatprep.subr.mxu0 0.0
      %867 = vmatpush1.msra.mxu0 %v729
      %868 = vmatprep.subr.mxu0 0.0
      %869 = vmatpush1.msra.mxu0 %v728
      %870 = vmatprep.subr.mxu0 0.0
      %871 = vmatpush1.msra.mxu0 %v727
      %872 = vmatprep.subr.mxu0 0.0
      %873 = vmatpush1.msra.mxu0 %v726
      %874 = vmatprep.subr.mxu0 0.0
      %875 = vmatpush1.msra.mxu0 %v725
      %876 = vmatprep.subr.mxu0 0.0
      %877 = vmatpush1.msra.mxu0 %v724
      %878 = vmatprep.subr.mxu0 0.0
      %879 = vmatpush1.msra.mxu0 %v723
      %880 = vmatprep.subr.mxu0 0.0
      %881 = vmatpush1.msra.mxu0 %v722
      %882 = vmatprep.subr.mxu0 0.0
      %883 = vmatpush2.msra.mxu0 %v753
      %884 = vmatprep.subr.mxu0 0.0
      %885 = vmatpush2.msra.mxu0 %v752
      %886 = vmatprep.subr.mxu0 0.0
      %887 = vmatpush2.msra.mxu0 %v751
      %888 = vmatprep.subr.mxu0 0.0
      %889 = vmatpush2.msra.mxu0 %v750
      %890 = vmatprep.subr.mxu0 0.0
      %891 = vmatpush2.msra.mxu0 %v749
      %892 = vmatprep.subr.mxu0 0.0
      %893 = vmatpush2.msra.mxu0 %v748
      %894 = vmatprep.subr.mxu0 0.0
      %895 = vmatpush2.msra.mxu0 %v747
      %896 = vmatprep.subr.mxu0 0.0
      %897 = vmatpush2.msra.mxu0 %v746
      %898 = vmatprep.subr.mxu0 0.0
      %899 = vmatpush2.msra.mxu0 %v745
      %900 = vmatprep.subr.mxu0 0.0
      %901 = vmatpush2.msra.mxu0 %v744
      %902 = vmatprep.subr.mxu0 0.0
      %903 = vmatpush2.msra.mxu0 %v743
      %904 = vmatprep.subr.mxu0 0.0
      %905 = vmatpush2.msra.mxu0 %v742
      %906 = vmatprep.subr.mxu0 0.0
      %907 = vmatpush2.msra.mxu0 %v741
      %908 = vmatprep.subr.mxu0 0.0
      %909 = vmatpush2.msra.mxu0 %v740
      %910 = vmatprep.subr.mxu0 0.0
      %911 = vmatpush2.msra.mxu0 %v739
      %912 = vmatprep.subr.mxu0 0.0
      %913 = vmatpush2.msra.mxu0 %v738
      %914 = vmatprep.mubr.f32.mxu0 %v690
      %915 = vmatmul.mubr.f32.gmra.mxu0 %v689
      %v916 = vpop.f32.mrf.mxu0
      %v917 = vadd.f32 0.0, %v916
      %v918 = vpop.f32.mrf.mxu0
      %919 = vmatprep.mubr.f32.mxu0 %v698
      %920 = vmatmul.mubr.f32.gmra.mxu0 %v697
      %v921 = vpop.f32.mrf.mxu0
      %v922 = vadd.f32 0.0, %v921
      %v923 = vpop.f32.mrf.mxu0
      %924 = vmatprep.mubr.f32.mxu0 %v706
      %925 = vmatmul.mubr.f32.gmra.mxu0 %v705
      %v926 = vpop.f32.mrf.mxu0
      %v927 = vadd.f32 0.0, %v926
      %v928 = vpop.f32.mrf.mxu0
      %929 = vmatprep.mubr.f32.mxu0 %v714
      %930 = vmatmul.mubr.f32.gmra.mxu0 %v713
      %v931 = vpop.f32.mrf.mxu0
      %v932 = vadd.f32 0.0, %v931
      %v933 = vpop.f32.mrf.mxu0
      %934 = vdwg.mxu0
      %935 = vmatprep.subr.mxu0 0.0
      %936 = vmatpush1.msra.mxu0 %v769
      %937 = vmatprep.subr.mxu0 0.0
      %938 = vmatpush1.msra.mxu0 %v768
      %939 = vmatprep.subr.mxu0 0.0
      %940 = vmatpush1.msra.mxu0 %v767
      %941 = vmatprep.subr.mxu0 0.0
      %942 = vmatpush1.msra.mxu0 %v766
      %943 = vmatprep.subr.mxu0 0.0
      %944 = vmatpush1.msra.mxu0 %v765
      %945 = vmatprep.subr.mxu0 0.0
      %946 = vmatpush1.msra.mxu0 %v764
      %947 = vmatprep.subr.mxu0 0.0
      %948 = vmatpush1.msra.mxu0 %v763
      %949 = vmatprep.subr.mxu0 0.0
      %950 = vmatpush1.msra.mxu0 %v762
      %951 = vmatprep.subr.mxu0 0.0
      %952 = vmatpush1.msra.mxu0 %v761
      %953 = vmatprep.subr.mxu0 0.0
      %954 = vmatpush1.msra.mxu0 %v760
      %955 = vmatprep.subr.mxu0 0.0
      %956 = vmatpush1.msra.mxu0 %v759
      %957 = vmatprep.subr.mxu0 0.0
      %958 = vmatpush1.msra.mxu0 %v758
      %959 = vmatprep.subr.mxu0 0.0
      %960 = vmatpush1.msra.mxu0 %v757
      %961 = vmatprep.subr.mxu0 0.0
      %962 = vmatpush1.msra.mxu0 %v756
      %963 = vmatprep.subr.mxu0 0.0
      %964 = vmatpush1.msra.mxu0 %v755
      %965 = vmatprep.subr.mxu0 0.0
      %966 = vmatpush1.msra.mxu0 %v754
      %967 = vmatprep.subr.mxu0 0.0
      %968 = vmatpush2.msra.mxu0 %v785
      %969 = vmatprep.subr.mxu0 0.0
      %970 = vmatpush2.msra.mxu0 %v784
      %971 = vmatprep.subr.mxu0 0.0
      %972 = vmatpush2.msra.mxu0 %v783
      %973 = vmatprep.subr.mxu0 0.0
      %974 = vmatpush2.msra.mxu0 %v782
      %975 = vmatprep.subr.mxu0 0.0
      %976 = vmatpush2.msra.mxu0 %v781
      %977 = vmatprep.subr.mxu0 0.0
      %978 = vmatpush2.msra.mxu0 %v780
      %979 = vmatprep.subr.mxu0 0.0
      %980 = vmatpush2.msra.mxu0 %v779
      %981 = vmatprep.subr.mxu0 0.0
      %982 = vmatpush2.msra.mxu0 %v778
      %983 = vmatprep.subr.mxu0 0.0
      %984 = vmatpush2.msra.mxu0 %v777
      %985 = vmatprep.subr.mxu0 0.0
      %986 = vmatpush2.msra.mxu0 %v776
      %987 = vmatprep.subr.mxu0 0.0
      %988 = vmatpush2.msra.mxu0 %v775
      %989 = vmatprep.subr.mxu0 0.0
      %990 = vmatpush2.msra.mxu0 %v774
      %991 = vmatprep.subr.mxu0 0.0
      %992 = vmatpush2.msra.mxu0 %v773
      %993 = vmatprep.subr.mxu0 0.0
      %994 = vmatpush2.msra.mxu0 %v772
      %995 = vmatprep.subr.mxu0 0.0
      %996 = vmatpush2.msra.mxu0 %v771
      %997 = vmatprep.subr.mxu0 0.0
      %998 = vmatpush2.msra.mxu0 %v770
      %999 = vmatprep.mubr.f32.mxu0 %v692
      %1000 = vmatmul.mubr.f32.gmra.mxu0 %v691
      %v1001 = vpop.f32.mrf.mxu0
      %v1002 = vadd.f32 %v917, %v1001
      %v1003 = vpop.f32.mrf.mxu0
      %1004 = vmatprep.mubr.f32.mxu0 %v700
      %1005 = vmatmul.mubr.f32.gmra.mxu0 %v699
      %v1006 = vpop.f32.mrf.mxu0
      %v1007 = vadd.f32 %v922, %v1006
      %v1008 = vpop.f32.mrf.mxu0
      %1009 = vmatprep.mubr.f32.mxu0 %v708
      %1010 = vmatmul.mubr.f32.gmra.mxu0 %v707
      %v1011 = vpop.f32.mrf.mxu0
      %v1012 = vadd.f32 %v927, %v1011
      %v1013 = vpop.f32.mrf.mxu0
      %1014 = vmatprep.mubr.f32.mxu0 %v716
      %1015 = vmatmul.mubr.f32.gmra.mxu0 %v715
      %v1016 = vpop.f32.mrf.mxu0
      %v1017 = vadd.f32 %v932, %v1016
      %v1018 = vpop.f32.mrf.mxu0
      %1019 = vdwg.mxu0
      %1020 = vmatprep.subr.mxu0 0.0
      %1021 = vmatpush1.msra.mxu0 %v801
      %1022 = vmatprep.subr.mxu0 0.0
      %1023 = vmatpush1.msra.mxu0 %v800
      %1024 = vmatprep.subr.mxu0 0.0
      %1025 = vmatpush1.msra.mxu0 %v799
      %1026 = vmatprep.subr.mxu0 0.0
      %1027 = vmatpush1.msra.mxu0 %v798
      %1028 = vmatprep.subr.mxu0 0.0
      %1029 = vmatpush1.msra.mxu0 %v797
      %1030 = vmatprep.subr.mxu0 0.0
      %1031 = vmatpush1.msra.mxu0 %v796
      %1032 = vmatprep.subr.mxu0 0.0
      %1033 = vmatpush1.msra.mxu0 %v795
      %1034 = vmatprep.subr.mxu0 0.0
      %1035 = vmatpush1.msra.mxu0 %v794
      %1036 = vmatprep.subr.mxu0 0.0
      %1037 = vmatpush1.msra.mxu0 %v793
      %1038 = vmatprep.subr.mxu0 0.0
      %1039 = vmatpush1.msra.mxu0 %v792
      %1040 = vmatprep.subr.mxu0 0.0
      %1041 = vmatpush1.msra.mxu0 %v791
      %1042 = vmatprep.subr.mxu0 0.0
      %1043 = vmatpush1.msra.mxu0 %v790
      %1044 = vmatprep.subr.mxu0 0.0
      %1045 = vmatpush1.msra.mxu0 %v789
      %1046 = vmatprep.subr.mxu0 0.0
      %1047 = vmatpush1.msra.mxu0 %v788
      %1048 = vmatprep.subr.mxu0 0.0
      %1049 = vmatpush1.msra.mxu0 %v787
      %1050 = vmatprep.subr.mxu0 0.0
      %1051 = vmatpush1.msra.mxu0 %v786
      %1052 = vmatprep.subr.mxu0 0.0
      %1053 = vmatpush2.msra.mxu0 %v817
      %1054 = vmatprep.subr.mxu0 0.0
      %1055 = vmatpush2.msra.mxu0 %v816
      %1056 = vmatprep.subr.mxu0 0.0
      %1057 = vmatpush2.msra.mxu0 %v815
      %1058 = vmatprep.subr.mxu0 0.0
      %1059 = vmatpush2.msra.mxu0 %v814
      %1060 = vmatprep.subr.mxu0 0.0
      %1061 = vmatpush2.msra.mxu0 %v813
      %1062 = vmatprep.subr.mxu0 0.0
      %1063 = vmatpush2.msra.mxu0 %v812
      %1064 = vmatprep.subr.mxu0 0.0
      %1065 = vmatpush2.msra.mxu0 %v811
      %1066 = vmatprep.subr.mxu0 0.0
      %1067 = vmatpush2.msra.mxu0 %v810
      %1068 = vmatprep.subr.mxu0 0.0
      %1069 = vmatpush2.msra.mxu0 %v809
      %1070 = vmatprep.subr.mxu0 0.0
      %1071 = vmatpush2.msra.mxu0 %v808
      %1072 = vmatprep.subr.mxu0 0.0
      %1073 = vmatpush2.msra.mxu0 %v807
      %1074 = vmatprep.subr.mxu0 0.0
      %1075 = vmatpush2.msra.mxu0 %v806
      %1076 = vmatprep.subr.mxu0 0.0
      %1077 = vmatpush2.msra.mxu0 %v805
      %1078 = vmatprep.subr.mxu0 0.0
      %1079 = vmatpush2.msra.mxu0 %v804
      %1080 = vmatprep.subr.mxu0 0.0
      %1081 = vmatpush2.msra.mxu0 %v803
      %1082 = vmatprep.subr.mxu0 0.0
      %1083 = vmatpush2.msra.mxu0 %v802
      %1084 = vmatprep.mubr.f32.mxu0 %v694
      %1085 = vmatmul.mubr.f32.gmra.mxu0 %v693
      %v1086 = vpop.f32.mrf.mxu0
      %v1087 = vadd.f32 %v1002, %v1086
      %v1088 = vpop.f32.mrf.mxu0
      %1089 = vmatprep.mubr.f32.mxu0 %v702
      %1090 = vmatmul.mubr.f32.gmra.mxu0 %v701
      %v1091 = vpop.f32.mrf.mxu0
      %v1092 = vadd.f32 %v1007, %v1091
      %v1093 = vpop.f32.mrf.mxu0
      %1094 = vmatprep.mubr.f32.mxu0 %v710
      %1095 = vmatmul.mubr.f32.gmra.mxu0 %v709
      %v1096 = vpop.f32.mrf.mxu0
      %v1097 = vadd.f32 %v1012, %v1096
      %v1098 = vpop.f32.mrf.mxu0
      %1099 = vmatprep.mubr.f32.mxu0 %v718
      %1100 = vmatmul.mubr.f32.gmra.mxu0 %v717
      %v1101 = vpop.f32.mrf.mxu0
      %v1102 = vadd.f32 %v1017, %v1101
      %v1103 = vpop.f32.mrf.mxu0
      %1104 = vdwg.mxu0
      %1105 = vmatprep.subr.mxu0 0.0
      %1106 = vmatpush1.msra.mxu0 %v833
      %1107 = vmatprep.subr.mxu0 0.0
      %1108 = vmatpush1.msra.mxu0 %v832
      %1109 = vmatprep.subr.mxu0 0.0
      %1110 = vmatpush1.msra.mxu0 %v831
      %1111 = vmatprep.subr.mxu0 0.0
      %1112 = vmatpush1.msra.mxu0 %v830
      %1113 = vmatprep.subr.mxu0 0.0
      %1114 = vmatpush1.msra.mxu0 %v829
      %1115 = vmatprep.subr.mxu0 0.0
      %1116 = vmatpush1.msra.mxu0 %v828
      %1117 = vmatprep.subr.mxu0 0.0
      %1118 = vmatpush1.msra.mxu0 %v827
      %1119 = vmatprep.subr.mxu0 0.0
      %1120 = vmatpush1.msra.mxu0 %v826
      %1121 = vmatprep.subr.mxu0 0.0
      %1122 = vmatpush1.msra.mxu0 %v825
      %1123 = vmatprep.subr.mxu0 0.0
      %1124 = vmatpush1.msra.mxu0 %v824
      %1125 = vmatprep.subr.mxu0 0.0
      %1126 = vmatpush1.msra.mxu0 %v823
      %1127 = vmatprep.subr.mxu0 0.0
      %1128 = vmatpush1.msra.mxu0 %v822
      %1129 = vmatprep.subr.mxu0 0.0
      %1130 = vmatpush1.msra.mxu0 %v821
      %1131 = vmatprep.subr.mxu0 0.0
      %1132 = vmatpush1.msra.mxu0 %v820
      %1133 = vmatprep.subr.mxu0 0.0
      %1134 = vmatpush1.msra.mxu0 %v819
      %1135 = vmatprep.subr.mxu0 0.0
      %1136 = vmatpush1.msra.mxu0 %v818
      %1137 = vmatprep.subr.mxu0 0.0
      %1138 = vmatpush2.msra.mxu0 %v849
      %1139 = vmatprep.subr.mxu0 0.0
      %1140 = vmatpush2.msra.mxu0 %v848
      %1141 = vmatprep.subr.mxu0 0.0
      %1142 = vmatpush2.msra.mxu0 %v847
      %1143 = vmatprep.subr.mxu0 0.0
      %1144 = vmatpush2.msra.mxu0 %v846
      %1145 = vmatprep.subr.mxu0 0.0
      %1146 = vmatpush2.msra.mxu0 %v845
      %1147 = vmatprep.subr.mxu0 0.0
      %1148 = vmatpush2.msra.mxu0 %v844
      %1149 = vmatprep.subr.mxu0 0.0
      %1150 = vmatpush2.msra.mxu0 %v843
      %1151 = vmatprep.subr.mxu0 0.0
      %1152 = vmatpush2.msra.mxu0 %v842
      %1153 = vmatprep.subr.mxu0 0.0
      %1154 = vmatpush2.msra.mxu0 %v841
      %1155 = vmatprep.subr.mxu0 0.0
      %1156 = vmatpush2.msra.mxu0 %v840
      %1157 = vmatprep.subr.mxu0 0.0
      %1158 = vmatpush2.msra.mxu0 %v839
      %1159 = vmatprep.subr.mxu0 0.0
      %1160 = vmatpush2.msra.mxu0 %v838
      %1161 = vmatprep.subr.mxu0 0.0
      %1162 = vmatpush2.msra.mxu0 %v837
      %1163 = vmatprep.subr.mxu0 0.0
      %1164 = vmatpush2.msra.mxu0 %v836
      %1165 = vmatprep.subr.mxu0 0.0
      %1166 = vmatpush2.msra.mxu0 %v835
      %1167 = vmatprep.subr.mxu0 0.0
      %1168 = vmatpush2.msra.mxu0 %v834
      %1169 = vmatprep.mubr.f32.mxu0 %v696
      %1170 = vmatmul.mubr.f32.gmra.mxu0 %v695
      %v1171 = vpop.f32.mrf.mxu0
      %v1172 = vadd.f32 %v1087, %v1171
      %v1173 = vpop.f32.mrf.mxu0
      %1174 = vmatprep.mubr.f32.mxu0 %v704
      %1175 = vmatmul.mubr.f32.gmra.mxu0 %v703
      %v1176 = vpop.f32.mrf.mxu0
      %v1177 = vadd.f32 %v1092, %v1176
      %v1178 = vpop.f32.mrf.mxu0
      %1179 = vmatprep.mubr.f32.mxu0 %v712
      %1180 = vmatmul.mubr.f32.gmra.mxu0 %v711
      %v1181 = vpop.f32.mrf.mxu0
      %v1182 = vadd.f32 %v1097, %v1181
      %v1183 = vpop.f32.mrf.mxu0
      %1184 = vmatprep.mubr.f32.mxu0 %v720
      %1185 = vmatmul.mubr.f32.gmra.mxu0 %v719
      %v1186 = vpop.f32.mrf.mxu0
      %v1187 = vadd.f32 %v1102, %v1186
      %v1188 = vpop.f32.mrf.mxu0
      %1189 = vdwg.mxu0
      %v1190 = vadd.f32 %v685, %v1172
      %v1191 = vadd.f32 %v686, %v1177
      %v1192 = vadd.f32 %v687, %v1182
      %v1193 = vadd.f32 %v688, %v1187
      %1194 = vst [vmem:[#allocation2] sm:$0xff] %v1190
      %1195 = vst [vmem:[#allocation2 + $0x8] sm:$0xff] %v1191
      %1196 = vst [vmem:[#allocation2 + $0x10] sm:$0xff] %v1192
      %1197 = vst [vmem:[#allocation2 + $0x18] sm:$0xff] %v1193
      %v1198 = vld [vmem:[#allocation2] sm:$0xff]
      %v1199 = vld [vmem:[#allocation2 + $0x8] sm:$0xff]
      %v1200 = vld [vmem:[#allocation2 + $0x10] sm:$0xff]
      %v1201 = vld [vmem:[#allocation2 + $0x18] sm:$0xff]
      %v1202 = vlaneseq
      %v1203 = vshrl.u32 %v1202, 7
      %v1204 = vadd.s32 %v1203, 8
      %v1205 = vadd.s32 %v1203, 16
      %v1206 = vadd.s32 %v1203, 24
      %vm1207 = vcmp.lt.s32.totalorder %v1203, 0
      %v1208 = vsub.s32 0, %v1203
      %v1209 = vsel %vm1207, %v1208, %v1203
      %v1210 = vshrl.u32 %v1209, 3
      %v1211 = vand.u32 %v1209, 7
      %v1212 = vsub.s32 0, %v1211
      %v1213 = vsel %vm1207, %v1212, %v1211
      %vm1214 = vcmp.lt.s32.totalorder %v1204, 0
      %v1215 = vsub.s32 0, %v1204
      %v1216 = vsel %vm1214, %v1215, %v1204
      %v1217 = vshrl.u32 %v1216, 3
      %v1218 = vand.u32 %v1216, 7
      %v1219 = vsub.s32 0, %v1218
      %v1220 = vsel %vm1214, %v1219, %v1218
      %vm1221 = vcmp.lt.s32.totalorder %v1205, 0
      %v1222 = vsub.s32 0, %v1205
      %v1223 = vsel %vm1221, %v1222, %v1205
      %v1224 = vshrl.u32 %v1223, 3
      %v1225 = vand.u32 %v1223, 7
      %v1226 = vsub.s32 0, %v1225
      %v1227 = vsel %vm1221, %v1226, %v1225
      %vm1228 = vcmp.lt.s32.totalorder %v1206, 0
      %v1229 = vsub.s32 0, %v1206
      %v1230 = vsel %vm1228, %v1229, %v1206
      %v1231 = vshrl.u32 %v1230, 3
      %v1232 = vand.u32 %v1230, 7
      %v1233 = vsub.s32 0, %v1232
      %v1234 = vsel %vm1228, %v1233, %v1232
      %vm1235 = vcmp.ne.s32.totalorder %v1213, 0
      %vm1236 = vcmp.ne.s32.totalorder %v1220, 0
      %vm1237 = vcmp.ne.s32.totalorder %v1227, 0
      %vm1238 = vcmp.ne.s32.totalorder %v1234, 0
      %vm1239 = vcmp.lt.s32.totalorder %v1213, 0
      %vm1240 = vcmp.lt.s32.totalorder %v1220, 0
      %vm1241 = vcmp.lt.s32.totalorder %v1227, 0
      %vm1242 = vcmp.lt.s32.totalorder %v1234, 0
      %vm1243 = vmand %vm1239, %vm1235
      %vm1244 = vmand %vm1240, %vm1236
      %vm1245 = vmand %vm1241, %vm1237
      %vm1246 = vmand %vm1242, %vm1238
      %v1247 = vadd.s32 %v1213, 8
      %v1248 = vadd.s32 %v1220, 8
      %v1249 = vadd.s32 %v1227, 8
      %v1250 = vadd.s32 %v1234, 8
      %v1251 = vsel %vm1243, %v1247, %v1213
      %v1252 = vsel %vm1244, %v1248, %v1220
      %v1253 = vsel %vm1245, %v1249, %v1227
      %v1254 = vsel %vm1246, %v1250, %v1234
      %vm1255 = vcmp.lt.s32.totalorder %v1251, 4
      %vm1256 = vcmp.lt.s32.totalorder %v1252, 4
      %vm1257 = vcmp.lt.s32.totalorder %v1253, 4
      %vm1258 = vcmp.lt.s32.totalorder %v1254, 4
      %v1259 = vsel %vm1255, 1, 0
      %v1260 = vsel %vm1256, 1, 0
      %v1261 = vsel %vm1257, 1, 0
      %v1262 = vsel %vm1258, 1, 0
      %v1263 = vcvt.s32.f32 %v1259
      %v1264 = vcvt.s32.f32 %v1260
      %v1265 = vcvt.s32.f32 %v1261
      %v1266 = vcvt.s32.f32 %v1262
      %v1267 = vmul.f32 %v1198, %v1263
      %v1268 = vmul.f32 %v1199, %v1264
      %v1269 = vmul.f32 %v1200, %v1265
      %v1270 = vmul.f32 %v1201, %v1266
      %v1271 = vadd.f32 %v1267, %v1268
      %v1272 = vadd.f32 %v1271, %v1269
      %v1273 = vadd.f32 %v1272, %v1270
      %v1274 = vrot.slane %v1273, 4
      %v1275 = vadd.f32 %v1273, %v1274
      %v1276 = vrot.slane %v1275, 2
      %v1277 = vadd.f32 %v1275, %v1276
      %v1278 = vrot.slane %v1277, 1
      %v1279 = vadd.f32 %v1277, %v1278
      %v1280 = vmul.f32 %v1279, 0.0625
      %v1281 = vmul.f32 %v1267, %v1267
      %v1282 = vmul.f32 %v1268, %v1268
      %v1283 = vmul.f32 %v1269, %v1269
      %v1284 = vmul.f32 %v1270, %v1270
      %v1285 = vadd.f32 %v1281, %v1282
      %v1286 = vadd.f32 %v1285, %v1283
      %v1287 = vadd.f32 %v1286, %v1284
      %v1288 = vrot.slane %v1287, 4
      %v1289 = vadd.f32 %v1287, %v1288
      %v1290 = vrot.slane %v1289, 2
      %v1291 = vadd.f32 %v1289, %v1290
      %v1292 = vrot.slane %v1291, 1
      %v1293 = vadd.f32 %v1291, %v1292
      %v1294 = vmul.f32 %v1293, 0.0625
      %v1295 = vmul.f32 %v1280, %v1280
      %v1296 = vsub.f32 %v1294, %v1295
      %v1297 = vmax.f32 %v1296, 0.0
      %v1298 = vsub.f32 %v1267, %v1280
      %v1299 = vsub.f32 %v1268, %v1280
      %v1300 = vsub.f32 %v1269, %v1280
      %v1301 = vsub.f32 %v1270, %v1280
      %v1302 = vadd.f32 %v1297, 1e-05
      %v1303 = vrsqrt.pop %v1302
      %v1304 = vmul.f32 %v1298, %v1303
      %v1305 = vmul.f32 %v1299, %v1303
      %v1306 = vmul.f32 %v1300, %v1303
      %v1307 = vmul.f32 %v1301, %v1303
      %vm1308 = vcmp.ge.f32.partialorder %v1304, 0.0
      %vm1309 = vcmp.ge.f32.partialorder %v1305, 0.0
      %vm1310 = vcmp.ge.f32.partialorder %v1306, 0.0
      %vm1311 = vcmp.ge.f32.partialorder %v1307, 0.0
      %v1312 = vmul.f32 %v1304, 0.2
      %v1313 = vmul.f32 %v1305, 0.2
      %v1314 = vmul.f32 %v1306, 0.2
      %v1315 = vmul.f32 %v1307, 0.2
      %v1316 = vsel %vm1308, %v1304, %v1312
      %v1317 = vsel %vm1309, %v1305, %v1313
      %v1318 = vsel %vm1310, %v1306, %v1314
      %v1319 = vsel %vm1311, %v1307, %v1315
      %1320 = vst [vmem:[%s180] sm:$0xff] %v1316
      %1321 = vst [vmem:[%s180 + $0x8] sm:$0xff] %v1317
      %1322 = vst [vmem:[%s180 + $0x10] sm:$0xff] %v1318
      %1323 = vst [vmem:[%s180 + $0x18] sm:$0xff] %v1319
      %p1324 = scmp.lt.s32.totalorder %s17, 1
      %s1325 = scalar_select %p1324, %s17, 1
      %p1326 = scmp.lt.s32.totalorder %s18, 0
      %s1327 = scalar_select %p1326, %s18, 0
      %s1328 = smul.addr %s1325, 4
      %s1329 = sadd.s32 %s1327, %s1328
      %s1330 = smul.addr %s1329, 8
      %s1331 = scalar_lea.vmem %s2, %s1330
      // Predicated region
      $region29: #{_lambda_.5} parent=27 // pred_check
        %p1332 = pneg %p97
      $region30: #{_lambda_.5} parent=27 // pred_check_branch
        %1334 = sbr.rel (%p1332) target = $region32
      $region31: #{_lambda_.5} parent=27 // pred_region
        _
      $region32: #{_lambda_.5} parent=27 // pred_fallthru
        _
    $region28: #{_lambda_.5} parent=5 // pred_fallthru
      _
    %p1335 = scmp.le.s32.totalorder 2, %s8
    // Predicated region
    $region33: #{_lambda_.5} parent=5 // pred_check
      %p1336 = pneg %p1335
    $region34: #{_lambda_.5} parent=5 // pred_check_branch
      %1338 = sbr.rel (%p1336) target = $region36
    $region35: #{_lambda_.5} parent=5 // pred_region
      %s1339 = ssub.s32 %s8, 2
      // Predicated region
      $region37: #{_lambda_.5} parent=35 // pred_check
        %p1340 = pneg %p103
      $region38: #{_lambda_.5} parent=35 // pred_check_branch
        %1342 = sbr.rel (%p1340) target = $region40
      $region39: #{_lambda_.5} parent=35 // pred_region
        %p1343 = scmp.lt.s32.totalorder %s19, 1
        %s1344 = scalar_select %p1343, %s19, 1
        %p1345 = scmp.lt.s32.totalorder %s20, 0
        %s1346 = scalar_select %p1345, %s20, 0
        %s1347 = smul.addr %s1344, 4
        %s1348 = sadd.s32 %s1346, %s1347
        %s1349 = smul.addr %s1348, 8
        %s1350 = scalar_lea.vmem %s2, %s1349
      $region40: #{_lambda_.5} parent=35 // pred_fallthru
        _
    $region36: #{_lambda_.5} parent=5 // pred_fallthru
      _
  $region6: #{_lambda_.5} parent=0 // loop_footer
    %s12 = sadd.s32 1, %s8
  $region7: #{_lambda_.5} parent=0 // loop_footer_branch
    %7 = sbr.rel target = $region3
  $region8: #{_lambda_.5} parent=0 // loop_exit
    _

// kernel: _lambda_.6
$region0: #{_lambda_.6}
  #allocation0 [shape = 'u32[]', space=smem, size = 0x4, offset = 0x4, fixed_abs, tag = 'smem constant byte address 0x4 - core index']
  #allocation1 [shape = 'u32[144,128]{1,0:T(1,128)}', space=vmem, size = 0x12000, scoped, tag = 'internal scratch']
  #allocation2 [shape = 'f32[16,128]{1,0:T(8,128)}', space=vmem, size = 0x2000, scoped, tag = 'scratch operand']
  %s0 = inlined_call_operand.vmem [shape: f32[2,24,1024], index: 0, kind: input, shape index: {}]
  %s1 = inlined_call_operand.vmem [shape: f32[2,1024,128], index: 1, kind: input, shape index: {}]
  %s2 = inlined_call_operand.vmem [shape: f32[2,16,128], index: 2, kind: output, shape index: {}]
  %s3 = sld [smem:[#allocation0]]
  $region41: #{_lambda_.6} parent=0
    _
  %s5 = ssub.s32 1, %s3
  %s6 = scalar_select 0, %s5, %s3
  loop: start=0, step=1, limit=4
  $region2: #{_lambda_.6} parent=0 // loop_pre_header
    _
  $region3: #{_lambda_.6} parent=0 // loop_header
    %s8 = sphi 0, %s12
    %p9 = scmp.ge.s32.totalorder %s8, 4
    %s15 = sphi 0, %s27
    %s16 = sphi 0, %s23
    %s17 = sphi 0, %s15
    %s18 = sphi 0, %s16
    %s19 = sphi 0, %s17
    %s20 = sphi 0, %s18
    %s30 = sphi 0, %s32
    %s33 = sphi 0, %s30
    %s34 = sphi 0, %s33
    %s50 = sphi 0, %s34
    %s56 = sphi 0, %s58
    %s59 = sphi 0, %s56
    %s60 = sphi 0, %s59
    %s76 = sphi 0, %s60
    %s84 = sphi 0, %s86
    %s87 = sphi 0, %s84
    %s88 = sphi 0, %s87
    %s104 = sphi 0, %s88
  $region4: #{_lambda_.6} parent=0 // loop_header_branch
    %11 = sbr.rel (%p9) target = $region8
  $region5: #{_lambda_.6} parent=0 // loop_body
    %s13 = ssub.s32 %s8, 1
    %s14 = ssub.s32 %s8, 2
    %s21 = sadd.s32 1, %s16
    %p22 = scmp.ge.s32.totalorder %s21, 1
    %s23 = scalar_select %p22, 0, %s21
    %s24 = sadd.s32 1, %s15
    %s25 = scalar_select %p22, %s24, %s15
    %p26 = scmp.ge.s32.totalorder %s25, 2
    %s27 = scalar_select %p26, 0, %s25
    %s28 = ssub.s32 %s15, %s27
    %p29 = scmp.eq.s32.totalorder %s28, 0
    %s31 = sadd.s32 %s30, 1
    %s32 = scalar_select %p29, %s30, %s31
    %p35 = pneg %p29
    %p36 = scmp.eq.s32.totalorder %s8, 1
    %p37 = por %p35, %p36
    %p38 = scmp.ne.s32.totalorder %s30, %s33
    %p39 = scmp.eq.s32.totalorder %s8, 0
    %p40 = por %p38, %p39
    %p41 = scmp.ne.s32.totalorder %s30, %s33
    %p42 = scmp.eq.s32.totalorder %s13, 1
    %p43 = por %p41, %p42
    %p44 = scmp.ne.s32.totalorder %s33, %s34
    %p45 = scmp.eq.s32.totalorder %s13, 0
    %p46 = por %p44, %p45
    %p47 = scmp.ne.s32.totalorder %s33, %s34
    %p48 = scmp.eq.s32.totalorder %s14, 1
    %p49 = por %p47, %p48
    %p51 = scmp.ne.s32.totalorder %s34, %s50
    %p52 = scmp.eq.s32.totalorder %s14, 0
    %p53 = por %p51, %p52
    %s54 = ssub.s32 %s16, %s23
    %p55 = scmp.eq.s32.totalorder %s54, 0
    %s57 = sadd.s32 %s56, 1
    %s58 = scalar_select %p55, %s56, %s57
    %p61 = pneg %p55
    %p62 = scmp.eq.s32.totalorder %s8, 1
    %p63 = por %p61, %p62
    %p64 = scmp.ne.s32.totalorder %s56, %s59
    %p65 = scmp.eq.s32.totalorder %s8, 0
    %p66 = por %p64, %p65
    %p67 = scmp.ne.s32.totalorder %s56, %s59
    %p68 = scmp.eq.s32.totalorder %s13, 1
    %p69 = por %p67, %p68
    %p70 = scmp.ne.s32.totalorder %s59, %s60
    %p71 = scmp.eq.s32.totalorder %s13, 0
    %p72 = por %p70, %p71
    %p73 = scmp.ne.s32.totalorder %s59, %s60
    %p74 = scmp.eq.s32.totalorder %s14, 1
    %p75 = por %p73, %p74
    %p77 = scmp.ne.s32.totalorder %s60, %s76
    %p78 = scmp.eq.s32.totalorder %s14, 0
    %p79 = por %p77, %p78
    %s80 = ssub.s32 %s15, %s27
    %s81 = ssub.s32 %s16, %s23
    %s82 = sor.u32 %s80, %s81
    %p83 = scmp.eq.s32.totalorder %s82, 0
    %s85 = sadd.s32 %s84, 1
    %s86 = scalar_select %p83, %s84, %s85
    %p89 = pneg %p83
    %p90 = scmp.eq.s32.totalorder %s8, 1
    %p91 = por %p89, %p90
    %p92 = scmp.ne.s32.totalorder %s84, %s87
    %p93 = scmp.eq.s32.totalorder %s8, 0
    %p94 = por %p92, %p93
    %p95 = scmp.ne.s32.totalorder %s84, %s87
    %p96 = scmp.eq.s32.totalorder %s13, 1
    %p97 = por %p95, %p96
    %p98 = scmp.ne.s32.totalorder %s87, %s88
    %p99 = scmp.eq.s32.totalorder %s13, 0
    %p100 = por %p98, %p99
    %p101 = scmp.ne.s32.totalorder %s87, %s88
    %p102 = scmp.eq.s32.totalorder %s14, 1
    %p103 = por %p101, %p102
    %p105 = scmp.ne.s32.totalorder %s88, %s104
    %p106 = scmp.eq.s32.totalorder %s14, 0
    %p107 = por %p105, %p106
    %p108 = scmp.le.s32.totalorder 1, %s8
    %p109 = scmp.lt.s32.totalorder %s8, 3
    %p110 = pnand %p108, %p109
    %p111 = pneg %p110
    // Predicated region
    $region9: #{_lambda_.6} parent=5 // pred_check
      _
    $region10: #{_lambda_.6} parent=5 // pred_check_branch
      %113 = sbr.rel (%p110) target = $region12
    $region11: #{_lambda_.6} parent=5 // pred_region
      %s114 = ssub.s32 %s8, 1
      // Predicated region
      $region13: #{_lambda_.6} parent=11 // pred_check
        %p115 = pneg %p72
      $region14: #{_lambda_.6} parent=11 // pred_check_branch
        %117 = sbr.rel (%p115) target = $region16
      $region15: #{_lambda_.6} parent=11 // pred_region
        %p118 = scmp.lt.s32.totalorder %s18, 0
        %s119 = scalar_select %p118, %s18, 0
        %s120 = smul.addr %s119, 8
        %s121 = scalar_lea.vmem %s1, %s120
      $region16: #{_lambda_.6} parent=11 // pred_fallthru
        _
    $region12: #{_lambda_.6} parent=5 // pred_fallthru
      _
    %p122 = scmp.lt.s32.totalorder %s8, 2
    // Predicated region
    $region17: #{_lambda_.6} parent=5 // pred_check
      %p123 = pneg %p122
    $region18: #{_lambda_.6} parent=5 // pred_check_branch
      %125 = sbr.rel (%p123) target = $region20
    $region19: #{_lambda_.6} parent=5 // pred_region
      // Predicated region
      $region21: #{_lambda_.6} parent=19 // pred_check
        %p126 = pneg %p40
      $region22: #{_lambda_.6} parent=19 // pred_check_branch
        %128 = sbr.rel (%p126) target = $region24
      $region23: #{_lambda_.6} parent=19 // pred_region
        %p129 = scmp.lt.s32.totalorder %s15, 1
        %s130 = scalar_select %p129, %s15, 1
        %s131 = smul.addr %s130, 24
        %s132 = smul.addr %s131, 8
        %s133 = scalar_lea.vmem %s0, %s132
      $region24: #{_lambda_.6} parent=19 // pred_fallthru
        _
    $region20: #{_lambda_.6} parent=5 // pred_fallthru
      _
    %p134 = scmp.le.s32.totalorder 1, %s8
    %p135 = scmp.lt.s32.totalorder %s8, 3
    %p136 = pnand %p134, %p135
    %p137 = pneg %p136
    // Predicated region
    $region25: #{_lambda_.6} parent=5 // pred_check
      _
    $region26: #{_lambda_.6} parent=5 // pred_check_branch
      %139 = sbr.rel (%p136) target = $region28
    $region27: #{_lambda_.6} parent=5 // pred_region
      %s140 = ssub.s32 %s8, 1
      %p141 = scmp.lt.s32.totalorder %s17, 1
      %s142 = scalar_select %p141, %s17, 1
      %s143 = smul.addr %s142, 24
      %s144 = smul.addr %s143, 8
      %s145 = scalar_lea.vmem %s0, %s144
      %p146 = pneg %p46
      %p147 = pneg %p43
      %p148 = scmp.lt.s32.totalorder %s18, 0
      %s149 = scalar_select %p148, %s18, 0
      %s150 = smul.addr %s149, 8
      %s151 = scalar_lea.vmem %s1, %s150
      %p152 = pneg %p72
      %p153 = pneg %p69
      %p154 = pneg %p100
      %p155 = pneg %p97
      %p156 = scmp.lt.s32.totalorder %s17, 1
      %s157 = scalar_select %p156, %s17, 1
      %p158 = scmp.lt.s32.totalorder %s18, 0
      %s159 = scalar_select %p158, %s18, 0
      %s160 = smul.addr %s157, 2
      %s161 = sadd.s32 %s159, %s160
      %s162 = smul.addr %s161, 8
      %s163 = scalar_lea.vmem %s2, %s162
      %p164 = scmp.lt.s32.totalorder %s17, 1
      %s165 = scalar_select %p164, %s17, 1
      %s166 = smul.addr %s165, 24
      %s167 = smul.addr %s166, 8
      %s168 = scalar_lea.vmem %s0, %s167
      %p169 = scmp.lt.s32.totalorder %s18, 0
      %s170 = scalar_select %p169, %s18, 0
      %s171 = smul.addr %s170, 8
      %s172 = scalar_lea.vmem %s1, %s171
      %p173 = scmp.lt.s32.totalorder %s17, 1
      %s174 = scalar_select %p173, %s17, 1
      %p175 = scmp.lt.s32.totalorder %s18, 0
      %s176 = scalar_select %p175, %s18, 0
      %s177 = smul.addr %s174, 2
      %s178 = sadd.s32 %s176, %s177
      %s179 = smul.addr %s178, 8
      %s180 = scalar_lea.vmem %s2, %s179
      %v181 = vld [vmem:[%s168] sm:$0xff]
      %v182 = vld [vmem:[%s168 + $0x8] sm:$0xff]
      %v183 = vld [vmem:[%s168 + $0x10] sm:$0xff]
      %v184 = vld [vmem:[%s168 + $0x18] sm:$0xff]
      %v185 = vld [vmem:[%s168 + $0x20] sm:$0xff]
      %v186 = vld [vmem:[%s168 + $0x28] sm:$0xff]
      %v187 = vld [vmem:[%s168 + $0x30] sm:$0xff]
      %v188 = vld [vmem:[%s168 + $0x38] sm:$0xff]
      %v189 = vld [vmem:[%s168 + $0x40] sm:$0xff]
      %v190 = vld [vmem:[%s168 + $0x48] sm:$0xff]
      %v191 = vld [vmem:[%s168 + $0x50] sm:$0xff]
      %v192 = vld [vmem:[%s168 + $0x58] sm:$0xff]
      %v193 = vld [vmem:[%s168 + $0x60] sm:$0xff]
      %v194 = vld [vmem:[%s168 + $0x68] sm:$0xff]
      %v195 = vld [vmem:[%s168 + $0x70] sm:$0xff]
      %v196 = vld [vmem:[%s168 + $0x78] sm:$0xff]
      %v197 = vld [vmem:[%s172] sm:$0xff]
      %v198 = vld [vmem:[%s172 + $0x8] sm:$0xff]
      %v199 = vld [vmem:[%s172 + $0x10] sm:$0xff]
      %v200 = vld [vmem:[%s172 + $0x18] sm:$0xff]
      %v201 = vld [vmem:[%s172 + $0x20] sm:$0xff]
      %v202 = vld [vmem:[%s172 + $0x28] sm:$0xff]
      %v203 = vld [vmem:[%s172 + $0x30] sm:$0xff]
      %v204 = vld [vmem:[%s172 + $0x38] sm:$0xff]
      %v205 = vld [vmem:[%s172 + $0x40] sm:$0xff]
      %v206 = vld [vmem:[%s172 + $0x48] sm:$0xff]
      %v207 = vld [vmem:[%s172 + $0x50] sm:$0xff]
      %v208 = vld [vmem:[%s172 + $0x58] sm:$0xff]
      %v209 = vld [vmem:[%s172 + $0x60] sm:$0xff]
      %v210 = vld [vmem:[%s172 + $0x68] sm:$0xff]
      %v211 = vld [vmem:[%s172 + $0x70] sm:$0xff]
      %v212 = vld [vmem:[%s172 + $0x78] sm:$0xff]
      %v213 = vld [vmem:[%s172 + $0x80] sm:$0xff]
      %v214 = vld [vmem:[%s172 + $0x88] sm:$0xff]
      %v215 = vld [vmem:[%s172 + $0x90] sm:$0xff]
      %v216 = vld [vmem:[%s172 + $0x98] sm:$0xff]
      %v217 = vld [vmem:[%s172 + $0xa0] sm:$0xff]
      %v218 = vld [vmem:[%s172 + $0xa8] sm:$0xff]
      %v219 = vld [vmem:[%s172 + $0xb0] sm:$0xff]
      %v220 = vld [vmem:[%s172 + $0xb8] sm:$0xff]
      %v221 = vld [vmem:[%s172 + $0xc0] sm:$0xff]
      %v222 = vld [vmem:[%s172 + $0xc8] sm:$0xff]
      %v223 = vld [vmem:[%s172 + $0xd0] sm:$0xff]
      %v224 = vld [vmem:[%s172 + $0xd8] sm:$0xff]
      %v225 = vld [vmem:[%s172 + $0xe0] sm:$0xff]
      %v226 = vld [vmem:[%s172 + $0xe8] sm:$0xff]
      %v227 = vld [vmem:[%s172 + $0xf0] sm:$0xff]
      %v228 = vld [vmem:[%s172 + $0xf8] sm:$0xff]
      %v229 = vld [vmem:[%s172 + $0x100] sm:$0xff]
      %v230 = vld [vmem:[%s172 + $0x108] sm:$0xff]
      %v231 = vld [vmem:[%s172 + $0x110] sm:$0xff]
      %v232 = vld [vmem:[%s172 + $0x118] sm:$0xff]
      %v233 = vld [vmem:[%s172 + $0x120] sm:$0xff]
      %v234 = vld [vmem:[%s172 + $0x128] sm:$0xff]
      %v235 = vld [vmem:[%s172 + $0x130] sm:$0xff]
      %v236 = vld [vmem:[%s172 + $0x138] sm:$0xff]
      %v237 = vld [vmem:[%s172 + $0x140] sm:$0xff]
      %v238 = vld [vmem:[%s172 + $0x148] sm:$0xff]
      %v239 = vld [vmem:[%s172 + $0x150] sm:$0xff]
      %v240 = vld [vmem:[%s172 + $0x158] sm:$0xff]
      %v241 = vld [vmem:[%s172 + $0x160] sm:$0xff]
      %v242 = vld [vmem:[%s172 + $0x168] sm:$0xff]
      %v243 = vld [vmem:[%s172 + $0x170] sm:$0xff]
      %v244 = vld [vmem:[%s172 + $0x178] sm:$0xff]
      %v245 = vld [vmem:[%s172 + $0x180] sm:$0xff]
      %v246 = vld [vmem:[%s172 + $0x188] sm:$0xff]
      %v247 = vld [vmem:[%s172 + $0x190] sm:$0xff]
      %v248 = vld [vmem:[%s172 + $0x198] sm:$0xff]
      %v249 = vld [vmem:[%s172 + $0x1a0] sm:$0xff]
      %v250 = vld [vmem:[%s172 + $0x1a8] sm:$0xff]
      %v251 = vld [vmem:[%s172 + $0x1b0] sm:$0xff]
      %v252 = vld [vmem:[%s172 + $0x1b8] sm:$0xff]
      %v253 = vld [vmem:[%s172 + $0x1c0] sm:$0xff]
      %v254 = vld [vmem:[%s172 + $0x1c8] sm:$0xff]
      %v255 = vld [vmem:[%s172 + $0x1d0] sm:$0xff]
      %v256 = vld [vmem:[%s172 + $0x1d8] sm:$0xff]
      %v257 = vld [vmem:[%s172 + $0x1e0] sm:$0xff]
      %v258 = vld [vmem:[%s172 + $0x1e8] sm:$0xff]
      %v259 = vld [vmem:[%s172 + $0x1f0] sm:$0xff]
      %v260 = vld [vmem:[%s172 + $0x1f8] sm:$0xff]
      %v261 = vld [vmem:[%s172 + $0x200] sm:$0xff]
      %v262 = vld [vmem:[%s172 + $0x208] sm:$0xff]
      %v263 = vld [vmem:[%s172 + $0x210] sm:$0xff]
      %v264 = vld [vmem:[%s172 + $0x218] sm:$0xff]
      %v265 = vld [vmem:[%s172 + $0x220] sm:$0xff]
      %v266 = vld [vmem:[%s172 + $0x228] sm:$0xff]
      %v267 = vld [vmem:[%s172 + $0x230] sm:$0xff]
      %v268 = vld [vmem:[%s172 + $0x238] sm:$0xff]
      %v269 = vld [vmem:[%s172 + $0x240] sm:$0xff]
      %v270 = vld [vmem:[%s172 + $0x248] sm:$0xff]
      %v271 = vld [vmem:[%s172 + $0x250] sm:$0xff]
      %v272 = vld [vmem:[%s172 + $0x258] sm:$0xff]
      %v273 = vld [vmem:[%s172 + $0x260] sm:$0xff]
      %v274 = vld [vmem:[%s172 + $0x268] sm:$0xff]
      %v275 = vld [vmem:[%s172 + $0x270] sm:$0xff]
      %v276 = vld [vmem:[%s172 + $0x278] sm:$0xff]
      %v277 = vld [vmem:[%s172 + $0x280] sm:$0xff]
      %v278 = vld [vmem:[%s172 + $0x288] sm:$0xff]
      %v279 = vld [vmem:[%s172 + $0x290] sm:$0xff]
      %v280 = vld [vmem:[%s172 + $0x298] sm:$0xff]
      %v281 = vld [vmem:[%s172 + $0x2a0] sm:$0xff]
      %v282 = vld [vmem:[%s172 + $0x2a8] sm:$0xff]
      %v283 = vld [vmem:[%s172 + $0x2b0] sm:$0xff]
      %v284 = vld [vmem:[%s172 + $0x2b8] sm:$0xff]
      %v285 = vld [vmem:[%s172 + $0x2c0] sm:$0xff]
      %v286 = vld [vmem:[%s172 + $0x2c8] sm:$0xff]
      %v287 = vld [vmem:[%s172 + $0x2d0] sm:$0xff]
      %v288 = vld [vmem:[%s172 + $0x2d8] sm:$0xff]
      %v289 = vld [vmem:[%s172 + $0x2e0] sm:$0xff]
      %v290 = vld [vmem:[%s172 + $0x2e8] sm:$0xff]
      %v291 = vld [vmem:[%s172 + $0x2f0] sm:$0xff]
      %v292 = vld [vmem:[%s172 + $0x2f8] sm:$0xff]
      %v293 = vld [vmem:[%s172 + $0x300] sm:$0xff]
      %v294 = vld [vmem:[%s172 + $0x308] sm:$0xff]
      %v295 = vld [vmem:[%s172 + $0x310] sm:$0xff]
      %v296 = vld [vmem:[%s172 + $0x318] sm:$0xff]
      %v297 = vld [vmem:[%s172 + $0x320] sm:$0xff]
      %v298 = vld [vmem:[%s172 + $0x328] sm:$0xff]
      %v299 = vld [vmem:[%s172 + $0x330] sm:$0xff]
      %v300 = vld [vmem:[%s172 + $0x338] sm:$0xff]
      %v301 = vld [vmem:[%s172 + $0x340] sm:$0xff]
      %v302 = vld [vmem:[%s172 + $0x348] sm:$0xff]
      %v303 = vld [vmem:[%s172 + $0x350] sm:$0xff]
      %v304 = vld [vmem:[%s172 + $0x358] sm:$0xff]
      %v305 = vld [vmem:[%s172 + $0x360] sm:$0xff]
      %v306 = vld [vmem:[%s172 + $0x368] sm:$0xff]
      %v307 = vld [vmem:[%s172 + $0x370] sm:$0xff]
      %v308 = vld [vmem:[%s172 + $0x378] sm:$0xff]
      %v309 = vld [vmem:[%s172 + $0x380] sm:$0xff]
      %v310 = vld [vmem:[%s172 + $0x388] sm:$0xff]
      %v311 = vld [vmem:[%s172 + $0x390] sm:$0xff]
      %v312 = vld [vmem:[%s172 + $0x398] sm:$0xff]
      %v313 = vld [vmem:[%s172 + $0x3a0] sm:$0xff]
      %v314 = vld [vmem:[%s172 + $0x3a8] sm:$0xff]
      %v315 = vld [vmem:[%s172 + $0x3b0] sm:$0xff]
      %v316 = vld [vmem:[%s172 + $0x3b8] sm:$0xff]
      %v317 = vld [vmem:[%s172 + $0x3c0] sm:$0xff]
      %v318 = vld [vmem:[%s172 + $0x3c8] sm:$0xff]
      %v319 = vld [vmem:[%s172 + $0x3d0] sm:$0xff]
      %v320 = vld [vmem:[%s172 + $0x3d8] sm:$0xff]
      %v321 = vld [vmem:[%s172 + $0x3e0] sm:$0xff]
      %v322 = vld [vmem:[%s172 + $0x3e8] sm:$0xff]
      %v323 = vld [vmem:[%s172 + $0x3f0] sm:$0xff]
      %v324 = vld [vmem:[%s172 + $0x3f8] sm:$0xff]
      %325 = vmatprep.subr.mxu0 0.0
      %326 = vmatpush1.msra.mxu0 %v212
      %327 = vmatprep.subr.mxu0 0.0
      %328 = vmatpush1.msra.mxu0 %v211
      %329 = vmatprep.subr.mxu0 0.0
      %330 = vmatpush1.msra.mxu0 %v210
      %331 = vmatprep.subr.mxu0 0.0
      %332 = vmatpush1.msra.mxu0 %v209
      %333 = vmatprep.subr.mxu0 0.0
      %334 = vmatpush1.msra.mxu0 %v208
      %335 = vmatprep.subr.mxu0 0.0
      %336 = vmatpush1.msra.mxu0 %v207
      %337 = vmatprep.subr.mxu0 0.0
      %338 = vmatpush1.msra.mxu0 %v206
      %339 = vmatprep.subr.mxu0 0.0
      %340 = vmatpush1.msra.mxu0 %v205
      %341 = vmatprep.subr.mxu0 0.0
      %342 = vmatpush1.msra.mxu0 %v204
      %343 = vmatprep.subr.mxu0 0.0
      %344 = vmatpush1.msra.mxu0 %v203
      %345 = vmatprep.subr.mxu0 0.0
      %346 = vmatpush1.msra.mxu0 %v202
      %347 = vmatprep.subr.mxu0 0.0
      %348 = vmatpush1.msra.mxu0 %v201
      %349 = vmatprep.subr.mxu0 0.0
      %350 = vmatpush1.msra.mxu0 %v200
      %351 = vmatprep.subr.mxu0 0.0
      %352 = vmatpush1.msra.mxu0 %v199
      %353 = vmatprep.subr.mxu0 0.0
      %354 = vmatpush1.msra.mxu0 %v198
      %355 = vmatprep.subr.mxu0 0.0
      %356 = vmatpush1.msra.mxu0 %v197
      %357 = vmatprep.subr.mxu0 0.0
      %358 = vmatpush2.msra.mxu0 %v228
      %359 = vmatprep.subr.mxu0 0.0
      %360 = vmatpush2.msra.mxu0 %v227
      %361 = vmatprep.subr.mxu0 0.0
      %362 = vmatpush2.msra.mxu0 %v226
      %363 = vmatprep.subr.mxu0 0.0
      %364 = vmatpush2.msra.mxu0 %v225
      %365 = vmatprep.subr.mxu0 0.0
      %366 = vmatpush2.msra.mxu0 %v224
      %367 = vmatprep.subr.mxu0 0.0
      %368 = vmatpush2.msra.mxu0 %v223
      %369 = vmatprep.subr.mxu0 0.0
      %370 = vmatpush2.msra.mxu0 %v222
      %371 = vmatprep.subr.mxu0 0.0
      %372 = vmatpush2.msra.mxu0 %v221
      %373 = vmatprep.subr.mxu0 0.0
      %374 = vmatpush2.msra.mxu0 %v220
      %375 = vmatprep.subr.mxu0 0.0
      %376 = vmatpush2.msra.mxu0 %v219
      %377 = vmatprep.subr.mxu0 0.0
      %378 = vmatpush2.msra.mxu0 %v218
      %379 = vmatprep.subr.mxu0 0.0
      %380 = vmatpush2.msra.mxu0 %v217
      %381 = vmatprep.subr.mxu0 0.0
      %382 = vmatpush2.msra.mxu0 %v216
      %383 = vmatprep.subr.mxu0 0.0
      %384 = vmatpush2.msra.mxu0 %v215
      %385 = vmatprep.subr.mxu0 0.0
      %386 = vmatpush2.msra.mxu0 %v214
      %387 = vmatprep.subr.mxu0 0.0
      %388 = vmatpush2.msra.mxu0 %v213
      %389 = vmatprep.mubr.f32.mxu0 %v182
      %390 = vmatmul.mubr.f32.gmra.mxu0 %v181
      %v391 = vpop.f32.mrf.mxu0
      %v392 = vadd.f32 0.0, %v391
      %v393 = vpop.f32.mrf.mxu0
      %394 = vmatprep.mubr.f32.mxu0 %v190
      %395 = vmatmul.mubr.f32.gmra.mxu0 %v189
      %v396 = vpop.f32.mrf.mxu0
      %v397 = vadd.f32 0.0, %v396
      %v398 = vpop.f32.mrf.mxu0
      %399 = vdwg.mxu0
      %400 = vmatprep.subr.mxu0 0.0
      %401 = vmatpush1.msra.mxu0 %v244
      %402 = vmatprep.subr.mxu0 0.0
      %403 = vmatpush1.msra.mxu0 %v243
      %404 = vmatprep.subr.mxu0 0.0
      %405 = vmatpush1.msra.mxu0 %v242
      %406 = vmatprep.subr.mxu0 0.0
      %407 = vmatpush1.msra.mxu0 %v241
      %408 = vmatprep.subr.mxu0 0.0
      %409 = vmatpush1.msra.mxu0 %v240
      %410 = vmatprep.subr.mxu0 0.0
      %411 = vmatpush1.msra.mxu0 %v239
      %412 = vmatprep.subr.mxu0 0.0
      %413 = vmatpush1.msra.mxu0 %v238
      %414 = vmatprep.subr.mxu0 0.0
      %415 = vmatpush1.msra.mxu0 %v237
      %416 = vmatprep.subr.mxu0 0.0
      %417 = vmatpush1.msra.mxu0 %v236
      %418 = vmatprep.subr.mxu0 0.0
      %419 = vmatpush1.msra.mxu0 %v235
      %420 = vmatprep.subr.mxu0 0.0
      %421 = vmatpush1.msra.mxu0 %v234
      %422 = vmatprep.subr.mxu0 0.0
      %423 = vmatpush1.msra.mxu0 %v233
      %424 = vmatprep.subr.mxu0 0.0
      %425 = vmatpush1.msra.mxu0 %v232
      %426 = vmatprep.subr.mxu0 0.0
      %427 = vmatpush1.msra.mxu0 %v231
      %428 = vmatprep.subr.mxu0 0.0
      %429 = vmatpush1.msra.mxu0 %v230
      %430 = vmatprep.subr.mxu0 0.0
      %431 = vmatpush1.msra.mxu0 %v229
      %432 = vmatprep.subr.mxu0 0.0
      %433 = vmatpush2.msra.mxu0 %v260
      %434 = vmatprep.subr.mxu0 0.0
      %435 = vmatpush2.msra.mxu0 %v259
      %436 = vmatprep.subr.mxu0 0.0
      %437 = vmatpush2.msra.mxu0 %v258
      %438 = vmatprep.subr.mxu0 0.0
      %439 = vmatpush2.msra.mxu0 %v257
      %440 = vmatprep.subr.mxu0 0.0
      %441 = vmatpush2.msra.mxu0 %v256
      %442 = vmatprep.subr.mxu0 0.0
      %443 = vmatpush2.msra.mxu0 %v255
      %444 = vmatprep.subr.mxu0 0.0
      %445 = vmatpush2.msra.mxu0 %v254
      %446 = vmatprep.subr.mxu0 0.0
      %447 = vmatpush2.msra.mxu0 %v253
      %448 = vmatprep.subr.mxu0 0.0
      %449 = vmatpush2.msra.mxu0 %v252
      %450 = vmatprep.subr.mxu0 0.0
      %451 = vmatpush2.msra.mxu0 %v251
      %452 = vmatprep.subr.mxu0 0.0
      %453 = vmatpush2.msra.mxu0 %v250
      %454 = vmatprep.subr.mxu0 0.0
      %455 = vmatpush2.msra.mxu0 %v249
      %456 = vmatprep.subr.mxu0 0.0
      %457 = vmatpush2.msra.mxu0 %v248
      %458 = vmatprep.subr.mxu0 0.0
      %459 = vmatpush2.msra.mxu0 %v247
      %460 = vmatprep.subr.mxu0 0.0
      %461 = vmatpush2.msra.mxu0 %v246
      %462 = vmatprep.subr.mxu0 0.0
      %463 = vmatpush2.msra.mxu0 %v245
      %464 = vmatprep.mubr.f32.mxu0 %v184
      %465 = vmatmul.mubr.f32.gmra.mxu0 %v183
      %v466 = vpop.f32.mrf.mxu0
      %v467 = vadd.f32 %v392, %v466
      %v468 = vpop.f32.mrf.mxu0
      %469 = vmatprep.mubr.f32.mxu0 %v192
      %470 = vmatmul.mubr.f32.gmra.mxu0 %v191
      %v471 = vpop.f32.mrf.mxu0
      %v472 = vadd.f32 %v397, %v471
      %v473 = vpop.f32.mrf.mxu0
      %474 = vdwg.mxu0
      %475 = vmatprep.subr.mxu0 0.0
      %476 = vmatpush1.msra.mxu0 %v276
      %477 = vmatprep.subr.mxu0 0.0
      %478 = vmatpush1.msra.mxu0 %v275
      %479 = vmatprep.subr.mxu0 0.0
      %480 = vmatpush1.msra.mxu0 %v274
      %481 = vmatprep.subr.mxu0 0.0
      %482 = vmatpush1.msra.mxu0 %v273
      %483 = vmatprep.subr.mxu0 0.0
      %484 = vmatpush1.msra.mxu0 %v272
      %485 = vmatprep.subr.mxu0 0.0
      %486 = vmatpush1.msra.mxu0 %v271
      %487 = vmatprep.subr.mxu0 0.0
      %488 = vmatpush1.msra.mxu0 %v270
      %489 = vmatprep.subr.mxu0 0.0
      %490 = vmatpush1.msra.mxu0 %v269
      %491 = vmatprep.subr.mxu0 0.0
      %492 = vmatpush1.msra.mxu0 %v268
      %493 = vmatprep.subr.mxu0 0.0
      %494 = vmatpush1.msra.mxu0 %v267
      %495 = vmatprep.subr.mxu0 0.0
      %496 = vmatpush1.msra.mxu0 %v266
      %497 = vmatprep.subr.mxu0 0.0
      %498 = vmatpush1.msra.mxu0 %v265
      %499 = vmatprep.subr.mxu0 0.0
      %500 = vmatpush1.msra.mxu0 %v264
      %501 = vmatprep.subr.mxu0 0.0
      %502 = vmatpush1.msra.mxu0 %v263
      %503 = vmatprep.subr.mxu0 0.0
      %504 = vmatpush1.msra.mxu0 %v262
      %505 = vmatprep.subr.mxu0 0.0
      %506 = vmatpush1.msra.mxu0 %v261
      %507 = vmatprep.subr.mxu0 0.0
      %508 = vmatpush2.msra.mxu0 %v292
      %509 = vmatprep.subr.mxu0 0.0
      %510 = vmatpush2.msra.mxu0 %v291
      %511 = vmatprep.subr.mxu0 0.0
      %512 = vmatpush2.msra.mxu0 %v290
      %513 = vmatprep.subr.mxu0 0.0
      %514 = vmatpush2.msra.mxu0 %v289
      %515 = vmatprep.subr.mxu0 0.0
      %516 = vmatpush2.msra.mxu0 %v288
      %517 = vmatprep.subr.mxu0 0.0
      %518 = vmatpush2.msra.mxu0 %v287
      %519 = vmatprep.subr.mxu0 0.0
      %520 = vmatpush2.msra.mxu0 %v286
      %521 = vmatprep.subr.mxu0 0.0
      %522 = vmatpush2.msra.mxu0 %v285
      %523 = vmatprep.subr.mxu0 0.0
      %524 = vmatpush2.msra.mxu0 %v284
      %525 = vmatprep.subr.mxu0 0.0
      %526 = vmatpush2.msra.mxu0 %v283
      %527 = vmatprep.subr.mxu0 0.0
      %528 = vmatpush2.msra.mxu0 %v282
      %529 = vmatprep.subr.mxu0 0.0
      %530 = vmatpush2.msra.mxu0 %v281
      %531 = vmatprep.subr.mxu0 0.0
      %532 = vmatpush2.msra.mxu0 %v280
      %533 = vmatprep.subr.mxu0 0.0
      %534 = vmatpush2.msra.mxu0 %v279
      %535 = vmatprep.subr.mxu0 0.0
      %536 = vmatpush2.msra.mxu0 %v278
      %537 = vmatprep.subr.mxu0 0.0
      %538 = vmatpush2.msra.mxu0 %v277
      %539 = vmatprep.mubr.f32.mxu0 %v186
      %540 = vmatmul.mubr.f32.gmra.mxu0 %v185
      %v541 = vpop.f32.mrf.mxu0
      %v542 = vadd.f32 %v467, %v541
      %v543 = vpop.f32.mrf.mxu0
      %544 = vmatprep.mubr.f32.mxu0 %v194
      %545 = vmatmul.mubr.f32.gmra.mxu0 %v193
      %v546 = vpop.f32.mrf.mxu0
      %v547 = vadd.f32 %v472, %v546
      %v548 = vpop.f32.mrf.mxu0
      %549 = vdwg.mxu0
      %550 = vmatprep.subr.mxu0 0.0
      %551 = vmatpush1.msra.mxu0 %v308
      %552 = vmatprep.subr.mxu0 0.0
      %553 = vmatpush1.msra.mxu0 %v307
      %554 = vmatprep.subr.mxu0 0.0
      %555 = vmatpush1.msra.mxu0 %v306
      %556 = vmatprep.subr.mxu0 0.0
      %557 = vmatpush1.msra.mxu0 %v305
      %558 = vmatprep.subr.mxu0 0.0
      %559 = vmatpush1.msra.mxu0 %v304
      %560 = vmatprep.subr.mxu0 0.0
      %561 = vmatpush1.msra.mxu0 %v303
      %562 = vmatprep.subr.mxu0 0.0
      %563 = vmatpush1.msra.mxu0 %v302
      %564 = vmatprep.subr.mxu0 0.0
      %565 = vmatpush1.msra.mxu0 %v301
      %566 = vmatprep.subr.mxu0 0.0
      %567 = vmatpush1.msra.mxu0 %v300
      %568 = vmatprep.subr.mxu0 0.0
      %569 = vmatpush1.msra.mxu0 %v299
      %570 = vmatprep.subr.mxu0 0.0
      %571 = vmatpush1.msra.mxu0 %v298
      %572 = vmatprep.subr.mxu0 0.0
      %573 = vmatpush1.msra.mxu0 %v297
      %574 = vmatprep.subr.mxu0 0.0
      %575 = vmatpush1.msra.mxu0 %v296
      %576 = vmatprep.subr.mxu0 0.0
      %577 = vmatpush1.msra.mxu0 %v295
      %578 = vmatprep.subr.mxu0 0.0
      %579 = vmatpush1.msra.mxu0 %v294
      %580 = vmatprep.subr.mxu0 0.0
      %581 = vmatpush1.msra.mxu0 %v293
      %582 = vmatprep.subr.mxu0 0.0
      %583 = vmatpush2.msra.mxu0 %v324
      %584 = vmatprep.subr.mxu0 0.0
      %585 = vmatpush2.msra.mxu0 %v323
      %586 = vmatprep.subr.mxu0 0.0
      %587 = vmatpush2.msra.mxu0 %v322
      %588 = vmatprep.subr.mxu0 0.0
      %589 = vmatpush2.msra.mxu0 %v321
      %590 = vmatprep.subr.mxu0 0.0
      %591 = vmatpush2.msra.mxu0 %v320
      %592 = vmatprep.subr.mxu0 0.0
      %593 = vmatpush2.msra.mxu0 %v319
      %594 = vmatprep.subr.mxu0 0.0
      %595 = vmatpush2.msra.mxu0 %v318
      %596 = vmatprep.subr.mxu0 0.0
      %597 = vmatpush2.msra.mxu0 %v317
      %598 = vmatprep.subr.mxu0 0.0
      %599 = vmatpush2.msra.mxu0 %v316
      %600 = vmatprep.subr.mxu0 0.0
      %601 = vmatpush2.msra.mxu0 %v315
      %602 = vmatprep.subr.mxu0 0.0
      %603 = vmatpush2.msra.mxu0 %v314
      %604 = vmatprep.subr.mxu0 0.0
      %605 = vmatpush2.msra.mxu0 %v313
      %606 = vmatprep.subr.mxu0 0.0
      %607 = vmatpush2.msra.mxu0 %v312
      %608 = vmatprep.subr.mxu0 0.0
      %609 = vmatpush2.msra.mxu0 %v311
      %610 = vmatprep.subr.mxu0 0.0
      %611 = vmatpush2.msra.mxu0 %v310
      %612 = vmatprep.subr.mxu0 0.0
      %613 = vmatpush2.msra.mxu0 %v309
      %614 = vmatprep.mubr.f32.mxu0 %v188
      %615 = vmatmul.mubr.f32.gmra.mxu0 %v187
      %v616 = vpop.f32.mrf.mxu0
      %v617 = vadd.f32 %v542, %v616
      %v618 = vpop.f32.mrf.mxu0
      %619 = vmatprep.mubr.f32.mxu0 %v196
      %620 = vmatmul.mubr.f32.gmra.mxu0 %v195
      %v621 = vpop.f32.mrf.mxu0
      %v622 = vadd.f32 %v547, %v621
      %v623 = vpop.f32.mrf.mxu0
      %624 = vdwg.mxu0
      %625 = vst [vmem:[#allocation2] sm:$0xff] %v617
      %626 = vst [vmem:[#allocation2 + $0x8] sm:$0xff] %v622
      %v627 = vld [vmem:[#allocation2] sm:$0xff]
      %v628 = vld [vmem:[#allocation2 + $0x8] sm:$0xff]
      %v629 = vld [vmem:[%s168 + $0x40] sm:$0xff]
      %v630 = vld [vmem:[%s168 + $0x48] sm:$0xff]
      %v631 = vld [vmem:[%s168 + $0x50] sm:$0xff]
      %v632 = vld [vmem:[%s168 + $0x58] sm:$0xff]
      %v633 = vld [vmem:[%s168 + $0x60] sm:$0xff]
      %v634 = vld [vmem:[%s168 + $0x68] sm:$0xff]
      %v635 = vld [vmem:[%s168 + $0x70] sm:$0xff]
      %v636 = vld [vmem:[%s168 + $0x78] sm:$0xff]
      %v637 = vld [vmem:[%s168 + $0x80] sm:$0xff]
      %v638 = vld [vmem:[%s168 + $0x88] sm:$0xff]
      %v639 = vld [vmem:[%s168 + $0x90] sm:$0xff]
      %v640 = vld [vmem:[%s168 + $0x98] sm:$0xff]
      %v641 = vld [vmem:[%s168 + $0xa0] sm:$0xff]
      %v642 = vld [vmem:[%s168 + $0xa8] sm:$0xff]
      %v643 = vld [vmem:[%s168 + $0xb0] sm:$0xff]
      %v644 = vld [vmem:[%s168 + $0xb8] sm:$0xff]
      %s645 = scalar_lea.vmem %s172, 1024
      %v646 = vld [vmem:[%s645] sm:$0xff]
      %v647 = vld [vmem:[%s645 + $0x8] sm:$0xff]
      %v648 = vld [vmem:[%s645 + $0x10] sm:$0xff]
      %v649 = vld [vmem:[%s645 + $0x18] sm:$0xff]
      %v650 = vld [vmem:[%s645 + $0x20] sm:$0xff]
      %v651 = vld [vmem:[%s645 + $0x28] sm:$0xff]
      %v652 = vld [vmem:[%s645 + $0x30] sm:$0xff]
      %v653 = vld [vmem:[%s645 + $0x38] sm:$0xff]
      %v654 = vld [vmem:[%s645 + $0x40] sm:$0xff]
      %v655 = vld [vmem:[%s645 + $0x48] sm:$0xff]
      %v656 = vld [vmem:[%s645 + $0x50] sm:$0xff]
      %v657 = vld [vmem:[%s645 + $0x58] sm:$0xff]
      %v658 = vld [vmem:[%s645 + $0x60] sm:$0xff]
      %v659 = vld [vmem:[%s645 + $0x68] sm:$0xff]
      %v660 = vld [vmem:[%s645 + $0x70] sm:$0xff]
      %v661 = vld [vmem:[%s645 + $0x78] sm:$0xff]
      %v662 = vld [vmem:[%s645 + $0x80] sm:$0xff]
      %v663 = vld [vmem:[%s645 + $0x88] sm:$0xff]
      %v664 = vld [vmem:[%s645 + $0x90] sm:$0xff]
      %v665 = vld [vmem:[%s645 + $0x98] sm:$0xff]
      %v666 = vld [vmem:[%s645 + $0xa0] sm:$0xff]
      %v667 = vld [vmem:[%s645 + $0xa8] sm:$0xff]
      %v668 = vld [vmem:[%s645 + $0xb0] sm:$0xff]
      %v669 = vld [vmem:[%s645 + $0xb8] sm:$0xff]
      %v670 = vld [vmem:[%s645 + $0xc0] sm:$0xff]
      %v671 = vld [vmem:[%s645 + $0xc8] sm:$0xff]
      %v672 = vld [vmem:[%s645 + $0xd0] sm:$0xff]
      %v673 = vld [vmem:[%s645 + $0xd8] sm:$0xff]
      %v674 = vld [vmem:[%s645 + $0xe0] sm:$0xff]
      %v675 = vld [vmem:[%s645 + $0xe8] sm:$0xff]
      %v676 = vld [vmem:[%s645 + $0xf0] sm:$0xff]
      %v677 = vld [vmem:[%s645 + $0xf8] sm:$0xff]
      %v678 = vld [vmem:[%s645 + $0x100] sm:$0xff]
      %v679 = vld [vmem:[%s645 + $0x108] sm:$0xff]
      %v680 = vld [vmem:[%s645 + $0x110] sm:$0xff]
      %v681 = vld [vmem:[%s645 + $0x118] sm:$0xff]
      %v682 = vld [vmem:[%s645 + $0x120] sm:$0xff]
      %v683 = vld [vmem:[%s645 + $0x128] sm:$0xff]
      %v684 = vld [vmem:[%s645 + $0x130] sm:$0xff]
      %v685 = vld [vmem:[%s645 + $0x138] sm:$0xff]
      %v686 = vld [vmem:[%s645 + $0x140] sm:$0xff]
      %v687 = vld [vmem:[%s645 + $0x148] sm:$0xff]
      %v688 = vld [vmem:[%s645 + $0x150] sm:$0xff]
      %v689 = vld [vmem:[%s645 + $0x158] sm:$0xff]
      %v690 = vld [vmem:[%s645 + $0x160] sm:$0xff]
      %v691 = vld [vmem:[%s645 + $0x168] sm:$0xff]
      %v692 = vld [vmem:[%s645 + $0x170] sm:$0xff]
      %v693 = vld [vmem:[%s645 + $0x178] sm:$0xff]
      %v694 = vld [vmem:[%s645 + $0x180] sm:$0xff]
      %v695 = vld [vmem:[%s645 + $0x188] sm:$0xff]
      %v696 = vld [vmem:[%s645 + $0x190] sm:$0xff]
      %v697 = vld [vmem:[%s645 + $0x198] sm:$0xff]
      %v698 = vld [vmem:[%s645 + $0x1a0] sm:$0xff]
      %v699 = vld [vmem:[%s645 + $0x1a8] sm:$0xff]
      %v700 = vld [vmem:[%s645 + $0x1b0] sm:$0xff]
      %v701 = vld [vmem:[%s645 + $0x1b8] sm:$0xff]
      %v702 = vld [vmem:[%s645 + $0x1c0] sm:$0xff]
      %v703 = vld [vmem:[%s645 + $0x1c8] sm:$0xff]
      %v704 = vld [vmem:[%s645 + $0x1d0] sm:$0xff]
      %v705 = vld [vmem:[%s645 + $0x1d8] sm:$0xff]
      %v706 = vld [vmem:[%s645 + $0x1e0] sm:$0xff]
      %v707 = vld [vmem:[%s645 + $0x1e8] sm:$0xff]
      %v708 = vld [vmem:[%s645 + $0x1f0] sm:$0xff]
      %v709 = vld [vmem:[%s645 + $0x1f8] sm:$0xff]
      %v710 = vld [vmem:[%s645 + $0x200] sm:$0xff]
      %v711 = vld [vmem:[%s645 + $0x208] sm:$0xff]
      %v712 = vld [vmem:[%s645 + $0x210] sm:$0xff]
      %v713 = vld [vmem:[%s645 + $0x218] sm:$0xff]
      %v714 = vld [vmem:[%s645 + $0x220] sm:$0xff]
      %v715 = vld [vmem:[%s645 + $0x228] sm:$0xff]
      %v716 = vld [vmem:[%s645 + $0x230] sm:$0xff]
      %v717 = vld [vmem:[%s645 + $0x238] sm:$0xff]
      %v718 = vld [vmem:[%s645 + $0x240] sm:$0xff]
      %v719 = vld [vmem:[%s645 + $0x248] sm:$0xff]
      %v720 = vld [vmem:[%s645 + $0x250] sm:$0xff]
      %v721 = vld [vmem:[%s645 + $0x258] sm:$0xff]
      %v722 = vld [vmem:[%s645 + $0x260] sm:$0xff]
      %v723 = vld [vmem:[%s645 + $0x268] sm:$0xff]
      %v724 = vld [vmem:[%s645 + $0x270] sm:$0xff]
      %v725 = vld [vmem:[%s645 + $0x278] sm:$0xff]
      %v726 = vld [vmem:[%s645 + $0x280] sm:$0xff]
      %v727 = vld [vmem:[%s645 + $0x288] sm:$0xff]
      %v728 = vld [vmem:[%s645 + $0x290] sm:$0xff]
      %v729 = vld [vmem:[%s645 + $0x298] sm:$0xff]
      %v730 = vld [vmem:[%s645 + $0x2a0] sm:$0xff]
      %v731 = vld [vmem:[%s645 + $0x2a8] sm:$0xff]
      %v732 = vld [vmem:[%s645 + $0x2b0] sm:$0xff]
      %v733 = vld [vmem:[%s645 + $0x2b8] sm:$0xff]
      %v734 = vld [vmem:[%s645 + $0x2c0] sm:$0xff]
      %v735 = vld [vmem:[%s645 + $0x2c8] sm:$0xff]
      %v736 = vld [vmem:[%s645 + $0x2d0] sm:$0xff]
      %v737 = vld [vmem:[%s645 + $0x2d8] sm:$0xff]
      %v738 = vld [vmem:[%s645 + $0x2e0] sm:$0xff]
      %v739 = vld [vmem:[%s645 + $0x2e8] sm:$0xff]
      %v740 = vld [vmem:[%s645 + $0x2f0] sm:$0xff]
      %v741 = vld [vmem:[%s645 + $0x2f8] sm:$0xff]
      %v742 = vld [vmem:[%s645 + $0x300] sm:$0xff]
      %v743 = vld [vmem:[%s645 + $0x308] sm:$0xff]
      %v744 = vld [vmem:[%s645 + $0x310] sm:$0xff]
      %v745 = vld [vmem:[%s645 + $0x318] sm:$0xff]
      %v746 = vld [vmem:[%s645 + $0x320] sm:$0xff]
      %v747 = vld [vmem:[%s645 + $0x328] sm:$0xff]
      %v748 = vld [vmem:[%s645 + $0x330] sm:$0xff]
      %v749 = vld [vmem:[%s645 + $0x338] sm:$0xff]
      %v750 = vld [vmem:[%s645 + $0x340] sm:$0xff]
      %v751 = vld [vmem:[%s645 + $0x348] sm:$0xff]
      %v752 = vld [vmem:[%s645 + $0x350] sm:$0xff]
      %v753 = vld [vmem:[%s645 + $0x358] sm:$0xff]
      %v754 = vld [vmem:[%s645 + $0x360] sm:$0xff]
      %v755 = vld [vmem:[%s645 + $0x368] sm:$0xff]
      %v756 = vld [vmem:[%s645 + $0x370] sm:$0xff]
      %v757 = vld [vmem:[%s645 + $0x378] sm:$0xff]
      %v758 = vld [vmem:[%s645 + $0x380] sm:$0xff]
      %v759 = vld [vmem:[%s645 + $0x388] sm:$0xff]
      %v760 = vld [vmem:[%s645 + $0x390] sm:$0xff]
      %v761 = vld [vmem:[%s645 + $0x398] sm:$0xff]
      %v762 = vld [vmem:[%s645 + $0x3a0] sm:$0xff]
      %v763 = vld [vmem:[%s645 + $0x3a8] sm:$0xff]
      %v764 = vld [vmem:[%s645 + $0x3b0] sm:$0xff]
      %v765 = vld [vmem:[%s645 + $0x3b8] sm:$0xff]
      %v766 = vld [vmem:[%s645 + $0x3c0] sm:$0xff]
      %v767 = vld [vmem:[%s645 + $0x3c8] sm:$0xff]
      %v768 = vld [vmem:[%s645 + $0x3d0] sm:$0xff]
      %v769 = vld [vmem:[%s645 + $0x3d8] sm:$0xff]
      %v770 = vld [vmem:[%s645 + $0x3e0] sm:$0xff]
      %v771 = vld [vmem:[%s645 + $0x3e8] sm:$0xff]
      %v772 = vld [vmem:[%s645 + $0x3f0] sm:$0xff]
      %v773 = vld [vmem:[%s645 + $0x3f8] sm:$0xff]
      %774 = vmatprep.subr.mxu0 0.0
      %775 = vmatpush1.msra.mxu0 %v661
      %776 = vmatprep.subr.mxu0 0.0
      %777 = vmatpush1.msra.mxu0 %v660
      %778 = vmatprep.subr.mxu0 0.0
      %779 = vmatpush1.msra.mxu0 %v659
      %780 = vmatprep.subr.mxu0 0.0
      %781 = vmatpush1.msra.mxu0 %v658
      %782 = vmatprep.subr.mxu0 0.0
      %783 = vmatpush1.msra.mxu0 %v657
      %784 = vmatprep.subr.mxu0 0.0
      %785 = vmatpush1.msra.mxu0 %v656
      %786 = vmatprep.subr.mxu0 0.0
      %787 = vmatpush1.msra.mxu0 %v655
      %788 = vmatprep.subr.mxu0 0.0
      %789 = vmatpush1.msra.mxu0 %v654
      %790 = vmatprep.subr.mxu0 0.0
      %791 = vmatpush1.msra.mxu0 %v653
      %792 = vmatprep.subr.mxu0 0.0
      %793 = vmatpush1.msra.mxu0 %v652
      %794 = vmatprep.subr.mxu0 0.0
      %795 = vmatpush1.msra.mxu0 %v651
      %796 = vmatprep.subr.mxu0 0.0
      %797 = vmatpush1.msra.mxu0 %v650
      %798 = vmatprep.subr.mxu0 0.0
      %799 = vmatpush1.msra.mxu0 %v649
      %800 = vmatprep.subr.mxu0 0.0
      %801 = vmatpush1.msra.mxu0 %v648
      %802 = vmatprep.subr.mxu0 0.0
      %803 = vmatpush1.msra.mxu0 %v647
      %804 = vmatprep.subr.mxu0 0.0
      %805 = vmatpush1.msra.mxu0 %v646
      %806 = vmatprep.subr.mxu0 0.0
      %807 = vmatpush2.msra.mxu0 %v677
      %808 = vmatprep.subr.mxu0 0.0
      %809 = vmatpush2.msra.mxu0 %v676
      %810 = vmatprep.subr.mxu0 0.0
      %811 = vmatpush2.msra.mxu0 %v675
      %812 = vmatprep.subr.mxu0 0.0
      %813 = vmatpush2.msra.mxu0 %v674
      %814 = vmatprep.subr.mxu0 0.0
      %815 = vmatpush2.msra.mxu0 %v673
      %816 = vmatprep.subr.mxu0 0.0
      %817 = vmatpush2.msra.mxu0 %v672
      %818 = vmatprep.subr.mxu0 0.0
      %819 = vmatpush2.msra.mxu0 %v671
      %820 = vmatprep.subr.mxu0 0.0
      %821 = vmatpush2.msra.mxu0 %v670
      %822 = vmatprep.subr.mxu0 0.0
      %823 = vmatpush2.msra.mxu0 %v669
      %824 = vmatprep.subr.mxu0 0.0
      %825 = vmatpush2.msra.mxu0 %v668
      %826 = vmatprep.subr.mxu0 0.0
      %827 = vmatpush2.msra.mxu0 %v667
      %828 = vmatprep.subr.mxu0 0.0
      %829 = vmatpush2.msra.mxu0 %v666
      %830 = vmatprep.subr.mxu0 0.0
      %831 = vmatpush2.msra.mxu0 %v665
      %832 = vmatprep.subr.mxu0 0.0
      %833 = vmatpush2.msra.mxu0 %v664
      %834 = vmatprep.subr.mxu0 0.0
      %835 = vmatpush2.msra.mxu0 %v663
      %836 = vmatprep.subr.mxu0 0.0
      %837 = vmatpush2.msra.mxu0 %v662
      %838 = vmatprep.mubr.f32.mxu0 %v630
      %839 = vmatmul.mubr.f32.gmra.mxu0 %v629
      %v840 = vpop.f32.mrf.mxu0
      %v841 = vadd.f32 0.0, %v840
      %v842 = vpop.f32.mrf.mxu0
      %843 = vmatprep.mubr.f32.mxu0 %v638
      %844 = vmatmul.mubr.f32.gmra.mxu0 %v637
      %v845 = vpop.f32.mrf.mxu0
      %v846 = vadd.f32 0.0, %v845
      %v847 = vpop.f32.mrf.mxu0
      %848 = vdwg.mxu0
      %849 = vmatprep.subr.mxu0 0.0
      %850 = vmatpush1.msra.mxu0 %v693
      %851 = vmatprep.subr.mxu0 0.0
      %852 = vmatpush1.msra.mxu0 %v692
      %853 = vmatprep.subr.mxu0 0.0
      %854 = vmatpush1.msra.mxu0 %v691
      %855 = vmatprep.subr.mxu0 0.0
      %856 = vmatpush1.msra.mxu0 %v690
      %857 = vmatprep.subr.mxu0 0.0
      %858 = vmatpush1.msra.mxu0 %v689
      %859 = vmatprep.subr.mxu0 0.0
      %860 = vmatpush1.msra.mxu0 %v688
      %861 = vmatprep.subr.mxu0 0.0
      %862 = vmatpush1.msra.mxu0 %v687
      %863 = vmatprep.subr.mxu0 0.0
      %864 = vmatpush1.msra.mxu0 %v686
      %865 = vmatprep.subr.mxu0 0.0
      %866 = vmatpush1.msra.mxu0 %v685
      %867 = vmatprep.subr.mxu0 0.0
      %868 = vmatpush1.msra.mxu0 %v684
      %869 = vmatprep.subr.mxu0 0.0
      %870 = vmatpush1.msra.mxu0 %v683
      %871 = vmatprep.subr.mxu0 0.0
      %872 = vmatpush1.msra.mxu0 %v682
      %873 = vmatprep.subr.mxu0 0.0
      %874 = vmatpush1.msra.mxu0 %v681
      %875 = vmatprep.subr.mxu0 0.0
      %876 = vmatpush1.msra.mxu0 %v680
      %877 = vmatprep.subr.mxu0 0.0
      %878 = vmatpush1.msra.mxu0 %v679
      %879 = vmatprep.subr.mxu0 0.0
      %880 = vmatpush1.msra.mxu0 %v678
      %881 = vmatprep.subr.mxu0 0.0
      %882 = vmatpush2.msra.mxu0 %v709
      %883 = vmatprep.subr.mxu0 0.0
      %884 = vmatpush2.msra.mxu0 %v708
      %885 = vmatprep.subr.mxu0 0.0
      %886 = vmatpush2.msra.mxu0 %v707
      %887 = vmatprep.subr.mxu0 0.0
      %888 = vmatpush2.msra.mxu0 %v706
      %889 = vmatprep.subr.mxu0 0.0
      %890 = vmatpush2.msra.mxu0 %v705
      %891 = vmatprep.subr.mxu0 0.0
      %892 = vmatpush2.msra.mxu0 %v704
      %893 = vmatprep.subr.mxu0 0.0
      %894 = vmatpush2.msra.mxu0 %v703
      %895 = vmatprep.subr.mxu0 0.0
      %896 = vmatpush2.msra.mxu0 %v702
      %897 = vmatprep.subr.mxu0 0.0
      %898 = vmatpush2.msra.mxu0 %v701
      %899 = vmatprep.subr.mxu0 0.0
      %900 = vmatpush2.msra.mxu0 %v700
      %901 = vmatprep.subr.mxu0 0.0
      %902 = vmatpush2.msra.mxu0 %v699
      %903 = vmatprep.subr.mxu0 0.0
      %904 = vmatpush2.msra.mxu0 %v698
      %905 = vmatprep.subr.mxu0 0.0
      %906 = vmatpush2.msra.mxu0 %v697
      %907 = vmatprep.subr.mxu0 0.0
      %908 = vmatpush2.msra.mxu0 %v696
      %909 = vmatprep.subr.mxu0 0.0
      %910 = vmatpush2.msra.mxu0 %v695
      %911 = vmatprep.subr.mxu0 0.0
      %912 = vmatpush2.msra.mxu0 %v694
      %913 = vmatprep.mubr.f32.mxu0 %v632
      %914 = vmatmul.mubr.f32.gmra.mxu0 %v631
      %v915 = vpop.f32.mrf.mxu0
      %v916 = vadd.f32 %v841, %v915
      %v917 = vpop.f32.mrf.mxu0
      %918 = vmatprep.mubr.f32.mxu0 %v640
      %919 = vmatmul.mubr.f32.gmra.mxu0 %v639
      %v920 = vpop.f32.mrf.mxu0
      %v921 = vadd.f32 %v846, %v920
      %v922 = vpop.f32.mrf.mxu0
      %923 = vdwg.mxu0
      %924 = vmatprep.subr.mxu0 0.0
      %925 = vmatpush1.msra.mxu0 %v725
      %926 = vmatprep.subr.mxu0 0.0
      %927 = vmatpush1.msra.mxu0 %v724
      %928 = vmatprep.subr.mxu0 0.0
      %929 = vmatpush1.msra.mxu0 %v723
      %930 = vmatprep.subr.mxu0 0.0
      %931 = vmatpush1.msra.mxu0 %v722
      %932 = vmatprep.subr.mxu0 0.0
      %933 = vmatpush1.msra.mxu0 %v721
      %934 = vmatprep.subr.mxu0 0.0
      %935 = vmatpush1.msra.mxu0 %v720
      %936 = vmatprep.subr.mxu0 0.0
      %937 = vmatpush1.msra.mxu0 %v719
      %938 = vmatprep.subr.mxu0 0.0
      %939 = vmatpush1.msra.mxu0 %v718
      %940 = vmatprep.subr.mxu0 0.0
      %941 = vmatpush1.msra.mxu0 %v717
      %942 = vmatprep.subr.mxu0 0.0
      %943 = vmatpush1.msra.mxu0 %v716
      %944 = vmatprep.subr.mxu0 0.0
      %945 = vmatpush1.msra.mxu0 %v715
      %946 = vmatprep.subr.mxu0 0.0
      %947 = vmatpush1.msra.mxu0 %v714
      %948 = vmatprep.subr.mxu0 0.0
      %949 = vmatpush1.msra.mxu0 %v713
      %950 = vmatprep.subr.mxu0 0.0
      %951 = vmatpush1.msra.mxu0 %v712
      %952 = vmatprep.subr.mxu0 0.0
      %953 = vmatpush1.msra.mxu0 %v711
      %954 = vmatprep.subr.mxu0 0.0
      %955 = vmatpush1.msra.mxu0 %v710
      %956 = vmatprep.subr.mxu0 0.0
      %957 = vmatpush2.msra.mxu0 %v741
      %958 = vmatprep.subr.mxu0 0.0
      %959 = vmatpush2.msra.mxu0 %v740
      %960 = vmatprep.subr.mxu0 0.0
      %961 = vmatpush2.msra.mxu0 %v739
      %962 = vmatprep.subr.mxu0 0.0
      %963 = vmatpush2.msra.mxu0 %v738
      %964 = vmatprep.subr.mxu0 0.0
      %965 = vmatpush2.msra.mxu0 %v737
      %966 = vmatprep.subr.mxu0 0.0
      %967 = vmatpush2.msra.mxu0 %v736
      %968 = vmatprep.subr.mxu0 0.0
      %969 = vmatpush2.msra.mxu0 %v735
      %970 = vmatprep.subr.mxu0 0.0
      %971 = vmatpush2.msra.mxu0 %v734
      %972 = vmatprep.subr.mxu0 0.0
      %973 = vmatpush2.msra.mxu0 %v733
      %974 = vmatprep.subr.mxu0 0.0
      %975 = vmatpush2.msra.mxu0 %v732
      %976 = vmatprep.subr.mxu0 0.0
      %977 = vmatpush2.msra.mxu0 %v731
      %978 = vmatprep.subr.mxu0 0.0
      %979 = vmatpush2.msra.mxu0 %v730
      %980 = vmatprep.subr.mxu0 0.0
      %981 = vmatpush2.msra.mxu0 %v729
      %982 = vmatprep.subr.mxu0 0.0
      %983 = vmatpush2.msra.mxu0 %v728
      %984 = vmatprep.subr.mxu0 0.0
      %985 = vmatpush2.msra.mxu0 %v727
      %986 = vmatprep.subr.mxu0 0.0
      %987 = vmatpush2.msra.mxu0 %v726
      %988 = vmatprep.mubr.f32.mxu0 %v634
      %989 = vmatmul.mubr.f32.gmra.mxu0 %v633
      %v990 = vpop.f32.mrf.mxu0
      %v991 = vadd.f32 %v916, %v990
      %v992 = vpop.f32.mrf.mxu0
      %993 = vmatprep.mubr.f32.mxu0 %v642
      %994 = vmatmul.mubr.f32.gmra.mxu0 %v641
      %v995 = vpop.f32.mrf.mxu0
      %v996 = vadd.f32 %v921, %v995
      %v997 = vpop.f32.mrf.mxu0
      %998 = vdwg.mxu0
      %999 = vmatprep.subr.mxu0 0.0
      %1000 = vmatpush1.msra.mxu0 %v757
      %1001 = vmatprep.subr.mxu0 0.0
      %1002 = vmatpush1.msra.mxu0 %v756
      %1003 = vmatprep.subr.mxu0 0.0
      %1004 = vmatpush1.msra.mxu0 %v755
      %1005 = vmatprep.subr.mxu0 0.0
      %1006 = vmatpush1.msra.mxu0 %v754
      %1007 = vmatprep.subr.mxu0 0.0
      %1008 = vmatpush1.msra.mxu0 %v753
      %1009 = vmatprep.subr.mxu0 0.0
      %1010 = vmatpush1.msra.mxu0 %v752
      %1011 = vmatprep.subr.mxu0 0.0
      %1012 = vmatpush1.msra.mxu0 %v751
      %1013 = vmatprep.subr.mxu0 0.0
      %1014 = vmatpush1.msra.mxu0 %v750
      %1015 = vmatprep.subr.mxu0 0.0
      %1016 = vmatpush1.msra.mxu0 %v749
      %1017 = vmatprep.subr.mxu0 0.0
      %1018 = vmatpush1.msra.mxu0 %v748
      %1019 = vmatprep.subr.mxu0 0.0
      %1020 = vmatpush1.msra.mxu0 %v747
      %1021 = vmatprep.subr.mxu0 0.0
      %1022 = vmatpush1.msra.mxu0 %v746
      %1023 = vmatprep.subr.mxu0 0.0
      %1024 = vmatpush1.msra.mxu0 %v745
      %1025 = vmatprep.subr.mxu0 0.0
      %1026 = vmatpush1.msra.mxu0 %v744
      %1027 = vmatprep.subr.mxu0 0.0
      %1028 = vmatpush1.msra.mxu0 %v743
      %1029 = vmatprep.subr.mxu0 0.0
      %1030 = vmatpush1.msra.mxu0 %v742
      %1031 = vmatprep.subr.mxu0 0.0
      %1032 = vmatpush2.msra.mxu0 %v773
      %1033 = vmatprep.subr.mxu0 0.0
      %1034 = vmatpush2.msra.mxu0 %v772
      %1035 = vmatprep.subr.mxu0 0.0
      %1036 = vmatpush2.msra.mxu0 %v771
      %1037 = vmatprep.subr.mxu0 0.0
      %1038 = vmatpush2.msra.mxu0 %v770
      %1039 = vmatprep.subr.mxu0 0.0
      %1040 = vmatpush2.msra.mxu0 %v769
      %1041 = vmatprep.subr.mxu0 0.0
      %1042 = vmatpush2.msra.mxu0 %v768
      %1043 = vmatprep.subr.mxu0 0.0
      %1044 = vmatpush2.msra.mxu0 %v767
      %1045 = vmatprep.subr.mxu0 0.0
      %1046 = vmatpush2.msra.mxu0 %v766
      %1047 = vmatprep.subr.mxu0 0.0
      %1048 = vmatpush2.msra.mxu0 %v765
      %1049 = vmatprep.subr.mxu0 0.0
      %1050 = vmatpush2.msra.mxu0 %v764
      %1051 = vmatprep.subr.mxu0 0.0
      %1052 = vmatpush2.msra.mxu0 %v763
      %1053 = vmatprep.subr.mxu0 0.0
      %1054 = vmatpush2.msra.mxu0 %v762
      %1055 = vmatprep.subr.mxu0 0.0
      %1056 = vmatpush2.msra.mxu0 %v761
      %1057 = vmatprep.subr.mxu0 0.0
      %1058 = vmatpush2.msra.mxu0 %v760
      %1059 = vmatprep.subr.mxu0 0.0
      %1060 = vmatpush2.msra.mxu0 %v759
      %1061 = vmatprep.subr.mxu0 0.0
      %1062 = vmatpush2.msra.mxu0 %v758
      %1063 = vmatprep.mubr.f32.mxu0 %v636
      %1064 = vmatmul.mubr.f32.gmra.mxu0 %v635
      %v1065 = vpop.f32.mrf.mxu0
      %v1066 = vadd.f32 %v991, %v1065
      %v1067 = vpop.f32.mrf.mxu0
      %1068 = vmatprep.mubr.f32.mxu0 %v644
      %1069 = vmatmul.mubr.f32.gmra.mxu0 %v643
      %v1070 = vpop.f32.mrf.mxu0
      %v1071 = vadd.f32 %v996, %v1070
      %v1072 = vpop.f32.mrf.mxu0
      %1073 = vdwg.mxu0
      %v1074 = vadd.f32 %v627, %v1066
      %v1075 = vadd.f32 %v628, %v1071
      %1076 = vst [vmem:[#allocation2] sm:$0xff] %v1074
      %1077 = vst [vmem:[#allocation2 + $0x8] sm:$0xff] %v1075
      %v1078 = vld [vmem:[#allocation2] sm:$0xff]
      %v1079 = vld [vmem:[#allocation2 + $0x8] sm:$0xff]
      %v1080 = vlaneseq
      %v1081 = vshrl.u32 %v1080, 7
      %v1082 = vadd.s32 %v1081, 8
      %vm1083 = vcmp.lt.s32.totalorder %v1081, 0
      %v1084 = vsub.s32 0, %v1081
      %v1085 = vsel %vm1083, %v1084, %v1081
      %v1086 = vshrl.u32 %v1085, 3
      %v1087 = vand.u32 %v1085, 7
      %v1088 = vsub.s32 0, %v1087
      %v1089 = vsel %vm1083, %v1088, %v1087
      %vm1090 = vcmp.lt.s32.totalorder %v1082, 0
      %v1091 = vsub.s32 0, %v1082
      %v1092 = vsel %vm1090, %v1091, %v1082
      %v1093 = vshrl.u32 %v1092, 3
      %v1094 = vand.u32 %v1092, 7
      %v1095 = vsub.s32 0, %v1094
      %v1096 = vsel %vm1090, %v1095, %v1094
      %vm1097 = vcmp.ne.s32.totalorder %v1089, 0
      %vm1098 = vcmp.ne.s32.totalorder %v1096, 0
      %vm1099 = vcmp.lt.s32.totalorder %v1089, 0
      %vm1100 = vcmp.lt.s32.totalorder %v1096, 0
      %vm1101 = vmand %vm1099, %vm1097
      %vm1102 = vmand %vm1100, %vm1098
      %v1103 = vadd.s32 %v1089, 8
      %v1104 = vadd.s32 %v1096, 8
      %v1105 = vsel %vm1101, %v1103, %v1089
      %v1106 = vsel %vm1102, %v1104, %v1096
      %vm1107 = vcmp.lt.s32.totalorder %v1105, 2
      %vm1108 = vcmp.lt.s32.totalorder %v1106, 2
      %v1109 = vsel %vm1107, 1, 0
      %v1110 = vsel %vm1108, 1, 0
      %v1111 = vcvt.s32.f32 %v1109
      %v1112 = vcvt.s32.f32 %v1110
      %v1113 = vmul.f32 %v1078, %v1111
      %v1114 = vmul.f32 %v1079, %v1112
      %v1115 = vadd.f32 %v1113, %v1114
      %v1116 = vrot.slane %v1115, 4
      %v1117 = vadd.f32 %v1115, %v1116
      %v1118 = vrot.slane %v1117, 2
      %v1119 = vadd.f32 %v1117, %v1118
      %v1120 = vrot.slane %v1119, 1
      %v1121 = vadd.f32 %v1119, %v1120
      %v1122 = vmul.f32 %v1121, 0.25
      %v1123 = vmul.f32 %v1113, %v1113
      %v1124 = vmul.f32 %v1114, %v1114
      %v1125 = vadd.f32 %v1123, %v1124
      %v1126 = vrot.slane %v1125, 4
      %v1127 = vadd.f32 %v1125, %v1126
      %v1128 = vrot.slane %v1127, 2
      %v1129 = vadd.f32 %v1127, %v1128
      %v1130 = vrot.slane %v1129, 1
      %v1131 = vadd.f32 %v1129, %v1130
      %v1132 = vmul.f32 %v1131, 0.25
      %v1133 = vmul.f32 %v1122, %v1122
      %v1134 = vsub.f32 %v1132, %v1133
      %v1135 = vmax.f32 %v1134, 0.0
      %v1136 = vsub.f32 %v1113, %v1122
      %v1137 = vsub.f32 %v1114, %v1122
      %v1138 = vadd.f32 %v1135, 1e-05
      %v1139 = vrsqrt.pop %v1138
      %v1140 = vmul.f32 %v1136, %v1139
      %v1141 = vmul.f32 %v1137, %v1139
      %vm1142 = vcmp.ge.f32.partialorder %v1140, 0.0
      %vm1143 = vcmp.ge.f32.partialorder %v1141, 0.0
      %v1144 = vmul.f32 %v1140, 0.2
      %v1145 = vmul.f32 %v1141, 0.2
      %v1146 = vsel %vm1142, %v1140, %v1144
      %v1147 = vsel %vm1143, %v1141, %v1145
      %1148 = vst [vmem:[%s180] sm:$0xff] %v1146
      %1149 = vst [vmem:[%s180 + $0x8] sm:$0xff] %v1147
      %p1150 = scmp.lt.s32.totalorder %s17, 1
      %s1151 = scalar_select %p1150, %s17, 1
      %p1152 = scmp.lt.s32.totalorder %s18, 0
      %s1153 = scalar_select %p1152, %s18, 0
      %s1154 = smul.addr %s1151, 2
      %s1155 = sadd.s32 %s1153, %s1154
      %s1156 = smul.addr %s1155, 8
      %s1157 = scalar_lea.vmem %s2, %s1156
      // Predicated region
      $region29: #{_lambda_.6} parent=27 // pred_check
        %p1158 = pneg %p97
      $region30: #{_lambda_.6} parent=27 // pred_check_branch
        %1160 = sbr.rel (%p1158) target = $region32
      $region31: #{_lambda_.6} parent=27 // pred_region
        _
      $region32: #{_lambda_.6} parent=27 // pred_fallthru
        _
    $region28: #{_lambda_.6} parent=5 // pred_fallthru
      _
    %p1161 = scmp.le.s32.totalorder 2, %s8
    // Predicated region
    $region33: #{_lambda_.6} parent=5 // pred_check
      %p1162 = pneg %p1161
    $region34: #{_lambda_.6} parent=5 // pred_check_branch
      %1164 = sbr.rel (%p1162) target = $region36
    $region35: #{_lambda_.6} parent=5 // pred_region
      %s1165 = ssub.s32 %s8, 2
      // Predicated region
      $region37: #{_lambda_.6} parent=35 // pred_check
        %p1166 = pneg %p103
      $region38: #{_lambda_.6} parent=35 // pred_check_branch
        %1168 = sbr.rel (%p1166) target = $region40
      $region39: #{_lambda_.6} parent=35 // pred_region
        %p1169 = scmp.lt.s32.totalorder %s19, 1
        %s1170 = scalar_select %p1169, %s19, 1
        %p1171 = scmp.lt.s32.totalorder %s20, 0
        %s1172 = scalar_select %p1171, %s20, 0
        %s1173 = smul.addr %s1170, 2
        %s1174 = sadd.s32 %s1172, %s1173
        %s1175 = smul.addr %s1174, 8
        %s1176 = scalar_lea.vmem %s2, %s1175
      $region40: #{_lambda_.6} parent=35 // pred_fallthru
        _
    $region36: #{_lambda_.6} parent=5 // pred_fallthru
      _
  $region6: #{_lambda_.6} parent=0 // loop_footer
    %s12 = sadd.s32 1, %s8
  $region7: #{_lambda_.6} parent=0 // loop_footer_branch
    %7 = sbr.rel target = $region3
  $region8: #{_lambda_.6} parent=0 // loop_exit
    _

// kernel: _lambda_.7
$region0: #{_lambda_.7}
  #allocation0 [shape = 'u32[]', space=smem, size = 0x4, offset = 0x4, fixed_abs, tag = 'smem constant byte address 0x4 - core index']
  #allocation1 [shape = 'u32[144,128]{1,0:T(1,128)}', space=vmem, size = 0x12000, scoped, tag = 'internal scratch']
  #allocation2 [shape = 'f32[8,128]{1,0:T(8,128)}', space=vmem, size = 0x1000, scoped, tag = 'scratch operand']
  %s0 = inlined_call_operand.vmem [shape: f32[2,32,512], index: 0, kind: input, shape index: {}]
  %s1 = inlined_call_operand.vmem [shape: f32[4,512,128], index: 1, kind: input, shape index: {}]
  %s2 = inlined_call_operand.vmem [shape: f32[1,128], index: 2, kind: input, shape index: {}]
  %s3 = inlined_call_operand.vmem [shape: f32[2,8,128], index: 3, kind: output, shape index: {}]
  %s4 = sld [smem:[#allocation0]]
  $region45: #{_lambda_.7} parent=0
    _
  %s6 = ssub.s32 1, %s4
  %s7 = scalar_select 0, %s6, %s4
  loop: start=0, step=1, limit=4
  $region2: #{_lambda_.7} parent=0 // loop_pre_header
    _
  $region3: #{_lambda_.7} parent=0 // loop_header
    %s9 = sphi 0, %s13
    %p10 = scmp.ge.s32.totalorder %s9, 4
    %s16 = sphi 0, %s28
    %s17 = sphi 0, %s24
    %s18 = sphi 0, %s16
    %s19 = sphi 0, %s17
    %s20 = sphi 0, %s18
    %s21 = sphi 0, %s19
    %s31 = sphi 0, %s33
    %s34 = sphi 0, %s31
    %s35 = sphi 0, %s34
    %s51 = sphi 0, %s35
    %s57 = sphi 0, %s59
    %s60 = sphi 0, %s57
    %s61 = sphi 0, %s60
    %s77 = sphi 0, %s61
    %s83 = sphi 0, %s85
    %s86 = sphi 0, %s83
    %s87 = sphi 0, %s86
    %s103 = sphi 0, %s87
    %s111 = sphi 0, %s113
    %s114 = sphi 0, %s111
    %s115 = sphi 0, %s114
    %s131 = sphi 0, %s115
  $region4: #{_lambda_.7} parent=0 // loop_header_branch
    %12 = sbr.rel (%p10) target = $region8
  $region5: #{_lambda_.7} parent=0 // loop_body
    %s14 = ssub.s32 %s9, 1
    %s15 = ssub.s32 %s9, 2
    %s22 = sadd.s32 1, %s17
    %p23 = scmp.ge.s32.totalorder %s22, 1
    %s24 = scalar_select %p23, 0, %s22
    %s25 = sadd.s32 1, %s16
    %s26 = scalar_select %p23, %s25, %s16
    %p27 = scmp.ge.s32.totalorder %s26, 2
    %s28 = scalar_select %p27, 0, %s26
    %s29 = ssub.s32 %s16, %s28
    %p30 = scmp.eq.s32.totalorder %s29, 0
    %s32 = sadd.s32 %s31, 1
    %s33 = scalar_select %p30, %s31, %s32
    %p36 = pneg %p30
    %p37 = scmp.eq.s32.totalorder %s9, 1
    %p38 = por %p36, %p37
    %p39 = scmp.ne.s32.totalorder %s31, %s34
    %p40 = scmp.eq.s32.totalorder %s9, 0
    %p41 = por %p39, %p40
    %p42 = scmp.ne.s32.totalorder %s31, %s34
    %p43 = scmp.eq.s32.totalorder %s14, 1
    %p44 = por %p42, %p43
    %p45 = scmp.ne.s32.totalorder %s34, %s35
    %p46 = scmp.eq.s32.totalorder %s14, 0
    %p47 = por %p45, %p46
    %p48 = scmp.ne.s32.totalorder %s34, %s35
    %p49 = scmp.eq.s32.totalorder %s15, 1
    %p50 = por %p48, %p49
    %p52 = scmp.ne.s32.totalorder %s35, %s51
    %p53 = scmp.eq.s32.totalorder %s15, 0
    %p54 = por %p52, %p53
    %s55 = ssub.s32 %s17, %s24
    %p56 = scmp.eq.s32.totalorder %s55, 0
    %s58 = sadd.s32 %s57, 1
    %s59 = scalar_select %p56, %s57, %s58
    %p62 = pneg %p56
    %p63 = scmp.eq.s32.totalorder %s9, 1
    %p64 = por %p62, %p63
    %p65 = scmp.ne.s32.totalorder %s57, %s60
    %p66 = scmp.eq.s32.totalorder %s9, 0
    %p67 = por %p65, %p66
    %p68 = scmp.ne.s32.totalorder %s57, %s60
    %p69 = scmp.eq.s32.totalorder %s14, 1
    %p70 = por %p68, %p69
    %p71 = scmp.ne.s32.totalorder %s60, %s61
    %p72 = scmp.eq.s32.totalorder %s14, 0
    %p73 = por %p71, %p72
    %p74 = scmp.ne.s32.totalorder %s60, %s61
    %p75 = scmp.eq.s32.totalorder %s15, 1
    %p76 = por %p74, %p75
    %p78 = scmp.ne.s32.totalorder %s61, %s77
    %p79 = scmp.eq.s32.totalorder %s15, 0
    %p80 = por %p78, %p79
    %s81 = ssub.s32 %s17, %s24
    %p82 = scmp.eq.s32.totalorder %s81, 0
    %s84 = sadd.s32 %s83, 1
    %s85 = scalar_select %p82, %s83, %s84
    %p88 = pneg %p82
    %p89 = scmp.eq.s32.totalorder %s9, 1
    %p90 = por %p88, %p89
    %p91 = scmp.ne.s32.totalorder %s83, %s86
    %p92 = scmp.eq.s32.totalorder %s9, 0
    %p93 = por %p91, %p92
    %p94 = scmp.ne.s32.totalorder %s83, %s86
    %p95 = scmp.eq.s32.totalorder %s14, 1
    %p96 = por %p94, %p95
    %p97 = scmp.ne.s32.totalorder %s86, %s87
    %p98 = scmp.eq.s32.totalorder %s14, 0
    %p99 = por %p97, %p98
    %p100 = scmp.ne.s32.totalorder %s86, %s87
    %p101 = scmp.eq.s32.totalorder %s15, 1
    %p102 = por %p100, %p101
    %p104 = scmp.ne.s32.totalorder %s87, %s103
    %p105 = scmp.eq.s32.totalorder %s15, 0
    %p106 = por %p104, %p105
    %s107 = ssub.s32 %s16, %s28
    %s108 = ssub.s32 %s17, %s24
    %s109 = sor.u32 %s107, %s108
    %p110 = scmp.eq.s32.totalorder %s109, 0
    %s112 = sadd.s32 %s111, 1
    %s113 = scalar_select %p110, %s111, %s112
    %p116 = pneg %p110
    %p117 = scmp.eq.s32.totalorder %s9, 1
    %p118 = por %p116, %p117
    %p119 = scmp.ne.s32.totalorder %s111, %s114
    %p120 = scmp.eq.s32.totalorder %s9, 0
    %p121 = por %p119, %p120
    %p122 = scmp.ne.s32.totalorder %s111, %s114
    %p123 = scmp.eq.s32.totalorder %s14, 1
    %p124 = por %p122, %p123
    %p125 = scmp.ne.s32.totalorder %s114, %s115
    %p126 = scmp.eq.s32.totalorder %s14, 0
    %p127 = por %p125, %p126
    %p128 = scmp.ne.s32.totalorder %s114, %s115
    %p129 = scmp.eq.s32.totalorder %s15, 1
    %p130 = por %p128, %p129
    %p132 = scmp.ne.s32.totalorder %s115, %s131
    %p133 = scmp.eq.s32.totalorder %s15, 0
    %p134 = por %p132, %p133
    %p135 = scmp.le.s32.totalorder 1, %s9
    %p136 = scmp.lt.s32.totalorder %s9, 3
    %p137 = pnand %p135, %p136
    %p138 = pneg %p137
    // Predicated region
    $region9: #{_lambda_.7} parent=5 // pred_check
      _
    $region10: #{_lambda_.7} parent=5 // pred_check_branch
      %140 = sbr.rel (%p137) target = $region12
    $region11: #{_lambda_.7} parent=5 // pred_region
      %s141 = ssub.s32 %s9, 1
      // Predicated region
      $region13: #{_lambda_.7} parent=11 // pred_check
        %p142 = pneg %p73
      $region14: #{_lambda_.7} parent=11 // pred_check_branch
        %144 = sbr.rel (%p142) target = $region16
      $region15: #{_lambda_.7} parent=11 // pred_region
        %p145 = scmp.lt.s32.totalorder %s19, 0
        %s146 = scalar_select %p145, %s19, 0
        %s147 = smul.addr %s146, 8
        %s148 = scalar_lea.vmem %s1, %s147
      $region16: #{_lambda_.7} parent=11 // pred_fallthru
        _
      // Predicated region
      $region17: #{_lambda_.7} parent=11 // pred_check
        %p149 = pneg %p99
      $region18: #{_lambda_.7} parent=11 // pred_check_branch
        %151 = sbr.rel (%p149) target = $region20
      $region19: #{_lambda_.7} parent=11 // pred_region
        %p152 = scmp.lt.s32.totalorder %s19, 0
        %s153 = scalar_select %p152, %s19, 0
        %s154 = scalar_lea.vmem %s2, %s153
      $region20: #{_lambda_.7} parent=11 // pred_fallthru
        _
    $region12: #{_lambda_.7} parent=5 // pred_fallthru
      _
    %p155 = scmp.lt.s32.totalorder %s9, 2
    // Predicated region
    $region21: #{_lambda_.7} parent=5 // pred_check
      %p156 = pneg %p155
    $region22: #{_lambda_.7} parent=5 // pred_check_branch
      %158 = sbr.rel (%p156) target = $region24
    $region23: #{_lambda_.7} parent=5 // pred_region
      // Predicated region
      $region25: #{_lambda_.7} parent=23 // pred_check
        %p159 = pneg %p41
      $region26: #{_lambda_.7} parent=23 // pred_check_branch
        %161 = sbr.rel (%p159) target = $region28
      $region27: #{_lambda_.7} parent=23 // pred_region
        %p162 = scmp.lt.s32.totalorder %s16, 1
        %s163 = scalar_select %p162, %s16, 1
        %s164 = smul.addr %s163, 16
        %s165 = smul.addr %s164, 8
        %s166 = scalar_lea.vmem %s0, %s165
      $region28: #{_lambda_.7} parent=23 // pred_fallthru
        _
    $region24: #{_lambda_.7} parent=5 // pred_fallthru
      _
    %p167 = scmp.le.s32.totalorder 1, %s9
    %p168 = scmp.lt.s32.totalorder %s9, 3
    %p169 = pnand %p167, %p168
    %p170 = pneg %p169
    // Predicated region
    $region29: #{_lambda_.7} parent=5 // pred_check
      _
    $region30: #{_lambda_.7} parent=5 // pred_check_branch
      %172 = sbr.rel (%p169) target = $region32
    $region31: #{_lambda_.7} parent=5 // pred_region
      %s173 = ssub.s32 %s9, 1
      %p174 = scmp.lt.s32.totalorder %s18, 1
      %s175 = scalar_select %p174, %s18, 1
      %s176 = smul.addr %s175, 16
      %s177 = smul.addr %s176, 8
      %s178 = scalar_lea.vmem %s0, %s177
      %p179 = pneg %p47
      %p180 = pneg %p44
      %p181 = scmp.lt.s32.totalorder %s19, 0
      %s182 = scalar_select %p181, %s19, 0
      %s183 = smul.addr %s182, 8
      %s184 = scalar_lea.vmem %s1, %s183
      %p185 = pneg %p73
      %p186 = pneg %p70
      %p187 = scmp.lt.s32.totalorder %s19, 0
      %s188 = scalar_select %p187, %s19, 0
      %s189 = scalar_lea.vmem %s2, %s188
      %p190 = pneg %p99
      %p191 = pneg %p96
      %p192 = pneg %p127
      %p193 = pneg %p124
      %p194 = scmp.lt.s32.totalorder %s18, 1
      %s195 = scalar_select %p194, %s18, 1
      %p196 = scmp.lt.s32.totalorder %s19, 0
      %s197 = scalar_select %p196, %s19, 0
      %s198 = sadd.s32 %s197, %s195
      %s199 = smul.addr %s198, 8
      %s200 = scalar_lea.vmem %s3, %s199
      %p201 = scmp.lt.s32.totalorder %s18, 1
      %s202 = scalar_select %p201, %s18, 1
      %s203 = smul.addr %s202, 16
      %s204 = smul.addr %s203, 8
      %s205 = scalar_lea.vmem %s0, %s204
      %p206 = scmp.lt.s32.totalorder %s19, 0
      %s207 = scalar_select %p206, %s19, 0
      %s208 = smul.addr %s207, 8
      %s209 = scalar_lea.vmem %s1, %s208
      %p210 = scmp.lt.s32.totalorder %s19, 0
      %s211 = scalar_select %p210, %s19, 0
      %s212 = scalar_lea.vmem %s2, %s211
      %p213 = scmp.lt.s32.totalorder %s18, 1
      %s214 = scalar_select %p213, %s18, 1
      %p215 = scmp.lt.s32.totalorder %s19, 0
      %s216 = scalar_select %p215, %s19, 0
      %s217 = sadd.s32 %s216, %s214
      %s218 = smul.addr %s217, 8
      %s219 = scalar_lea.vmem %s3, %s218
      %v220 = vld [vmem:[%s205] sm:$0xff]
      %v221 = vld [vmem:[%s205 + $0x8] sm:$0xff]
      %v222 = vld [vmem:[%s205 + $0x10] sm:$0xff]
      %v223 = vld [vmem:[%s205 + $0x18] sm:$0xff]
      %v224 = vld [vmem:[%s209] sm:$0xff]
      %v225 = vld [vmem:[%s209 + $0x8] sm:$0xff]
      %v226 = vld [vmem:[%s209 + $0x10] sm:$0xff]
      %v227 = vld [vmem:[%s209 + $0x18] sm:$0xff]
      %v228 = vld [vmem:[%s209 + $0x20] sm:$0xff]
      %v229 = vld [vmem:[%s209 + $0x28] sm:$0xff]
      %v230 = vld [vmem:[%s209 + $0x30] sm:$0xff]
      %v231 = vld [vmem:[%s209 + $0x38] sm:$0xff]
      %v232 = vld [vmem:[%s209 + $0x40] sm:$0xff]
      %v233 = vld [vmem:[%s209 + $0x48] sm:$0xff]
      %v234 = vld [vmem:[%s209 + $0x50] sm:$0xff]
      %v235 = vld [vmem:[%s209 + $0x58] sm:$0xff]
      %v236 = vld [vmem:[%s209 + $0x60] sm:$0xff]
      %v237 = vld [vmem:[%s209 + $0x68] sm:$0xff]
      %v238 = vld [vmem:[%s209 + $0x70] sm:$0xff]
      %v239 = vld [vmem:[%s209 + $0x78] sm:$0xff]
      %v240 = vld [vmem:[%s209 + $0x80] sm:$0xff]
      %v241 = vld [vmem:[%s209 + $0x88] sm:$0xff]
      %v242 = vld [vmem:[%s209 + $0x90] sm:$0xff]
      %v243 = vld [vmem:[%s209 + $0x98] sm:$0xff]
      %v244 = vld [vmem:[%s209 + $0xa0] sm:$0xff]
      %v245 = vld [vmem:[%s209 + $0xa8] sm:$0xff]
      %v246 = vld [vmem:[%s209 + $0xb0] sm:$0xff]
      %v247 = vld [vmem:[%s209 + $0xb8] sm:$0xff]
      %v248 = vld [vmem:[%s209 + $0xc0] sm:$0xff]
      %v249 = vld [vmem:[%s209 + $0xc8] sm:$0xff]
      %v250 = vld [vmem:[%s209 + $0xd0] sm:$0xff]
      %v251 = vld [vmem:[%s209 + $0xd8] sm:$0xff]
      %v252 = vld [vmem:[%s209 + $0xe0] sm:$0xff]
      %v253 = vld [vmem:[%s209 + $0xe8] sm:$0xff]
      %v254 = vld [vmem:[%s209 + $0xf0] sm:$0xff]
      %v255 = vld [vmem:[%s209 + $0xf8] sm:$0xff]
      %v256 = vld [vmem:[%s209 + $0x100] sm:$0xff]
      %v257 = vld [vmem:[%s209 + $0x108] sm:$0xff]
      %v258 = vld [vmem:[%s209 + $0x110] sm:$0xff]
      %v259 = vld [vmem:[%s209 + $0x118] sm:$0xff]
      %v260 = vld [vmem:[%s209 + $0x120] sm:$0xff]
      %v261 = vld [vmem:[%s209 + $0x128] sm:$0xff]
      %v262 = vld [vmem:[%s209 + $0x130] sm:$0xff]
      %v263 = vld [vmem:[%s209 + $0x138] sm:$0xff]
      %v264 = vld [vmem:[%s209 + $0x140] sm:$0xff]
      %v265 = vld [vmem:[%s209 + $0x148] sm:$0xff]
      %v266 = vld [vmem:[%s209 + $0x150] sm:$0xff]
      %v267 = vld [vmem:[%s209 + $0x158] sm:$0xff]
      %v268 = vld [vmem:[%s209 + $0x160] sm:$0xff]
      %v269 = vld [vmem:[%s209 + $0x168] sm:$0xff]
      %v270 = vld [vmem:[%s209 + $0x170] sm:$0xff]
      %v271 = vld [vmem:[%s209 + $0x178] sm:$0xff]
      %v272 = vld [vmem:[%s209 + $0x180] sm:$0xff]
      %v273 = vld [vmem:[%s209 + $0x188] sm:$0xff]
      %v274 = vld [vmem:[%s209 + $0x190] sm:$0xff]
      %v275 = vld [vmem:[%s209 + $0x198] sm:$0xff]
      %v276 = vld [vmem:[%s209 + $0x1a0] sm:$0xff]
      %v277 = vld [vmem:[%s209 + $0x1a8] sm:$0xff]
      %v278 = vld [vmem:[%s209 + $0x1b0] sm:$0xff]
      %v279 = vld [vmem:[%s209 + $0x1b8] sm:$0xff]
      %v280 = vld [vmem:[%s209 + $0x1c0] sm:$0xff]
      %v281 = vld [vmem:[%s209 + $0x1c8] sm:$0xff]
      %v282 = vld [vmem:[%s209 + $0x1d0] sm:$0xff]
      %v283 = vld [vmem:[%s209 + $0x1d8] sm:$0xff]
      %v284 = vld [vmem:[%s209 + $0x1e0] sm:$0xff]
      %v285 = vld [vmem:[%s209 + $0x1e8] sm:$0xff]
      %v286 = vld [vmem:[%s209 + $0x1f0] sm:$0xff]
      %v287 = vld [vmem:[%s209 + $0x1f8] sm:$0xff]
      %288 = vmatprep.subr.mxu0 0.0
      %289 = vmatpush1.msra.mxu0 %v239
      %290 = vmatprep.subr.mxu0 0.0
      %291 = vmatpush1.msra.mxu0 %v238
      %292 = vmatprep.subr.mxu0 0.0
      %293 = vmatpush1.msra.mxu0 %v237
      %294 = vmatprep.subr.mxu0 0.0
      %295 = vmatpush1.msra.mxu0 %v236
      %296 = vmatprep.subr.mxu0 0.0
      %297 = vmatpush1.msra.mxu0 %v235
      %298 = vmatprep.subr.mxu0 0.0
      %299 = vmatpush1.msra.mxu0 %v234
      %300 = vmatprep.subr.mxu0 0.0
      %301 = vmatpush1.msra.mxu0 %v233
      %302 = vmatprep.subr.mxu0 0.0
      %303 = vmatpush1.msra.mxu0 %v232
      %304 = vmatprep.subr.mxu0 0.0
      %305 = vmatpush1.msra.mxu0 %v231
      %306 = vmatprep.subr.mxu0 0.0
      %307 = vmatpush1.msra.mxu0 %v230
      %308 = vmatprep.subr.mxu0 0.0
      %309 = vmatpush1.msra.mxu0 %v229
      %310 = vmatprep.subr.mxu0 0.0
      %311 = vmatpush1.msra.mxu0 %v228
      %312 = vmatprep.subr.mxu0 0.0
      %313 = vmatpush1.msra.mxu0 %v227
      %314 = vmatprep.subr.mxu0 0.0
      %315 = vmatpush1.msra.mxu0 %v226
      %316 = vmatprep.subr.mxu0 0.0
      %317 = vmatpush1.msra.mxu0 %v225
      %318 = vmatprep.subr.mxu0 0.0
      %319 = vmatpush1.msra.mxu0 %v224
      %320 = vmatprep.subr.mxu0 0.0
      %321 = vmatpush2.msra.mxu0 %v255
      %322 = vmatprep.subr.mxu0 0.0
      %323 = vmatpush2.msra.mxu0 %v254
      %324 = vmatprep.subr.mxu0 0.0
      %325 = vmatpush2.msra.mxu0 %v253
      %326 = vmatprep.subr.mxu0 0.0
      %327 = vmatpush2.msra.mxu0 %v252
      %328 = vmatprep.subr.mxu0 0.0
      %329 = vmatpush2.msra.mxu0 %v251
      %330 = vmatprep.subr.mxu0 0.0
      %331 = vmatpush2.msra.mxu0 %v250
      %332 = vmatprep.subr.mxu0 0.0
      %333 = vmatpush2.msra.mxu0 %v249
      %334 = vmatprep.subr.mxu0 0.0
      %335 = vmatpush2.msra.mxu0 %v248
      %336 = vmatprep.subr.mxu0 0.0
      %337 = vmatpush2.msra.mxu0 %v247
      %338 = vmatprep.subr.mxu0 0.0
      %339 = vmatpush2.msra.mxu0 %v246
      %340 = vmatprep.subr.mxu0 0.0
      %341 = vmatpush2.msra.mxu0 %v245
      %342 = vmatprep.subr.mxu0 0.0
      %343 = vmatpush2.msra.mxu0 %v244
      %344 = vmatprep.subr.mxu0 0.0
      %345 = vmatpush2.msra.mxu0 %v243
      %346 = vmatprep.subr.mxu0 0.0
      %347 = vmatpush2.msra.mxu0 %v242
      %348 = vmatprep.subr.mxu0 0.0
      %349 = vmatpush2.msra.mxu0 %v241
      %350 = vmatprep.subr.mxu0 0.0
      %351 = vmatpush2.msra.mxu0 %v240
      %352 = vmatprep.mubr.f32.mxu0 %v221
      %353 = vmatmul.mubr.f32.gmra.mxu0 %v220
      %v354 = vpop.f32.mrf.mxu0
      %v355 = vadd.f32 0.0, %v354
      %v356 = vpop.f32.mrf.mxu0
      %357 = vdwg.mxu0
      %358 = vmatprep.subr.mxu0 0.0
      %359 = vmatpush1.msra.mxu0 %v271
      %360 = vmatprep.subr.mxu0 0.0
      %361 = vmatpush1.msra.mxu0 %v270
      %362 = vmatprep.subr.mxu0 0.0
      %363 = vmatpush1.msra.mxu0 %v269
      %364 = vmatprep.subr.mxu0 0.0
      %365 = vmatpush1.msra.mxu0 %v268
      %366 = vmatprep.subr.mxu0 0.0
      %367 = vmatpush1.msra.mxu0 %v267
      %368 = vmatprep.subr.mxu0 0.0
      %369 = vmatpush1.msra.mxu0 %v266
      %370 = vmatprep.subr.mxu0 0.0
      %371 = vmatpush1.msra.mxu0 %v265
      %372 = vmatprep.subr.mxu0 0.0
      %373 = vmatpush1.msra.mxu0 %v264
      %374 = vmatprep.subr.mxu0 0.0
      %375 = vmatpush1.msra.mxu0 %v263
      %376 = vmatprep.subr.mxu0 0.0
      %377 = vmatpush1.msra.mxu0 %v262
      %378 = vmatprep.subr.mxu0 0.0
      %379 = vmatpush1.msra.mxu0 %v261
      %380 = vmatprep.subr.mxu0 0.0
      %381 = vmatpush1.msra.mxu0 %v260
      %382 = vmatprep.subr.mxu0 0.0
      %383 = vmatpush1.msra.mxu0 %v259
      %384 = vmatprep.subr.mxu0 0.0
      %385 = vmatpush1.msra.mxu0 %v258
      %386 = vmatprep.subr.mxu0 0.0
      %387 = vmatpush1.msra.mxu0 %v257
      %388 = vmatprep.subr.mxu0 0.0
      %389 = vmatpush1.msra.mxu0 %v256
      %390 = vmatprep.subr.mxu0 0.0
      %391 = vmatpush2.msra.mxu0 %v287
      %392 = vmatprep.subr.mxu0 0.0
      %393 = vmatpush2.msra.mxu0 %v286
      %394 = vmatprep.subr.mxu0 0.0
      %395 = vmatpush2.msra.mxu0 %v285
      %396 = vmatprep.subr.mxu0 0.0
      %397 = vmatpush2.msra.mxu0 %v284
      %398 = vmatprep.subr.mxu0 0.0
      %399 = vmatpush2.msra.mxu0 %v283
      %400 = vmatprep.subr.mxu0 0.0
      %401 = vmatpush2.msra.mxu0 %v282
      %402 = vmatprep.subr.mxu0 0.0
      %403 = vmatpush2.msra.mxu0 %v281
      %404 = vmatprep.subr.mxu0 0.0
      %405 = vmatpush2.msra.mxu0 %v280
      %406 = vmatprep.subr.mxu0 0.0
      %407 = vmatpush2.msra.mxu0 %v279
      %408 = vmatprep.subr.mxu0 0.0
      %409 = vmatpush2.msra.mxu0 %v278
      %410 = vmatprep.subr.mxu0 0.0
      %411 = vmatpush2.msra.mxu0 %v277
      %412 = vmatprep.subr.mxu0 0.0
      %413 = vmatpush2.msra.mxu0 %v276
      %414 = vmatprep.subr.mxu0 0.0
      %415 = vmatpush2.msra.mxu0 %v275
      %416 = vmatprep.subr.mxu0 0.0
      %417 = vmatpush2.msra.mxu0 %v274
      %418 = vmatprep.subr.mxu0 0.0
      %419 = vmatpush2.msra.mxu0 %v273
      %420 = vmatprep.subr.mxu0 0.0
      %421 = vmatpush2.msra.mxu0 %v272
      %422 = vmatprep.mubr.f32.mxu0 %v223
      %423 = vmatmul.mubr.f32.gmra.mxu0 %v222
      %v424 = vpop.f32.mrf.mxu0
      %v425 = vadd.f32 %v355, %v424
      %v426 = vpop.f32.mrf.mxu0
      %427 = vdwg.mxu0
      %428 = vst [vmem:[#allocation2] sm:$0xff] %v425
      %v429 = vld [vmem:[#allocation2] sm:$0xff]
      %v430 = vld [vmem:[%s205 + $0x20] sm:$0xff]
      %v431 = vld [vmem:[%s205 + $0x28] sm:$0xff]
      %v432 = vld [vmem:[%s205 + $0x30] sm:$0xff]
      %v433 = vld [vmem:[%s205 + $0x38] sm:$0xff]
      %s434 = scalar_lea.vmem %s209, 512
      %v435 = vld [vmem:[%s434] sm:$0xff]
      %v436 = vld [vmem:[%s434 + $0x8] sm:$0xff]
      %v437 = vld [vmem:[%s434 + $0x10] sm:$0xff]
      %v438 = vld [vmem:[%s434 + $0x18] sm:$0xff]
      %v439 = vld [vmem:[%s434 + $0x20] sm:$0xff]
      %v440 = vld [vmem:[%s434 + $0x28] sm:$0xff]
      %v441 = vld [vmem:[%s434 + $0x30] sm:$0xff]
      %v442 = vld [vmem:[%s434 + $0x38] sm:$0xff]
      %v443 = vld [vmem:[%s434 + $0x40] sm:$0xff]
      %v444 = vld [vmem:[%s434 + $0x48] sm:$0xff]
      %v445 = vld [vmem:[%s434 + $0x50] sm:$0xff]
      %v446 = vld [vmem:[%s434 + $0x58] sm:$0xff]
      %v447 = vld [vmem:[%s434 + $0x60] sm:$0xff]
      %v448 = vld [vmem:[%s434 + $0x68] sm:$0xff]
      %v449 = vld [vmem:[%s434 + $0x70] sm:$0xff]
      %v450 = vld [vmem:[%s434 + $0x78] sm:$0xff]
      %v451 = vld [vmem:[%s434 + $0x80] sm:$0xff]
      %v452 = vld [vmem:[%s434 + $0x88] sm:$0xff]
      %v453 = vld [vmem:[%s434 + $0x90] sm:$0xff]
      %v454 = vld [vmem:[%s434 + $0x98] sm:$0xff]
      %v455 = vld [vmem:[%s434 + $0xa0] sm:$0xff]
      %v456 = vld [vmem:[%s434 + $0xa8] sm:$0xff]
      %v457 = vld [vmem:[%s434 + $0xb0] sm:$0xff]
      %v458 = vld [vmem:[%s434 + $0xb8] sm:$0xff]
      %v459 = vld [vmem:[%s434 + $0xc0] sm:$0xff]
      %v460 = vld [vmem:[%s434 + $0xc8] sm:$0xff]
      %v461 = vld [vmem:[%s434 + $0xd0] sm:$0xff]
      %v462 = vld [vmem:[%s434 + $0xd8] sm:$0xff]
      %v463 = vld [vmem:[%s434 + $0xe0] sm:$0xff]
      %v464 = vld [vmem:[%s434 + $0xe8] sm:$0xff]
      %v465 = vld [vmem:[%s434 + $0xf0] sm:$0xff]
      %v466 = vld [vmem:[%s434 + $0xf8] sm:$0xff]
      %v467 = vld [vmem:[%s434 + $0x100] sm:$0xff]
      %v468 = vld [vmem:[%s434 + $0x108] sm:$0xff]
      %v469 = vld [vmem:[%s434 + $0x110] sm:$0xff]
      %v470 = vld [vmem:[%s434 + $0x118] sm:$0xff]
      %v471 = vld [vmem:[%s434 + $0x120] sm:$0xff]
      %v472 = vld [vmem:[%s434 + $0x128] sm:$0xff]
      %v473 = vld [vmem:[%s434 + $0x130] sm:$0xff]
      %v474 = vld [vmem:[%s434 + $0x138] sm:$0xff]
      %v475 = vld [vmem:[%s434 + $0x140] sm:$0xff]
      %v476 = vld [vmem:[%s434 + $0x148] sm:$0xff]
      %v477 = vld [vmem:[%s434 + $0x150] sm:$0xff]
      %v478 = vld [vmem:[%s434 + $0x158] sm:$0xff]
      %v479 = vld [vmem:[%s434 + $0x160] sm:$0xff]
      %v480 = vld [vmem:[%s434 + $0x168] sm:$0xff]
      %v481 = vld [vmem:[%s434 + $0x170] sm:$0xff]
      %v482 = vld [vmem:[%s434 + $0x178] sm:$0xff]
      %v483 = vld [vmem:[%s434 + $0x180] sm:$0xff]
      %v484 = vld [vmem:[%s434 + $0x188] sm:$0xff]
      %v485 = vld [vmem:[%s434 + $0x190] sm:$0xff]
      %v486 = vld [vmem:[%s434 + $0x198] sm:$0xff]
      %v487 = vld [vmem:[%s434 + $0x1a0] sm:$0xff]
      %v488 = vld [vmem:[%s434 + $0x1a8] sm:$0xff]
      %v489 = vld [vmem:[%s434 + $0x1b0] sm:$0xff]
      %v490 = vld [vmem:[%s434 + $0x1b8] sm:$0xff]
      %v491 = vld [vmem:[%s434 + $0x1c0] sm:$0xff]
      %v492 = vld [vmem:[%s434 + $0x1c8] sm:$0xff]
      %v493 = vld [vmem:[%s434 + $0x1d0] sm:$0xff]
      %v494 = vld [vmem:[%s434 + $0x1d8] sm:$0xff]
      %v495 = vld [vmem:[%s434 + $0x1e0] sm:$0xff]
      %v496 = vld [vmem:[%s434 + $0x1e8] sm:$0xff]
      %v497 = vld [vmem:[%s434 + $0x1f0] sm:$0xff]
      %v498 = vld [vmem:[%s434 + $0x1f8] sm:$0xff]
      %499 = vmatprep.subr.mxu0 0.0
      %500 = vmatpush1.msra.mxu0 %v450
      %501 = vmatprep.subr.mxu0 0.0
      %502 = vmatpush1.msra.mxu0 %v449
      %503 = vmatprep.subr.mxu0 0.0
      %504 = vmatpush1.msra.mxu0 %v448
      %505 = vmatprep.subr.mxu0 0.0
      %506 = vmatpush1.msra.mxu0 %v447
      %507 = vmatprep.subr.mxu0 0.0
      %508 = vmatpush1.msra.mxu0 %v446
      %509 = vmatprep.subr.mxu0 0.0
      %510 = vmatpush1.msra.mxu0 %v445
      %511 = vmatprep.subr.mxu0 0.0
      %512 = vmatpush1.msra.mxu0 %v444
      %513 = vmatprep.subr.mxu0 0.0
      %514 = vmatpush1.msra.mxu0 %v443
      %515 = vmatprep.subr.mxu0 0.0
      %516 = vmatpush1.msra.mxu0 %v442
      %517 = vmatprep.subr.mxu0 0.0
      %518 = vmatpush1.msra.mxu0 %v441
      %519 = vmatprep.subr.mxu0 0.0
      %520 = vmatpush1.msra.mxu0 %v440
      %521 = vmatprep.subr.mxu0 0.0
      %522 = vmatpush1.msra.mxu0 %v439
      %523 = vmatprep.subr.mxu0 0.0
      %524 = vmatpush1.msra.mxu0 %v438
      %525 = vmatprep.subr.mxu0 0.0
      %526 = vmatpush1.msra.mxu0 %v437
      %527 = vmatprep.subr.mxu0 0.0
      %528 = vmatpush1.msra.mxu0 %v436
      %529 = vmatprep.subr.mxu0 0.0
      %530 = vmatpush1.msra.mxu0 %v435
      %531 = vmatprep.subr.mxu0 0.0
      %532 = vmatpush2.msra.mxu0 %v466
      %533 = vmatprep.subr.mxu0 0.0
      %534 = vmatpush2.msra.mxu0 %v465
      %535 = vmatprep.subr.mxu0 0.0
      %536 = vmatpush2.msra.mxu0 %v464
      %537 = vmatprep.subr.mxu0 0.0
      %538 = vmatpush2.msra.mxu0 %v463
      %539 = vmatprep.subr.mxu0 0.0
      %540 = vmatpush2.msra.mxu0 %v462
      %541 = vmatprep.subr.mxu0 0.0
      %542 = vmatpush2.msra.mxu0 %v461
      %543 = vmatprep.subr.mxu0 0.0
      %544 = vmatpush2.msra.mxu0 %v460
      %545 = vmatprep.subr.mxu0 0.0
      %546 = vmatpush2.msra.mxu0 %v459
      %547 = vmatprep.subr.mxu0 0.0
      %548 = vmatpush2.msra.mxu0 %v458
      %549 = vmatprep.subr.mxu0 0.0
      %550 = vmatpush2.msra.mxu0 %v457
      %551 = vmatprep.subr.mxu0 0.0
      %552 = vmatpush2.msra.mxu0 %v456
      %553 = vmatprep.subr.mxu0 0.0
      %554 = vmatpush2.msra.mxu0 %v455
      %555 = vmatprep.subr.mxu0 0.0
      %556 = vmatpush2.msra.mxu0 %v454
      %557 = vmatprep.subr.mxu0 0.0
      %558 = vmatpush2.msra.mxu0 %v453
      %559 = vmatprep.subr.mxu0 0.0
      %560 = vmatpush2.msra.mxu0 %v452
      %561 = vmatprep.subr.mxu0 0.0
      %562 = vmatpush2.msra.mxu0 %v451
      %563 = vmatprep.mubr.f32.mxu0 %v431
      %564 = vmatmul.mubr.f32.gmra.mxu0 %v430
      %v565 = vpop.f32.mrf.mxu0
      %v566 = vadd.f32 0.0, %v565
      %v567 = vpop.f32.mrf.mxu0
      %568 = vdwg.mxu0
      %569 = vmatprep.subr.mxu0 0.0
      %570 = vmatpush1.msra.mxu0 %v482
      %571 = vmatprep.subr.mxu0 0.0
      %572 = vmatpush1.msra.mxu0 %v481
      %573 = vmatprep.subr.mxu0 0.0
      %574 = vmatpush1.msra.mxu0 %v480
      %575 = vmatprep.subr.mxu0 0.0
      %576 = vmatpush1.msra.mxu0 %v479
      %577 = vmatprep.subr.mxu0 0.0
      %578 = vmatpush1.msra.mxu0 %v478
      %579 = vmatprep.subr.mxu0 0.0
      %580 = vmatpush1.msra.mxu0 %v477
      %581 = vmatprep.subr.mxu0 0.0
      %582 = vmatpush1.msra.mxu0 %v476
      %583 = vmatprep.subr.mxu0 0.0
      %584 = vmatpush1.msra.mxu0 %v475
      %585 = vmatprep.subr.mxu0 0.0
      %586 = vmatpush1.msra.mxu0 %v474
      %587 = vmatprep.subr.mxu0 0.0
      %588 = vmatpush1.msra.mxu0 %v473
      %589 = vmatprep.subr.mxu0 0.0
      %590 = vmatpush1.msra.mxu0 %v472
      %591 = vmatprep.subr.mxu0 0.0
      %592 = vmatpush1.msra.mxu0 %v471
      %593 = vmatprep.subr.mxu0 0.0
      %594 = vmatpush1.msra.mxu0 %v470
      %595 = vmatprep.subr.mxu0 0.0
      %596 = vmatpush1.msra.mxu0 %v469
      %597 = vmatprep.subr.mxu0 0.0
      %598 = vmatpush1.msra.mxu0 %v468
      %599 = vmatprep.subr.mxu0 0.0
      %600 = vmatpush1.msra.mxu0 %v467
      %601 = vmatprep.subr.mxu0 0.0
      %602 = vmatpush2.msra.mxu0 %v498
      %603 = vmatprep.subr.mxu0 0.0
      %604 = vmatpush2.msra.mxu0 %v497
      %605 = vmatprep.subr.mxu0 0.0
      %606 = vmatpush2.msra.mxu0 %v496
      %607 = vmatprep.subr.mxu0 0.0
      %608 = vmatpush2.msra.mxu0 %v495
      %609 = vmatprep.subr.mxu0 0.0
      %610 = vmatpush2.msra.mxu0 %v494
      %611 = vmatprep.subr.mxu0 0.0
      %612 = vmatpush2.msra.mxu0 %v493
      %613 = vmatprep.subr.mxu0 0.0
      %614 = vmatpush2.msra.mxu0 %v492
      %615 = vmatprep.subr.mxu0 0.0
      %616 = vmatpush2.msra.mxu0 %v491
      %617 = vmatprep.subr.mxu0 0.0
      %618 = vmatpush2.msra.mxu0 %v490
      %619 = vmatprep.subr.mxu0 0.0
      %620 = vmatpush2.msra.mxu0 %v489
      %621 = vmatprep.subr.mxu0 0.0
      %622 = vmatpush2.msra.mxu0 %v488
      %623 = vmatprep.subr.mxu0 0.0
      %624 = vmatpush2.msra.mxu0 %v487
      %625 = vmatprep.subr.mxu0 0.0
      %626 = vmatpush2.msra.mxu0 %v486
      %627 = vmatprep.subr.mxu0 0.0
      %628 = vmatpush2.msra.mxu0 %v485
      %629 = vmatprep.subr.mxu0 0.0
      %630 = vmatpush2.msra.mxu0 %v484
      %631 = vmatprep.subr.mxu0 0.0
      %632 = vmatpush2.msra.mxu0 %v483
      %633 = vmatprep.mubr.f32.mxu0 %v433
      %634 = vmatmul.mubr.f32.gmra.mxu0 %v432
      %v635 = vpop.f32.mrf.mxu0
      %v636 = vadd.f32 %v566, %v635
      %v637 = vpop.f32.mrf.mxu0
      %638 = vdwg.mxu0
      %v639 = vadd.f32 %v429, %v636
      %640 = vst [vmem:[#allocation2] sm:$0xff] %v639
      %v641 = vld [vmem:[#allocation2] sm:$0xff]
      %v642 = vld [vmem:[%s205 + $0x40] sm:$0xff]
      %v643 = vld [vmem:[%s205 + $0x48] sm:$0xff]
      %v644 = vld [vmem:[%s205 + $0x50] sm:$0xff]
      %v645 = vld [vmem:[%s205 + $0x58] sm:$0xff]
      %s646 = scalar_lea.vmem %s209, 1024
      %v647 = vld [vmem:[%s646] sm:$0xff]
      %v648 = vld [vmem:[%s646 + $0x8] sm:$0xff]
      %v649 = vld [vmem:[%s646 + $0x10] sm:$0xff]
      %v650 = vld [vmem:[%s646 + $0x18] sm:$0xff]
      %v651 = vld [vmem:[%s646 + $0x20] sm:$0xff]
      %v652 = vld [vmem:[%s646 + $0x28] sm:$0xff]
      %v653 = vld [vmem:[%s646 + $0x30] sm:$0xff]
      %v654 = vld [vmem:[%s646 + $0x38] sm:$0xff]
      %v655 = vld [vmem:[%s646 + $0x40] sm:$0xff]
      %v656 = vld [vmem:[%s646 + $0x48] sm:$0xff]
      %v657 = vld [vmem:[%s646 + $0x50] sm:$0xff]
      %v658 = vld [vmem:[%s646 + $0x58] sm:$0xff]
      %v659 = vld [vmem:[%s646 + $0x60] sm:$0xff]
      %v660 = vld [vmem:[%s646 + $0x68] sm:$0xff]
      %v661 = vld [vmem:[%s646 + $0x70] sm:$0xff]
      %v662 = vld [vmem:[%s646 + $0x78] sm:$0xff]
      %v663 = vld [vmem:[%s646 + $0x80] sm:$0xff]
      %v664 = vld [vmem:[%s646 + $0x88] sm:$0xff]
      %v665 = vld [vmem:[%s646 + $0x90] sm:$0xff]
      %v666 = vld [vmem:[%s646 + $0x98] sm:$0xff]
      %v667 = vld [vmem:[%s646 + $0xa0] sm:$0xff]
      %v668 = vld [vmem:[%s646 + $0xa8] sm:$0xff]
      %v669 = vld [vmem:[%s646 + $0xb0] sm:$0xff]
      %v670 = vld [vmem:[%s646 + $0xb8] sm:$0xff]
      %v671 = vld [vmem:[%s646 + $0xc0] sm:$0xff]
      %v672 = vld [vmem:[%s646 + $0xc8] sm:$0xff]
      %v673 = vld [vmem:[%s646 + $0xd0] sm:$0xff]
      %v674 = vld [vmem:[%s646 + $0xd8] sm:$0xff]
      %v675 = vld [vmem:[%s646 + $0xe0] sm:$0xff]
      %v676 = vld [vmem:[%s646 + $0xe8] sm:$0xff]
      %v677 = vld [vmem:[%s646 + $0xf0] sm:$0xff]
      %v678 = vld [vmem:[%s646 + $0xf8] sm:$0xff]
      %v679 = vld [vmem:[%s646 + $0x100] sm:$0xff]
      %v680 = vld [vmem:[%s646 + $0x108] sm:$0xff]
      %v681 = vld [vmem:[%s646 + $0x110] sm:$0xff]
      %v682 = vld [vmem:[%s646 + $0x118] sm:$0xff]
      %v683 = vld [vmem:[%s646 + $0x120] sm:$0xff]
      %v684 = vld [vmem:[%s646 + $0x128] sm:$0xff]
      %v685 = vld [vmem:[%s646 + $0x130] sm:$0xff]
      %v686 = vld [vmem:[%s646 + $0x138] sm:$0xff]
      %v687 = vld [vmem:[%s646 + $0x140] sm:$0xff]
      %v688 = vld [vmem:[%s646 + $0x148] sm:$0xff]
      %v689 = vld [vmem:[%s646 + $0x150] sm:$0xff]
      %v690 = vld [vmem:[%s646 + $0x158] sm:$0xff]
      %v691 = vld [vmem:[%s646 + $0x160] sm:$0xff]
      %v692 = vld [vmem:[%s646 + $0x168] sm:$0xff]
      %v693 = vld [vmem:[%s646 + $0x170] sm:$0xff]
      %v694 = vld [vmem:[%s646 + $0x178] sm:$0xff]
      %v695 = vld [vmem:[%s646 + $0x180] sm:$0xff]
      %v696 = vld [vmem:[%s646 + $0x188] sm:$0xff]
      %v697 = vld [vmem:[%s646 + $0x190] sm:$0xff]
      %v698 = vld [vmem:[%s646 + $0x198] sm:$0xff]
      %v699 = vld [vmem:[%s646 + $0x1a0] sm:$0xff]
      %v700 = vld [vmem:[%s646 + $0x1a8] sm:$0xff]
      %v701 = vld [vmem:[%s646 + $0x1b0] sm:$0xff]
      %v702 = vld [vmem:[%s646 + $0x1b8] sm:$0xff]
      %v703 = vld [vmem:[%s646 + $0x1c0] sm:$0xff]
      %v704 = vld [vmem:[%s646 + $0x1c8] sm:$0xff]
      %v705 = vld [vmem:[%s646 + $0x1d0] sm:$0xff]
      %v706 = vld [vmem:[%s646 + $0x1d8] sm:$0xff]
      %v707 = vld [vmem:[%s646 + $0x1e0] sm:$0xff]
      %v708 = vld [vmem:[%s646 + $0x1e8] sm:$0xff]
      %v709 = vld [vmem:[%s646 + $0x1f0] sm:$0xff]
      %v710 = vld [vmem:[%s646 + $0x1f8] sm:$0xff]
      %711 = vmatprep.subr.mxu0 0.0
      %712 = vmatpush1.msra.mxu0 %v662
      %713 = vmatprep.subr.mxu0 0.0
      %714 = vmatpush1.msra.mxu0 %v661
      %715 = vmatprep.subr.mxu0 0.0
      %716 = vmatpush1.msra.mxu0 %v660
      %717 = vmatprep.subr.mxu0 0.0
      %718 = vmatpush1.msra.mxu0 %v659
      %719 = vmatprep.subr.mxu0 0.0
      %720 = vmatpush1.msra.mxu0 %v658
      %721 = vmatprep.subr.mxu0 0.0
      %722 = vmatpush1.msra.mxu0 %v657
      %723 = vmatprep.subr.mxu0 0.0
      %724 = vmatpush1.msra.mxu0 %v656
      %725 = vmatprep.subr.mxu0 0.0
      %726 = vmatpush1.msra.mxu0 %v655
      %727 = vmatprep.subr.mxu0 0.0
      %728 = vmatpush1.msra.mxu0 %v654
      %729 = vmatprep.subr.mxu0 0.0
      %730 = vmatpush1.msra.mxu0 %v653
      %731 = vmatprep.subr.mxu0 0.0
      %732 = vmatpush1.msra.mxu0 %v652
      %733 = vmatprep.subr.mxu0 0.0
      %734 = vmatpush1.msra.mxu0 %v651
      %735 = vmatprep.subr.mxu0 0.0
      %736 = vmatpush1.msra.mxu0 %v650
      %737 = vmatprep.subr.mxu0 0.0
      %738 = vmatpush1.msra.mxu0 %v649
      %739 = vmatprep.subr.mxu0 0.0
      %740 = vmatpush1.msra.mxu0 %v648
      %741 = vmatprep.subr.mxu0 0.0
      %742 = vmatpush1.msra.mxu0 %v647
      %743 = vmatprep.subr.mxu0 0.0
      %744 = vmatpush2.msra.mxu0 %v678
      %745 = vmatprep.subr.mxu0 0.0
      %746 = vmatpush2.msra.mxu0 %v677
      %747 = vmatprep.subr.mxu0 0.0
      %748 = vmatpush2.msra.mxu0 %v676
      %749 = vmatprep.subr.mxu0 0.0
      %750 = vmatpush2.msra.mxu0 %v675
      %751 = vmatprep.subr.mxu0 0.0
      %752 = vmatpush2.msra.mxu0 %v674
      %753 = vmatprep.subr.mxu0 0.0
      %754 = vmatpush2.msra.mxu0 %v673
      %755 = vmatprep.subr.mxu0 0.0
      %756 = vmatpush2.msra.mxu0 %v672
      %757 = vmatprep.subr.mxu0 0.0
      %758 = vmatpush2.msra.mxu0 %v671
      %759 = vmatprep.subr.mxu0 0.0
      %760 = vmatpush2.msra.mxu0 %v670
      %761 = vmatprep.subr.mxu0 0.0
      %762 = vmatpush2.msra.mxu0 %v669
      %763 = vmatprep.subr.mxu0 0.0
      %764 = vmatpush2.msra.mxu0 %v668
      %765 = vmatprep.subr.mxu0 0.0
      %766 = vmatpush2.msra.mxu0 %v667
      %767 = vmatprep.subr.mxu0 0.0
      %768 = vmatpush2.msra.mxu0 %v666
      %769 = vmatprep.subr.mxu0 0.0
      %770 = vmatpush2.msra.mxu0 %v665
      %771 = vmatprep.subr.mxu0 0.0
      %772 = vmatpush2.msra.mxu0 %v664
      %773 = vmatprep.subr.mxu0 0.0
      %774 = vmatpush2.msra.mxu0 %v663
      %775 = vmatprep.mubr.f32.mxu0 %v643
      %776 = vmatmul.mubr.f32.gmra.mxu0 %v642
      %v777 = vpop.f32.mrf.mxu0
      %v778 = vadd.f32 0.0, %v777
      %v779 = vpop.f32.mrf.mxu0
      %780 = vdwg.mxu0
      %781 = vmatprep.subr.mxu0 0.0
      %782 = vmatpush1.msra.mxu0 %v694
      %783 = vmatprep.subr.mxu0 0.0
      %784 = vmatpush1.msra.mxu0 %v693
      %785 = vmatprep.subr.mxu0 0.0
      %786 = vmatpush1.msra.mxu0 %v692
      %787 = vmatprep.subr.mxu0 0.0
      %788 = vmatpush1.msra.mxu0 %v691
      %789 = vmatprep.subr.mxu0 0.0
      %790 = vmatpush1.msra.mxu0 %v690
      %791 = vmatprep.subr.mxu0 0.0
      %792 = vmatpush1.msra.mxu0 %v689
      %793 = vmatprep.subr.mxu0 0.0
      %794 = vmatpush1.msra.mxu0 %v688
      %795 = vmatprep.subr.mxu0 0.0
      %796 = vmatpush1.msra.mxu0 %v687
      %797 = vmatprep.subr.mxu0 0.0
      %798 = vmatpush1.msra.mxu0 %v686
      %799 = vmatprep.subr.mxu0 0.0
      %800 = vmatpush1.msra.mxu0 %v685
      %801 = vmatprep.subr.mxu0 0.0
      %802 = vmatpush1.msra.mxu0 %v684
      %803 = vmatprep.subr.mxu0 0.0
      %804 = vmatpush1.msra.mxu0 %v683
      %805 = vmatprep.subr.mxu0 0.0
      %806 = vmatpush1.msra.mxu0 %v682
      %807 = vmatprep.subr.mxu0 0.0
      %808 = vmatpush1.msra.mxu0 %v681
      %809 = vmatprep.subr.mxu0 0.0
      %810 = vmatpush1.msra.mxu0 %v680
      %811 = vmatprep.subr.mxu0 0.0
      %812 = vmatpush1.msra.mxu0 %v679
      %813 = vmatprep.subr.mxu0 0.0
      %814 = vmatpush2.msra.mxu0 %v710
      %815 = vmatprep.subr.mxu0 0.0
      %816 = vmatpush2.msra.mxu0 %v709
      %817 = vmatprep.subr.mxu0 0.0
      %818 = vmatpush2.msra.mxu0 %v708
      %819 = vmatprep.subr.mxu0 0.0
      %820 = vmatpush2.msra.mxu0 %v707
      %821 = vmatprep.subr.mxu0 0.0
      %822 = vmatpush2.msra.mxu0 %v706
      %823 = vmatprep.subr.mxu0 0.0
      %824 = vmatpush2.msra.mxu0 %v705
      %825 = vmatprep.subr.mxu0 0.0
      %826 = vmatpush2.msra.mxu0 %v704
      %827 = vmatprep.subr.mxu0 0.0
      %828 = vmatpush2.msra.mxu0 %v703
      %829 = vmatprep.subr.mxu0 0.0
      %830 = vmatpush2.msra.mxu0 %v702
      %831 = vmatprep.subr.mxu0 0.0
      %832 = vmatpush2.msra.mxu0 %v701
      %833 = vmatprep.subr.mxu0 0.0
      %834 = vmatpush2.msra.mxu0 %v700
      %835 = vmatprep.subr.mxu0 0.0
      %836 = vmatpush2.msra.mxu0 %v699
      %837 = vmatprep.subr.mxu0 0.0
      %838 = vmatpush2.msra.mxu0 %v698
      %839 = vmatprep.subr.mxu0 0.0
      %840 = vmatpush2.msra.mxu0 %v697
      %841 = vmatprep.subr.mxu0 0.0
      %842 = vmatpush2.msra.mxu0 %v696
      %843 = vmatprep.subr.mxu0 0.0
      %844 = vmatpush2.msra.mxu0 %v695
      %845 = vmatprep.mubr.f32.mxu0 %v645
      %846 = vmatmul.mubr.f32.gmra.mxu0 %v644
      %v847 = vpop.f32.mrf.mxu0
      %v848 = vadd.f32 %v778, %v847
      %v849 = vpop.f32.mrf.mxu0
      %850 = vdwg.mxu0
      %v851 = vadd.f32 %v641, %v848
      %852 = vst [vmem:[#allocation2] sm:$0xff] %v851
      %v853 = vld [vmem:[#allocation2] sm:$0xff]
      %v854 = vld [vmem:[%s205 + $0x60] sm:$0xff]
      %v855 = vld [vmem:[%s205 + $0x68] sm:$0xff]
      %v856 = vld [vmem:[%s205 + $0x70] sm:$0xff]
      %v857 = vld [vmem:[%s205 + $0x78] sm:$0xff]
      %s858 = scalar_lea.vmem %s209, 1536
      %v859 = vld [vmem:[%s858] sm:$0xff]
      %v860 = vld [vmem:[%s858 + $0x8] sm:$0xff]
      %v861 = vld [vmem:[%s858 + $0x10] sm:$0xff]
      %v862 = vld [vmem:[%s858 + $0x18] sm:$0xff]
      %v863 = vld [vmem:[%s858 + $0x20] sm:$0xff]
      %v864 = vld [vmem:[%s858 + $0x28] sm:$0xff]
      %v865 = vld [vmem:[%s858 + $0x30] sm:$0xff]
      %v866 = vld [vmem:[%s858 + $0x38] sm:$0xff]
      %v867 = vld [vmem:[%s858 + $0x40] sm:$0xff]
      %v868 = vld [vmem:[%s858 + $0x48] sm:$0xff]
      %v869 = vld [vmem:[%s858 + $0x50] sm:$0xff]
      %v870 = vld [vmem:[%s858 + $0x58] sm:$0xff]
      %v871 = vld [vmem:[%s858 + $0x60] sm:$0xff]
      %v872 = vld [vmem:[%s858 + $0x68] sm:$0xff]
      %v873 = vld [vmem:[%s858 + $0x70] sm:$0xff]
      %v874 = vld [vmem:[%s858 + $0x78] sm:$0xff]
      %v875 = vld [vmem:[%s858 + $0x80] sm:$0xff]
      %v876 = vld [vmem:[%s858 + $0x88] sm:$0xff]
      %v877 = vld [vmem:[%s858 + $0x90] sm:$0xff]
      %v878 = vld [vmem:[%s858 + $0x98] sm:$0xff]
      %v879 = vld [vmem:[%s858 + $0xa0] sm:$0xff]
      %v880 = vld [vmem:[%s858 + $0xa8] sm:$0xff]
      %v881 = vld [vmem:[%s858 + $0xb0] sm:$0xff]
      %v882 = vld [vmem:[%s858 + $0xb8] sm:$0xff]
      %v883 = vld [vmem:[%s858 + $0xc0] sm:$0xff]
      %v884 = vld [vmem:[%s858 + $0xc8] sm:$0xff]
      %v885 = vld [vmem:[%s858 + $0xd0] sm:$0xff]
      %v886 = vld [vmem:[%s858 + $0xd8] sm:$0xff]
      %v887 = vld [vmem:[%s858 + $0xe0] sm:$0xff]
      %v888 = vld [vmem:[%s858 + $0xe8] sm:$0xff]
      %v889 = vld [vmem:[%s858 + $0xf0] sm:$0xff]
      %v890 = vld [vmem:[%s858 + $0xf8] sm:$0xff]
      %v891 = vld [vmem:[%s858 + $0x100] sm:$0xff]
      %v892 = vld [vmem:[%s858 + $0x108] sm:$0xff]
      %v893 = vld [vmem:[%s858 + $0x110] sm:$0xff]
      %v894 = vld [vmem:[%s858 + $0x118] sm:$0xff]
      %v895 = vld [vmem:[%s858 + $0x120] sm:$0xff]
      %v896 = vld [vmem:[%s858 + $0x128] sm:$0xff]
      %v897 = vld [vmem:[%s858 + $0x130] sm:$0xff]
      %v898 = vld [vmem:[%s858 + $0x138] sm:$0xff]
      %v899 = vld [vmem:[%s858 + $0x140] sm:$0xff]
      %v900 = vld [vmem:[%s858 + $0x148] sm:$0xff]
      %v901 = vld [vmem:[%s858 + $0x150] sm:$0xff]
      %v902 = vld [vmem:[%s858 + $0x158] sm:$0xff]
      %v903 = vld [vmem:[%s858 + $0x160] sm:$0xff]
      %v904 = vld [vmem:[%s858 + $0x168] sm:$0xff]
      %v905 = vld [vmem:[%s858 + $0x170] sm:$0xff]
      %v906 = vld [vmem:[%s858 + $0x178] sm:$0xff]
      %v907 = vld [vmem:[%s858 + $0x180] sm:$0xff]
      %v908 = vld [vmem:[%s858 + $0x188] sm:$0xff]
      %v909 = vld [vmem:[%s858 + $0x190] sm:$0xff]
      %v910 = vld [vmem:[%s858 + $0x198] sm:$0xff]
      %v911 = vld [vmem:[%s858 + $0x1a0] sm:$0xff]
      %v912 = vld [vmem:[%s858 + $0x1a8] sm:$0xff]
      %v913 = vld [vmem:[%s858 + $0x1b0] sm:$0xff]
      %v914 = vld [vmem:[%s858 + $0x1b8] sm:$0xff]
      %v915 = vld [vmem:[%s858 + $0x1c0] sm:$0xff]
      %v916 = vld [vmem:[%s858 + $0x1c8] sm:$0xff]
      %v917 = vld [vmem:[%s858 + $0x1d0] sm:$0xff]
      %v918 = vld [vmem:[%s858 + $0x1d8] sm:$0xff]
      %v919 = vld [vmem:[%s858 + $0x1e0] sm:$0xff]
      %v920 = vld [vmem:[%s858 + $0x1e8] sm:$0xff]
      %v921 = vld [vmem:[%s858 + $0x1f0] sm:$0xff]
      %v922 = vld [vmem:[%s858 + $0x1f8] sm:$0xff]
      %923 = vmatprep.subr.mxu0 0.0
      %924 = vmatpush1.msra.mxu0 %v874
      %925 = vmatprep.subr.mxu0 0.0
      %926 = vmatpush1.msra.mxu0 %v873
      %927 = vmatprep.subr.mxu0 0.0
      %928 = vmatpush1.msra.mxu0 %v872
      %929 = vmatprep.subr.mxu0 0.0
      %930 = vmatpush1.msra.mxu0 %v871
      %931 = vmatprep.subr.mxu0 0.0
      %932 = vmatpush1.msra.mxu0 %v870
      %933 = vmatprep.subr.mxu0 0.0
      %934 = vmatpush1.msra.mxu0 %v869
      %935 = vmatprep.subr.mxu0 0.0
      %936 = vmatpush1.msra.mxu0 %v868
      %937 = vmatprep.subr.mxu0 0.0
      %938 = vmatpush1.msra.mxu0 %v867
      %939 = vmatprep.subr.mxu0 0.0
      %940 = vmatpush1.msra.mxu0 %v866
      %941 = vmatprep.subr.mxu0 0.0
      %942 = vmatpush1.msra.mxu0 %v865
      %943 = vmatprep.subr.mxu0 0.0
      %944 = vmatpush1.msra.mxu0 %v864
      %945 = vmatprep.subr.mxu0 0.0
      %946 = vmatpush1.msra.mxu0 %v863
      %947 = vmatprep.subr.mxu0 0.0
      %948 = vmatpush1.msra.mxu0 %v862
      %949 = vmatprep.subr.mxu0 0.0
      %950 = vmatpush1.msra.mxu0 %v861
      %951 = vmatprep.subr.mxu0 0.0
      %952 = vmatpush1.msra.mxu0 %v860
      %953 = vmatprep.subr.mxu0 0.0
      %954 = vmatpush1.msra.mxu0 %v859
      %955 = vmatprep.subr.mxu0 0.0
      %956 = vmatpush2.msra.mxu0 %v890
      %957 = vmatprep.subr.mxu0 0.0
      %958 = vmatpush2.msra.mxu0 %v889
      %959 = vmatprep.subr.mxu0 0.0
      %960 = vmatpush2.msra.mxu0 %v888
      %961 = vmatprep.subr.mxu0 0.0
      %962 = vmatpush2.msra.mxu0 %v887
      %963 = vmatprep.subr.mxu0 0.0
      %964 = vmatpush2.msra.mxu0 %v886
      %965 = vmatprep.subr.mxu0 0.0
      %966 = vmatpush2.msra.mxu0 %v885
      %967 = vmatprep.subr.mxu0 0.0
      %968 = vmatpush2.msra.mxu0 %v884
      %969 = vmatprep.subr.mxu0 0.0
      %970 = vmatpush2.msra.mxu0 %v883
      %971 = vmatprep.subr.mxu0 0.0
      %972 = vmatpush2.msra.mxu0 %v882
      %973 = vmatprep.subr.mxu0 0.0
      %974 = vmatpush2.msra.mxu0 %v881
      %975 = vmatprep.subr.mxu0 0.0
      %976 = vmatpush2.msra.mxu0 %v880
      %977 = vmatprep.subr.mxu0 0.0
      %978 = vmatpush2.msra.mxu0 %v879
      %979 = vmatprep.subr.mxu0 0.0
      %980 = vmatpush2.msra.mxu0 %v878
      %981 = vmatprep.subr.mxu0 0.0
      %982 = vmatpush2.msra.mxu0 %v877
      %983 = vmatprep.subr.mxu0 0.0
      %984 = vmatpush2.msra.mxu0 %v876
      %985 = vmatprep.subr.mxu0 0.0
      %986 = vmatpush2.msra.mxu0 %v875
      %987 = vmatprep.mubr.f32.mxu0 %v855
      %988 = vmatmul.mubr.f32.gmra.mxu0 %v854
      %v989 = vpop.f32.mrf.mxu0
      %v990 = vadd.f32 0.0, %v989
      %v991 = vpop.f32.mrf.mxu0
      %992 = vdwg.mxu0
      %993 = vmatprep.subr.mxu0 0.0
      %994 = vmatpush1.msra.mxu0 %v906
      %995 = vmatprep.subr.mxu0 0.0
      %996 = vmatpush1.msra.mxu0 %v905
      %997 = vmatprep.subr.mxu0 0.0
      %998 = vmatpush1.msra.mxu0 %v904
      %999 = vmatprep.subr.mxu0 0.0
      %1000 = vmatpush1.msra.mxu0 %v903
      %1001 = vmatprep.subr.mxu0 0.0
      %1002 = vmatpush1.msra.mxu0 %v902
      %1003 = vmatprep.subr.mxu0 0.0
      %1004 = vmatpush1.msra.mxu0 %v901
      %1005 = vmatprep.subr.mxu0 0.0
      %1006 = vmatpush1.msra.mxu0 %v900
      %1007 = vmatprep.subr.mxu0 0.0
      %1008 = vmatpush1.msra.mxu0 %v899
      %1009 = vmatprep.subr.mxu0 0.0
      %1010 = vmatpush1.msra.mxu0 %v898
      %1011 = vmatprep.subr.mxu0 0.0
      %1012 = vmatpush1.msra.mxu0 %v897
      %1013 = vmatprep.subr.mxu0 0.0
      %1014 = vmatpush1.msra.mxu0 %v896
      %1015 = vmatprep.subr.mxu0 0.0
      %1016 = vmatpush1.msra.mxu0 %v895
      %1017 = vmatprep.subr.mxu0 0.0
      %1018 = vmatpush1.msra.mxu0 %v894
      %1019 = vmatprep.subr.mxu0 0.0
      %1020 = vmatpush1.msra.mxu0 %v893
      %1021 = vmatprep.subr.mxu0 0.0
      %1022 = vmatpush1.msra.mxu0 %v892
      %1023 = vmatprep.subr.mxu0 0.0
      %1024 = vmatpush1.msra.mxu0 %v891
      %1025 = vmatprep.subr.mxu0 0.0
      %1026 = vmatpush2.msra.mxu0 %v922
      %1027 = vmatprep.subr.mxu0 0.0
      %1028 = vmatpush2.msra.mxu0 %v921
      %1029 = vmatprep.subr.mxu0 0.0
      %1030 = vmatpush2.msra.mxu0 %v920
      %1031 = vmatprep.subr.mxu0 0.0
      %1032 = vmatpush2.msra.mxu0 %v919
      %1033 = vmatprep.subr.mxu0 0.0
      %1034 = vmatpush2.msra.mxu0 %v918
      %1035 = vmatprep.subr.mxu0 0.0
      %1036 = vmatpush2.msra.mxu0 %v917
      %1037 = vmatprep.subr.mxu0 0.0
      %1038 = vmatpush2.msra.mxu0 %v916
      %1039 = vmatprep.subr.mxu0 0.0
      %1040 = vmatpush2.msra.mxu0 %v915
      %1041 = vmatprep.subr.mxu0 0.0
      %1042 = vmatpush2.msra.mxu0 %v914
      %1043 = vmatprep.subr.mxu0 0.0
      %1044 = vmatpush2.msra.mxu0 %v913
      %1045 = vmatprep.subr.mxu0 0.0
      %1046 = vmatpush2.msra.mxu0 %v912
      %1047 = vmatprep.subr.mxu0 0.0
      %1048 = vmatpush2.msra.mxu0 %v911
      %1049 = vmatprep.subr.mxu0 0.0
      %1050 = vmatpush2.msra.mxu0 %v910
      %1051 = vmatprep.subr.mxu0 0.0
      %1052 = vmatpush2.msra.mxu0 %v909
      %1053 = vmatprep.subr.mxu0 0.0
      %1054 = vmatpush2.msra.mxu0 %v908
      %1055 = vmatprep.subr.mxu0 0.0
      %1056 = vmatpush2.msra.mxu0 %v907
      %1057 = vmatprep.mubr.f32.mxu0 %v857
      %1058 = vmatmul.mubr.f32.gmra.mxu0 %v856
      %v1059 = vpop.f32.mrf.mxu0
      %v1060 = vadd.f32 %v990, %v1059
      %v1061 = vpop.f32.mrf.mxu0
      %1062 = vdwg.mxu0
      %v1063 = vadd.f32 %v853, %v1060
      %1064 = vst [vmem:[#allocation2] sm:$0xff] %v1063
      %v1065 = vld [vmem:[#allocation2] sm:$0xff]
      %v1066 = vld [vmem:[%s212] sm:$0x1]
      %v1068 = vlaneseq
      %v1069 = vshrl.u32 %v1068, 7
      %v1070 = vsub.s32 0, %v1069
      %v1071 = vrot.slane %v1066, %v1070
      %v1073 = vadd.f32 %v1065, %v1071
      %1074 = vst [vmem:[%s219] sm:$0xff] %v1073
      %p1075 = scmp.lt.s32.totalorder %s18, 1
      %s1076 = scalar_select %p1075, %s18, 1
      %p1077 = scmp.lt.s32.totalorder %s19, 0
      %s1078 = scalar_select %p1077, %s19, 0
      %s1079 = sadd.s32 %s1078, %s1076
      %s1080 = smul.addr %s1079, 8
      %s1081 = scalar_lea.vmem %s3, %s1080
      // Predicated region
      $region33: #{_lambda_.7} parent=31 // pred_check
        %p1082 = pneg %p124
      $region34: #{_lambda_.7} parent=31 // pred_check_branch
        %1084 = sbr.rel (%p1082) target = $region36
      $region35: #{_lambda_.7} parent=31 // pred_region
        _
      $region36: #{_lambda_.7} parent=31 // pred_fallthru
        _
    $region32: #{_lambda_.7} parent=5 // pred_fallthru
      _
    %p1085 = scmp.le.s32.totalorder 2, %s9
    // Predicated region
    $region37: #{_lambda_.7} parent=5 // pred_check
      %p1086 = pneg %p1085
    $region38: #{_lambda_.7} parent=5 // pred_check_branch
      %1088 = sbr.rel (%p1086) target = $region40
    $region39: #{_lambda_.7} parent=5 // pred_region
      %s1089 = ssub.s32 %s9, 2
      // Predicated region
      $region41: #{_lambda_.7} parent=39 // pred_check
        %p1090 = pneg %p130
      $region42: #{_lambda_.7} parent=39 // pred_check_branch
        %1092 = sbr.rel (%p1090) target = $region44
      $region43: #{_lambda_.7} parent=39 // pred_region
        %p1093 = scmp.lt.s32.totalorder %s20, 1
        %s1094 = scalar_select %p1093, %s20, 1
        %p1095 = scmp.lt.s32.totalorder %s21, 0
        %s1096 = scalar_select %p1095, %s21, 0
        %s1097 = sadd.s32 %s1096, %s1094
        %s1098 = smul.addr %s1097, 8
        %s1099 = scalar_lea.vmem %s3, %s1098
      $region44: #{_lambda_.7} parent=39 // pred_fallthru
        _
    $region40: #{_lambda_.7} parent=5 // pred_fallthru
      _
  $region6: #{_lambda_.7} parent=0 // loop_footer
    %s13 = sadd.s32 1, %s9
  $region7: #{_lambda_.7} parent=0 // loop_footer_branch
    %8 = sbr.rel target = $region3
  $region8: #{_lambda_.7} parent=0 // loop_exit
    _

</llo_original>
